<compile_context>
chip_gen: v6e
topology: v6e:2x2x1
jax: 0.10.0
libtpu: 0.0.40
codegen_flags: <defaults>
</compile_context>

<pallas_src>
import math
import functools

import jax
import jax.numpy as jnp
from jax import lax
from jax.experimental import pallas as pl
from jax.experimental.pallas import tpu as pltpu


# Indices into the packed per-layer (N, 6, 1, D) vector bundle.
_BO, _B2, _G1, _BE1, _G2, _BE2 = range(6)


# ----------------------------------------------------------------------------
# Shared math helpers (pure jnp: used both inside the kernel and in the
# pure-JAX reference).
# ----------------------------------------------------------------------------
def _layer_norm(x, gamma, beta, eps=1e-5):
    """torch.nn.LayerNorm over the last dim (biased variance, eps=1e-5)."""
    mean = jnp.mean(x, axis=-1, keepdims=True)
    cent = x - mean
    var = jnp.mean(cent * cent, axis=-1, keepdims=True)
    return cent * jax.lax.rsqrt(var + eps) * gamma + beta


def _positional_encoding(T, D):
    """Same construction as the torch reference (requires even d_model)."""
    assert D % 2 == 0, "positional encoding requires an even d_model"
    position = jnp.arange(0, T, dtype=jnp.float32)[:, None]
    temp = jnp.arange(0, D, 2, dtype=jnp.float32)
    temp = jnp.exp(temp * -(math.log(10000.0) / D))[None, :]
    temp = position @ temp                                 # (T, D//2)
    pe_mat = jnp.ones((T, D), jnp.float32)
    pe_mat = pe_mat.at[:, 0::2].set(jnp.sin(temp))
    pe_mat = pe_mat.at[:, 1::2].set(jnp.cos(temp))
    return pe_mat


# ----------------------------------------------------------------------------
# Fused whole-forward kernel
# ----------------------------------------------------------------------------
def _fused_transformer_kernel(B, T, C, D, q_dim, v_dim, h, n_layers, d_out,
                              mm_dtype,
                              x_ref, add_ref, emb_w_ref,
                              wqkv_ref, bqkv_ref, wo_ref, dvec_ref,
                              w1_ref, b1_ref, w2t_ref,
                              out_w_ref, out_b_ref,
                              o_ref):
    M = B * T
    f32 = jnp.float32
    HQ = h * q_dim
    scale = 1.0 / math.sqrt(q_dim)

    # ---- embedding linear (batch folded into matmul M dimension) -----------
    # add_ref already holds emb_bias + positional encoding (host-folded).
    x = x_ref[...].reshape(M, C).astype(mm_dtype)          # merge leading dims
    X = jnp.dot(x, emb_w_ref[...], preferred_element_type=f32) + add_ref[...]

    for i in range(n_layers):                              # static unroll, N small
        # -------------------- multi-head self attention --------------------
        # one fused, lane-dense QKV projection for all heads
        qkv = jnp.dot(X.astype(mm_dtype), wqkv_ref[i],
                      preferred_element_type=f32) + bqkv_ref[i]   # (M, h*(2q+v))

        # fold (head, batch) into one batch axis -> (h*B, T, d)
        Qh = jnp.stack([qkv[:, hi * q_dim:(hi + 1) * q_dim] for hi in range(h)])
        Kh = jnp.stack([qkv[:, HQ + hi * q_dim:HQ + (hi + 1) * q_dim]
                        for hi in range(h)])
        Vh = jnp.stack([qkv[:, 2 * HQ + hi * v_dim:2 * HQ + (hi + 1) * v_dim]
                        for hi in range(h)])
        Qb = Qh.reshape(h * B, T, q_dim).astype(mm_dtype)
        Kb = Kh.reshape(h * B, T, q_dim).astype(mm_dtype)
        Vb = Vh.reshape(h * B, T, v_dim).astype(mm_dtype)

        s = jnp.einsum('xtq,xsq->xts', Qb, Kb,
                       preferred_element_type=f32) * scale        # (h*B, T, T)
        s = s - jnp.max(s, axis=-1, keepdims=True)
        p = jnp.exp(s)
        p = p * pl.reciprocal(jnp.sum(p, axis=-1, keepdims=True), approx=True)

        ctx = jnp.einsum('xts,xsv->xtv', p.astype(mm_dtype), Vb,
                         preferred_element_type=f32)              # (h*B, T, v)

        # fold W_o per head (batched) and sum over heads:
        #   concat(heads) @ W_o == sum_h ctx_h @ W_o[h]
        ctx_h = ctx.reshape(h, M, v_dim).astype(mm_dtype)
        co = jnp.einsum('hmv,hvd->hmd', ctx_h, wo_ref[i],
                        preferred_element_type=f32)               # (h, M, D)
        sa = jnp.sum(co, axis=0) + dvec_ref[i, _BO]

        # dropout is identity in eval mode
        x1 = _layer_norm(sa + X, dvec_ref[i, _G1], dvec_ref[i, _BE1])

        # -------------------- position-wise feed forward --------------------
        ff = jnp.dot(x1.astype(mm_dtype), w1_ref[i],
                     preferred_element_type=f32) + b1_ref[i]
        ff = jnp.maximum(ff, 0.0)
        # w2 stored transposed (D, d_ff): contract over lane-dense d_ff (A @ B^T)
        ff2 = lax.dot_general(ff.astype(mm_dtype), w2t_ref[i],
                              (((1,), (1,)), ((), ())),
                              preferred_element_type=f32) + dvec_ref[i, _B2]
        X = _layer_norm(ff2 + x1, dvec_ref[i, _G2], dvec_ref[i, _BE2])

    # ---- final linear on flattened (T*D) features ---------------------------
    #   out[b] = concat_t X[b, t] @ W_out  ==  sum_t X[b, t] @ W_out[t]
    # One T-batched contraction + leading-axis sum (no serial accumulate
    # chain, no lane-crossing (M, D) -> (B, T*D) reshape).
    X3 = X.reshape(B, T, D)
    Xt = jnp.stack([X3[:, t, :] for t in range(T)], axis=0).astype(mm_dtype)  # (T, B, D)
    Yt = jnp.einsum('tbd,tod->tbo', Xt, out_w_ref[...],
                    preferred_element_type=f32)                    # (T, B, d_out)
    o_ref[...] = jnp.sum(Yt, axis=0) + out_b_ref[...]


# ----------------------------------------------------------------------------
# Parameter construction (deterministic, torch-Linear-like uniform init)
# ----------------------------------------------------------------------------
def _init_linear(key, d_in, d_out):
    kw, kb = jax.random.split(key)
    bound = 1.0 / math.sqrt(d_in)
    w = jax.random.uniform(kw, (d_in, d_out), jnp.float32, -bound, bound)
    b = jax.random.uniform(kb, (1, d_out), jnp.float32, -bound, bound)
    return w, b


def init_transformer_params(key, *, d_input, d_channel, d_model, d_output,
                            q, v, h, N, d_ff=2048):
    keys = jax.random.split(key, 2 + N)
    params = {}
    params["emb_w"], params["emb_b"] = _init_linear(keys[0], d_channel, d_model)
    params["out_w"], params["out_b"] = _init_linear(keys[1], d_model * d_input,
                                                    d_output)
    layers = []
    for i in range(N):
        lk = jax.random.split(keys[2 + i], 6)
        lp = {}
        lp["wq"], lp["bq"] = _init_linear(lk[0], d_model, q * h)
        lp["wk"], lp["bk"] = _init_linear(lk[1], d_model, q * h)
        lp["wv"], lp["bv"] = _init_linear(lk[2], d_model, v * h)
        lp["wo"], lp["bo"] = _init_linear(lk[3], v * h, d_model)
        lp["w1"], lp["b1"] = _init_linear(lk[4], d_model, d_ff)
        lp["w2"], lp["b2"] = _init_linear(lk[5], d_ff, d_model)
        lp["g1"] = jnp.ones((1, d_model), jnp.float32)
        lp["be1"] = jnp.zeros((1, d_model), jnp.float32)
        lp["g2"] = jnp.ones((1, d_model), jnp.float32)
        lp["be2"] = jnp.zeros((1, d_model), jnp.float32)
        layers.append(lp)
    params["layers"] = layers
    return params


def _pack_params(params, *, q, v, h, mm_dtype):
    """Host-side restructuring: fused lane-dense QKV, transposed w2, per-head
    W_o stack, and packed per-layer D-length vectors (fewer / denser DMAs)."""
    layers = params["layers"]
    D = params["emb_w"].shape[1]

    packed = {
        "emb_w": params["emb_w"].astype(mm_dtype),                        # (C, D)
        # fused QKV: columns ordered [Q(h-major) | K(h-major) | V(h-major)]
        "wqkv": jnp.stack([jnp.concatenate([lp["wq"], lp["wk"], lp["wv"]],
                                           axis=1)
                           for lp in layers]).astype(mm_dtype),           # (N, D, h*(2q+v))
        "bqkv": jnp.stack([jnp.concatenate([lp["bq"], lp["bk"], lp["bv"]],
                                           axis=1)
                           for lp in layers]).astype(jnp.float32),        # (N, 1, h*(2q+v))
        "wo": jnp.stack([lp["wo"].reshape(h, v, D)
                         for lp in layers]).astype(mm_dtype),             # (N, h, v, D)
        "w1": jnp.stack([lp["w1"] for lp in layers]).astype(mm_dtype),    # (N, D, d_ff)
        "b1": jnp.stack([lp["b1"] for lp in layers]).astype(jnp.float32), # (N, 1, d_ff)
        "w2t": jnp.stack([lp["w2"].T
                          for lp in layers]).astype(mm_dtype),            # (N, D, d_ff) lane-dense
        # packed D-length vectors: [bo, b2, g1, be1, g2, be2] -> (N, 6, 1, D)
        "dvec": jnp.stack([jnp.stack([lp["bo"], lp["b2"], lp["g1"],
                                      lp["be1"], lp["g2"], lp["be2"]])
                           for lp in layers]).astype(jnp.float32),
    }
    return packed


# ----------------------------------------------------------------------------
# Full forward pass (single fused pallas_call)
# ----------------------------------------------------------------------------
def transformer_forward(x, params, *, d_input, d_model, q, v, h, pe=False,
                        mm_dtype=jnp.bfloat16):
    B, T, C = x.shape
    assert T == d_input
    D = d_model
    n_layers = len(params["layers"])
    d_out = params["out_w"].shape[1]

    packed = _pack_params(params, q=q, v=v, h=h, mm_dtype=mm_dtype)

    # emb bias (+ positional encoding when enabled) folded into one additive
    # (B*T, D) array -> one DMA instead of two, zero in-kernel work when pe=False.
    add = params["emb_b"]                                       # (1, D)
    if pe:
        add = add + _positional_encoding(T, D)                  # (T, D)
    else:
        add = jnp.broadcast_to(add, (T, D))
    add_bt = jnp.tile(add, (B, 1)).astype(jnp.float32)          # (B*T, D)

    # final-linear weight stored (T, d_out, D): last dim lane-dense (D), not d_out
    out_wT = jnp.transpose(params["out_w"].reshape(T, D, d_out),
                           (0, 2, 1)).astype(mm_dtype)

    kernel = functools.partial(_fused_transformer_kernel,
                               B, T, C, D, q, v, h, n_layers, d_out, mm_dtype)

    return pl.pallas_call(
        kernel,
        out_shape=jax.ShapeDtypeStruct((B, d_out), jnp.float32),
        compiler_params=pltpu.CompilerParams(vmem_limit_bytes=8 * 1024 * 1024),
    )(
        x, add_bt,
        packed["emb_w"],
        packed["wqkv"], packed["bqkv"], packed["wo"], packed["dvec"],
        packed["w1"], packed["b1"], packed["w2t"],
        out_wT, params["out_b"],
    )


# ----------------------------------------------------------------------------
# Pure-JAX reference (mirrors the PyTorch module exactly, f32) for validation
# ----------------------------------------------------------------------------
def reference_forward(x, params, *, d_input, d_model, q, v, h, pe=False):
    B, T, C = x.shape
    enc = x @ params["emb_w"] + params["emb_b"]
    if pe:
        enc = enc + _positional_encoding(d_input, d_model)[None]
    for lp in params["layers"]:
        X = enc
        Q = X @ lp["wq"] + lp["bq"]
        K = X @ lp["wk"] + lp["bk"]
        V = X @ lp["wv"] + lp["bv"]
        heads = []
        for hi in range(h):
            Qh = Q[..., hi * q:(hi + 1) * q]
            Kh = K[..., hi * q:(hi + 1) * q]
            Vh = V[..., hi * v:(hi + 1) * v]
            s = jnp.einsum('btd,bsd->bts', Qh, Kh) / math.sqrt(q)
            p = jax.nn.softmax(s, axis=-1)
            heads.append(jnp.einsum('bts,bsd->btd', p, Vh))
        attn = jnp.concatenate(heads, axis=-1)
        sa = attn @ lp["wo"] + lp["bo"]
        x1 = _layer_norm(sa + X, lp["g1"], lp["be1"])
        ff = jnp.maximum(x1 @ lp["w1"] + lp["b1"], 0.0) @ lp["w2"] + lp["b2"]
        enc = _layer_norm(ff + x1, lp["g2"], lp["be2"])
    flat = enc.reshape(B, -1)
    return flat @ params["out_w"] + params["out_b"]


# ----------------------------------------------------------------------------
if __name__ == "__main__":
    # small shapes consistent with the module's forward
    B = 2           # batch
    d_input = 8     # sequence length
    d_channel = 4   # input channels
    d_model = 32
    d_output = 4
    q = 8
    v = 8
    h = 4
    N = 2           # number of encoder layers

    key = jax.random.PRNGKey(0)
    kx, kp = jax.random.split(key)
    x = jax.random.normal(kx, (B, d_input, d_channel), jnp.float32)
    params = init_transformer_params(
        kp, d_input=d_input, d_channel=d_channel, d_model=d_model,
        d_output=d_output, q=q, v=v, h=h, N=N)

    out = transformer_forward(x, params, d_input=d_input, d_model=d_model,
                              q=q, v=v, h=h, pe=False)
    jax.block_until_ready(out)
    assert out.shape == (B, d_output)

    ref = reference_forward(x, params, d_input=d_input, d_model=d_model,
                            q=q, v=v, h=h, pe=False)
    max_diff = float(jnp.max(jnp.abs(out - ref)))
    # bf16 MXU operands + approx softmax reciprocal vs. the pure-f32 reference
    assert max_diff < 5e-2, f"mismatch vs f32 reference: max abs diff {max_diff}"

    # TODO(synk): dropout is implemented as inference-mode identity (no RNG mask).
    print("KERNEL_OK")
</pallas_src>

<mosaic_0001>
module attributes {stable_mosaic.version = 11 : i64} {
  func.func @_fused_transformer_kernel(%arg0: memref<2x8x4xf32, #tpu.memory_space<vmem>>, %arg1: memref<16x32xf32, #tpu.memory_space<vmem>>, %arg2: memref<4x32xbf16, #tpu.memory_space<vmem>>, %arg3: memref<2x32x96xbf16, #tpu.memory_space<vmem>>, %arg4: memref<2x1x96xf32, #tpu.memory_space<vmem>>, %arg5: memref<2x4x8x32xbf16, #tpu.memory_space<vmem>>, %arg6: memref<2x6x1x32xf32, #tpu.memory_space<vmem>>, %arg7: memref<2x32x2048xbf16, #tpu.memory_space<vmem>>, %arg8: memref<2x1x2048xf32, #tpu.memory_space<vmem>>, %arg9: memref<2x32x2048xbf16, #tpu.memory_space<vmem>>, %arg10: memref<8x4x32xbf16, #tpu.memory_space<vmem>>, %arg11: memref<1x4xf32, #tpu.memory_space<vmem>>, %arg12: memref<2x4xf32, #tpu.memory_space<vmem>>) attributes {dimension_semantics = [], scalar_prefetch = 0 : i64, scratch_operands = 0 : i64, tpu.core_type = #tpu.core_type<tc>} {
    %c0 = arith.constant 0 : index
    %c0_0 = arith.constant 0 : index
    %c0_1 = arith.constant 0 : index
    %0 = vector.load %arg0[%c0, %c0_0, %c0_1] : memref<2x8x4xf32, #tpu.memory_space<vmem>>, vector<2x8x4xf32>
    %1 = vector.shape_cast %0 : vector<2x8x4xf32> to vector<16x4xf32>
    %2 = arith.truncf %1 : vector<16x4xf32> to vector<16x4xbf16>
    %c0_2 = arith.constant 0 : index
    %c0_3 = arith.constant 0 : index
    %3 = vector.load %arg2[%c0_2, %c0_3] : memref<4x32xbf16, #tpu.memory_space<vmem>>, vector<4x32xbf16>
    %cst = arith.constant dense<0.000000e+00> : vector<16x32xf32>
    %4 = tpu.matmul %2, %3, %cst {dimension_numbers = #tpu.dot_dimension_numbers<[1], [0], [0], [1], [0, 0, 1, 1], [], []>} : vector<16x4xbf16>, vector<4x32xbf16>, vector<16x32xf32> -> vector<16x32xf32>
    %c0_4 = arith.constant 0 : index
    %c0_5 = arith.constant 0 : index
    %5 = vector.load %arg1[%c0_4, %c0_5] : memref<16x32xf32, #tpu.memory_space<vmem>>, vector<16x32xf32>
    %6 = arith.addf %4, %5 : vector<16x32xf32>
    %7 = arith.truncf %6 : vector<16x32xf32> to vector<16x32xbf16>
    %c0_6 = arith.constant 0 : index
    %c0_7 = arith.constant 0 : index
    %c0_8 = arith.constant 0 : index
    %8 = vector.load %arg3[%c0_6, %c0_7, %c0_8] : memref<2x32x96xbf16, #tpu.memory_space<vmem>>, vector<1x32x96xbf16>
    %9 = vector.shape_cast %8 : vector<1x32x96xbf16> to vector<32x96xbf16>
    %cst_9 = arith.constant dense<0.000000e+00> : vector<16x96xf32>
    %10 = tpu.matmul %7, %9, %cst_9 {dimension_numbers = #tpu.dot_dimension_numbers<[1], [0], [0], [1], [0, 0, 1, 1], [], []>} : vector<16x32xbf16>, vector<32x96xbf16>, vector<16x96xf32> -> vector<16x96xf32>
    %c0_10 = arith.constant 0 : index
    %c0_11 = arith.constant 0 : index
    %c0_12 = arith.constant 0 : index
    %11 = vector.load %arg4[%c0_10, %c0_11, %c0_12] : memref<2x1x96xf32, #tpu.memory_space<vmem>>, vector<1x1x96xf32>
    %12 = vector.shape_cast %11 : vector<1x1x96xf32> to vector<1x96xf32>
    %13 = vector.broadcast %12 : vector<1x96xf32> to vector<16x96xf32>
    %14 = arith.addf %10, %13 : vector<16x96xf32>
    %15 = vector.extract_strided_slice %14 {offsets = [0, 0], sizes = [16, 8], strides = [1, 1]} : vector<16x96xf32> to vector<16x8xf32>
    %16 = vector.extract_strided_slice %14 {offsets = [0, 8], sizes = [16, 8], strides = [1, 1]} : vector<16x96xf32> to vector<16x8xf32>
    %17 = vector.extract_strided_slice %14 {offsets = [0, 16], sizes = [16, 8], strides = [1, 1]} : vector<16x96xf32> to vector<16x8xf32>
    %18 = vector.extract_strided_slice %14 {offsets = [0, 24], sizes = [16, 8], strides = [1, 1]} : vector<16x96xf32> to vector<16x8xf32>
    %19 = vector.shape_cast %15 : vector<16x8xf32> to vector<1x16x8xf32>
    %20 = vector.shape_cast %16 : vector<16x8xf32> to vector<1x16x8xf32>
    %21 = vector.shape_cast %17 : vector<16x8xf32> to vector<1x16x8xf32>
    %22 = vector.shape_cast %18 : vector<16x8xf32> to vector<1x16x8xf32>
    %23 = tpu.concatenate %19, %20, %21, %22 in 0 : vector<1x16x8xf32>, vector<1x16x8xf32>, vector<1x16x8xf32>, vector<1x16x8xf32> -> vector<4x16x8xf32>
    %24 = vector.extract_strided_slice %14 {offsets = [0, 32], sizes = [16, 8], strides = [1, 1]} : vector<16x96xf32> to vector<16x8xf32>
    %25 = vector.extract_strided_slice %14 {offsets = [0, 40], sizes = [16, 8], strides = [1, 1]} : vector<16x96xf32> to vector<16x8xf32>
    %26 = vector.extract_strided_slice %14 {offsets = [0, 48], sizes = [16, 8], strides = [1, 1]} : vector<16x96xf32> to vector<16x8xf32>
    %27 = vector.extract_strided_slice %14 {offsets = [0, 56], sizes = [16, 8], strides = [1, 1]} : vector<16x96xf32> to vector<16x8xf32>
    %28 = vector.shape_cast %24 : vector<16x8xf32> to vector<1x16x8xf32>
    %29 = vector.shape_cast %25 : vector<16x8xf32> to vector<1x16x8xf32>
    %30 = vector.shape_cast %26 : vector<16x8xf32> to vector<1x16x8xf32>
    %31 = vector.shape_cast %27 : vector<16x8xf32> to vector<1x16x8xf32>
    %32 = tpu.concatenate %28, %29, %30, %31 in 0 : vector<1x16x8xf32>, vector<1x16x8xf32>, vector<1x16x8xf32>, vector<1x16x8xf32> -> vector<4x16x8xf32>
    %33 = vector.extract_strided_slice %14 {offsets = [0, 64], sizes = [16, 8], strides = [1, 1]} : vector<16x96xf32> to vector<16x8xf32>
    %34 = vector.extract_strided_slice %14 {offsets = [0, 72], sizes = [16, 8], strides = [1, 1]} : vector<16x96xf32> to vector<16x8xf32>
    %35 = vector.extract_strided_slice %14 {offsets = [0, 80], sizes = [16, 8], strides = [1, 1]} : vector<16x96xf32> to vector<16x8xf32>
    %36 = vector.extract_strided_slice %14 {offsets = [0, 88], sizes = [16, 8], strides = [1, 1]} : vector<16x96xf32> to vector<16x8xf32>
    %37 = vector.shape_cast %33 : vector<16x8xf32> to vector<1x16x8xf32>
    %38 = vector.shape_cast %34 : vector<16x8xf32> to vector<1x16x8xf32>
    %39 = vector.shape_cast %35 : vector<16x8xf32> to vector<1x16x8xf32>
    %40 = vector.shape_cast %36 : vector<16x8xf32> to vector<1x16x8xf32>
    %41 = tpu.concatenate %37, %38, %39, %40 in 0 : vector<1x16x8xf32>, vector<1x16x8xf32>, vector<1x16x8xf32>, vector<1x16x8xf32> -> vector<4x16x8xf32>
    %42 = vector.shape_cast %23 : vector<4x16x8xf32> to vector<8x8x8xf32>
    %43 = arith.truncf %42 : vector<8x8x8xf32> to vector<8x8x8xbf16>
    %44 = vector.shape_cast %32 : vector<4x16x8xf32> to vector<8x8x8xf32>
    %45 = arith.truncf %44 : vector<8x8x8xf32> to vector<8x8x8xbf16>
    %46 = vector.shape_cast %41 : vector<4x16x8xf32> to vector<8x8x8xf32>
    %47 = arith.truncf %46 : vector<8x8x8xf32> to vector<8x8x8xbf16>
    "tpu.trace_start"() <{level = 10 : i32, message = "xtq,xsq->xts"}> : () -> ()
    %cst_13 = arith.constant dense<0.000000e+00> : vector<8x8x8xf32>
    %48 = tpu.matmul %43, %45, %cst_13 {dimension_numbers = #tpu.dot_dimension_numbers<[2], [2], [1], [1], [0, 0, 0, 1, 1, 1], [0], [0]>} : vector<8x8x8xbf16>, vector<8x8x8xbf16>, vector<8x8x8xf32> -> vector<8x8x8xf32>
    "tpu.trace_stop"() : () -> ()
    %cst_14 = arith.constant 0.353553385 : f32
    %49 = vector.broadcast %cst_14 : f32 to vector<8x8x8xf32>
    %50 = arith.mulf %48, %49 : vector<8x8x8xf32>
    %cst_15 = arith.constant dense<0xFF800000> : vector<8x8xf32>
    %51 = vector.multi_reduction <maximumf>, %50, %cst_15 [2] : vector<8x8x8xf32> to vector<8x8xf32>
    %52 = vector.shape_cast %51 : vector<8x8xf32> to vector<8x8x1xf32>
    %53 = vector.broadcast %52 : vector<8x8x1xf32> to vector<8x8x8xf32>
    %54 = arith.subf %50, %53 : vector<8x8x8xf32>
    %55 = math.exp %54 : vector<8x8x8xf32>
    %cst_16 = arith.constant dense<0.000000e+00> : vector<8x8xf32>
    %56 = vector.multi_reduction <add>, %55, %cst_16 [2] : vector<8x8x8xf32> to vector<8x8xf32>
    %57 = vector.shape_cast %56 : vector<8x8xf32> to vector<8x8x1xf32>
    %58 = tpu.reciprocal %57 {approx = true} : vector<8x8x1xf32> -> vector<8x8x1xf32>
    %59 = vector.broadcast %58 : vector<8x8x1xf32> to vector<8x8x8xf32>
    %60 = arith.mulf %55, %59 : vector<8x8x8xf32>
    %61 = arith.truncf %60 : vector<8x8x8xf32> to vector<8x8x8xbf16>
    "tpu.trace_start"() <{level = 10 : i32, message = "xts,xsv->xtv"}> : () -> ()
    %cst_17 = arith.constant dense<0.000000e+00> : vector<8x8x8xf32>
    %62 = tpu.matmul %61, %47, %cst_17 {dimension_numbers = #tpu.dot_dimension_numbers<[2], [1], [1], [2], [0, 0, 0, 1, 1, 2], [0], [0]>} : vector<8x8x8xbf16>, vector<8x8x8xbf16>, vector<8x8x8xf32> -> vector<8x8x8xf32>
    "tpu.trace_stop"() : () -> ()
    %63 = vector.shape_cast %62 : vector<8x8x8xf32> to vector<4x16x8xf32>
    %64 = arith.truncf %63 : vector<4x16x8xf32> to vector<4x16x8xbf16>
    %c0_18 = arith.constant 0 : index
    %c0_19 = arith.constant 0 : index
    %c0_20 = arith.constant 0 : index
    %c0_21 = arith.constant 0 : index
    %65 = vector.load %arg5[%c0_18, %c0_19, %c0_20, %c0_21] : memref<2x4x8x32xbf16, #tpu.memory_space<vmem>>, vector<1x4x8x32xbf16>
    %66 = vector.shape_cast %65 : vector<1x4x8x32xbf16> to vector<4x8x32xbf16>
    "tpu.trace_start"() <{level = 10 : i32, message = "hmv,hvd->hmd"}> : () -> ()
    %cst_22 = arith.constant dense<0.000000e+00> : vector<4x16x32xf32>
    %67 = tpu.matmul %64, %66, %cst_22 {dimension_numbers = #tpu.dot_dimension_numbers<[2], [1], [1], [2], [0, 0, 0, 1, 1, 2], [0], [0]>} : vector<4x16x8xbf16>, vector<4x8x32xbf16>, vector<4x16x32xf32> -> vector<4x16x32xf32>
    "tpu.trace_stop"() : () -> ()
    %cst_23 = arith.constant dense<0.000000e+00> : vector<16x32xf32>
    %68 = vector.multi_reduction <add>, %67, %cst_23 [0] : vector<4x16x32xf32> to vector<16x32xf32>
    %c0_24 = arith.constant 0 : index
    %c0_25 = arith.constant 0 : index
    %c0_26 = arith.constant 0 : index
    %c0_27 = arith.constant 0 : index
    %69 = vector.load %arg6[%c0_24, %c0_25, %c0_26, %c0_27] : memref<2x6x1x32xf32, #tpu.memory_space<vmem>>, vector<1x1x1x32xf32>
    %70 = vector.shape_cast %69 : vector<1x1x1x32xf32> to vector<1x32xf32>
    %71 = vector.broadcast %70 : vector<1x32xf32> to vector<16x32xf32>
    %72 = arith.addf %68, %71 : vector<16x32xf32>
    %73 = arith.addf %72, %6 : vector<16x32xf32>
    %c0_28 = arith.constant 0 : index
    %c2 = arith.constant 2 : index
    %c0_29 = arith.constant 0 : index
    %c0_30 = arith.constant 0 : index
    %74 = vector.load %arg6[%c0_28, %c2, %c0_29, %c0_30] : memref<2x6x1x32xf32, #tpu.memory_space<vmem>>, vector<1x1x1x32xf32>
    %75 = vector.shape_cast %74 : vector<1x1x1x32xf32> to vector<1x32xf32>
    %c0_31 = arith.constant 0 : index
    %c3 = arith.constant 3 : index
    %c0_32 = arith.constant 0 : index
    %c0_33 = arith.constant 0 : index
    %76 = vector.load %arg6[%c0_31, %c3, %c0_32, %c0_33] : memref<2x6x1x32xf32, #tpu.memory_space<vmem>>, vector<1x1x1x32xf32>
    %77 = vector.shape_cast %76 : vector<1x1x1x32xf32> to vector<1x32xf32>
    %cst_34 = arith.constant dense<0.000000e+00> : vector<16xf32>
    %78 = vector.multi_reduction <add>, %73, %cst_34 [1] : vector<16x32xf32> to vector<16xf32>
    %79 = vector.shape_cast %78 : vector<16xf32> to vector<16x1xf32>
    %cst_35 = arith.constant 3.200000e+01 : f32
    %80 = vector.broadcast %cst_35 : f32 to vector<16x1xf32>
    %81 = arith.divf %79, %80 : vector<16x1xf32>
    %82 = vector.broadcast %81 : vector<16x1xf32> to vector<16x32xf32>
    %83 = arith.subf %73, %82 : vector<16x32xf32>
    %84 = arith.mulf %83, %83 : vector<16x32xf32>
    %cst_36 = arith.constant dense<0.000000e+00> : vector<16xf32>
    %85 = vector.multi_reduction <add>, %84, %cst_36 [1] : vector<16x32xf32> to vector<16xf32>
    %86 = vector.shape_cast %85 : vector<16xf32> to vector<16x1xf32>
    %cst_37 = arith.constant 3.200000e+01 : f32
    %87 = vector.broadcast %cst_37 : f32 to vector<16x1xf32>
    %88 = arith.divf %86, %87 : vector<16x1xf32>
    %cst_38 = arith.constant 9.99999974E-6 : f32
    %89 = vector.broadcast %cst_38 : f32 to vector<16x1xf32>
    %90 = arith.addf %88, %89 : vector<16x1xf32>
    %91 = math.rsqrt %90 : vector<16x1xf32>
    %92 = vector.broadcast %91 : vector<16x1xf32> to vector<16x32xf32>
    %93 = arith.mulf %83, %92 : vector<16x32xf32>
    %94 = vector.broadcast %75 : vector<1x32xf32> to vector<16x32xf32>
    %95 = arith.mulf %93, %94 : vector<16x32xf32>
    %96 = vector.broadcast %77 : vector<1x32xf32> to vector<16x32xf32>
    %97 = arith.addf %95, %96 : vector<16x32xf32>
    %98 = arith.truncf %97 : vector<16x32xf32> to vector<16x32xbf16>
    %c0_39 = arith.constant 0 : index
    %c0_40 = arith.constant 0 : index
    %c0_41 = arith.constant 0 : index
    %99 = vector.load %arg7[%c0_39, %c0_40, %c0_41] : memref<2x32x2048xbf16, #tpu.memory_space<vmem>>, vector<1x32x2048xbf16>
    %100 = vector.shape_cast %99 : vector<1x32x2048xbf16> to vector<32x2048xbf16>
    %cst_42 = arith.constant dense<0.000000e+00> : vector<16x2048xf32>
    %101 = tpu.matmul %98, %100, %cst_42 {dimension_numbers = #tpu.dot_dimension_numbers<[1], [0], [0], [1], [0, 0, 1, 1], [], []>} : vector<16x32xbf16>, vector<32x2048xbf16>, vector<16x2048xf32> -> vector<16x2048xf32>
    %c0_43 = arith.constant 0 : index
    %c0_44 = arith.constant 0 : index
    %c0_45 = arith.constant 0 : index
    %102 = vector.load %arg8[%c0_43, %c0_44, %c0_45] : memref<2x1x2048xf32, #tpu.memory_space<vmem>>, vector<1x1x2048xf32>
    %103 = vector.shape_cast %102 : vector<1x1x2048xf32> to vector<1x2048xf32>
    %104 = vector.broadcast %103 : vector<1x2048xf32> to vector<16x2048xf32>
    %105 = arith.addf %101, %104 : vector<16x2048xf32>
    %cst_46 = arith.constant 0.000000e+00 : f32
    %106 = vector.broadcast %cst_46 : f32 to vector<16x2048xf32>
    %107 = arith.maximumf %105, %106 : vector<16x2048xf32>
    %108 = arith.truncf %107 : vector<16x2048xf32> to vector<16x2048xbf16>
    %c0_47 = arith.constant 0 : index
    %c0_48 = arith.constant 0 : index
    %c0_49 = arith.constant 0 : index
    %109 = vector.load %arg9[%c0_47, %c0_48, %c0_49] : memref<2x32x2048xbf16, #tpu.memory_space<vmem>>, vector<1x32x2048xbf16>
    %110 = vector.shape_cast %109 : vector<1x32x2048xbf16> to vector<32x2048xbf16>
    %cst_50 = arith.constant dense<0.000000e+00> : vector<16x32xf32>
    %111 = tpu.matmul %108, %110, %cst_50 {dimension_numbers = #tpu.dot_dimension_numbers<[1], [1], [0], [0], [0, 0, 1, 0], [], []>} : vector<16x2048xbf16>, vector<32x2048xbf16>, vector<16x32xf32> -> vector<16x32xf32>
    %c0_51 = arith.constant 0 : index
    %c1 = arith.constant 1 : index
    %c0_52 = arith.constant 0 : index
    %c0_53 = arith.constant 0 : index
    %112 = vector.load %arg6[%c0_51, %c1, %c0_52, %c0_53] : memref<2x6x1x32xf32, #tpu.memory_space<vmem>>, vector<1x1x1x32xf32>
    %113 = vector.shape_cast %112 : vector<1x1x1x32xf32> to vector<1x32xf32>
    %114 = vector.broadcast %113 : vector<1x32xf32> to vector<16x32xf32>
    %115 = arith.addf %111, %114 : vector<16x32xf32>
    %116 = arith.addf %115, %97 : vector<16x32xf32>
    %c0_54 = arith.constant 0 : index
    %c4 = arith.constant 4 : index
    %c0_55 = arith.constant 0 : index
    %c0_56 = arith.constant 0 : index
    %117 = vector.load %arg6[%c0_54, %c4, %c0_55, %c0_56] : memref<2x6x1x32xf32, #tpu.memory_space<vmem>>, vector<1x1x1x32xf32>
    %118 = vector.shape_cast %117 : vector<1x1x1x32xf32> to vector<1x32xf32>
    %c0_57 = arith.constant 0 : index
    %c5 = arith.constant 5 : index
    %c0_58 = arith.constant 0 : index
    %c0_59 = arith.constant 0 : index
    %119 = vector.load %arg6[%c0_57, %c5, %c0_58, %c0_59] : memref<2x6x1x32xf32, #tpu.memory_space<vmem>>, vector<1x1x1x32xf32>
    %120 = vector.shape_cast %119 : vector<1x1x1x32xf32> to vector<1x32xf32>
    %cst_60 = arith.constant dense<0.000000e+00> : vector<16xf32>
    %121 = vector.multi_reduction <add>, %116, %cst_60 [1] : vector<16x32xf32> to vector<16xf32>
    %122 = vector.shape_cast %121 : vector<16xf32> to vector<16x1xf32>
    %cst_61 = arith.constant 3.200000e+01 : f32
    %123 = vector.broadcast %cst_61 : f32 to vector<16x1xf32>
    %124 = arith.divf %122, %123 : vector<16x1xf32>
    %125 = vector.broadcast %124 : vector<16x1xf32> to vector<16x32xf32>
    %126 = arith.subf %116, %125 : vector<16x32xf32>
    %127 = arith.mulf %126, %126 : vector<16x32xf32>
    %cst_62 = arith.constant dense<0.000000e+00> : vector<16xf32>
    %128 = vector.multi_reduction <add>, %127, %cst_62 [1] : vector<16x32xf32> to vector<16xf32>
    %129 = vector.shape_cast %128 : vector<16xf32> to vector<16x1xf32>
    %cst_63 = arith.constant 3.200000e+01 : f32
    %130 = vector.broadcast %cst_63 : f32 to vector<16x1xf32>
    %131 = arith.divf %129, %130 : vector<16x1xf32>
    %cst_64 = arith.constant 9.99999974E-6 : f32
    %132 = vector.broadcast %cst_64 : f32 to vector<16x1xf32>
    %133 = arith.addf %131, %132 : vector<16x1xf32>
    %134 = math.rsqrt %133 : vector<16x1xf32>
    %135 = vector.broadcast %134 : vector<16x1xf32> to vector<16x32xf32>
    %136 = arith.mulf %126, %135 : vector<16x32xf32>
    %137 = vector.broadcast %118 : vector<1x32xf32> to vector<16x32xf32>
    %138 = arith.mulf %136, %137 : vector<16x32xf32>
    %139 = vector.broadcast %120 : vector<1x32xf32> to vector<16x32xf32>
    %140 = arith.addf %138, %139 : vector<16x32xf32>
    %141 = arith.truncf %140 : vector<16x32xf32> to vector<16x32xbf16>
    %c1_65 = arith.constant 1 : index
    %c0_66 = arith.constant 0 : index
    %c0_67 = arith.constant 0 : index
    %142 = vector.load %arg3[%c1_65, %c0_66, %c0_67] : memref<2x32x96xbf16, #tpu.memory_space<vmem>>, vector<1x32x96xbf16>
    %143 = vector.shape_cast %142 : vector<1x32x96xbf16> to vector<32x96xbf16>
    %cst_68 = arith.constant dense<0.000000e+00> : vector<16x96xf32>
    %144 = tpu.matmul %141, %143, %cst_68 {dimension_numbers = #tpu.dot_dimension_numbers<[1], [0], [0], [1], [0, 0, 1, 1], [], []>} : vector<16x32xbf16>, vector<32x96xbf16>, vector<16x96xf32> -> vector<16x96xf32>
    %c1_69 = arith.constant 1 : index
    %c0_70 = arith.constant 0 : index
    %c0_71 = arith.constant 0 : index
    %145 = vector.load %arg4[%c1_69, %c0_70, %c0_71] : memref<2x1x96xf32, #tpu.memory_space<vmem>>, vector<1x1x96xf32>
    %146 = vector.shape_cast %145 : vector<1x1x96xf32> to vector<1x96xf32>
    %147 = vector.broadcast %146 : vector<1x96xf32> to vector<16x96xf32>
    %148 = arith.addf %144, %147 : vector<16x96xf32>
    %149 = vector.extract_strided_slice %148 {offsets = [0, 0], sizes = [16, 8], strides = [1, 1]} : vector<16x96xf32> to vector<16x8xf32>
    %150 = vector.extract_strided_slice %148 {offsets = [0, 8], sizes = [16, 8], strides = [1, 1]} : vector<16x96xf32> to vector<16x8xf32>
    %151 = vector.extract_strided_slice %148 {offsets = [0, 16], sizes = [16, 8], strides = [1, 1]} : vector<16x96xf32> to vector<16x8xf32>
    %152 = vector.extract_strided_slice %148 {offsets = [0, 24], sizes = [16, 8], strides = [1, 1]} : vector<16x96xf32> to vector<16x8xf32>
    %153 = vector.shape_cast %149 : vector<16x8xf32> to vector<1x16x8xf32>
    %154 = vector.shape_cast %150 : vector<16x8xf32> to vector<1x16x8xf32>
    %155 = vector.shape_cast %151 : vector<16x8xf32> to vector<1x16x8xf32>
    %156 = vector.shape_cast %152 : vector<16x8xf32> to vector<1x16x8xf32>
    %157 = tpu.concatenate %153, %154, %155, %156 in 0 : vector<1x16x8xf32>, vector<1x16x8xf32>, vector<1x16x8xf32>, vector<1x16x8xf32> -> vector<4x16x8xf32>
    %158 = vector.extract_strided_slice %148 {offsets = [0, 32], sizes = [16, 8], strides = [1, 1]} : vector<16x96xf32> to vector<16x8xf32>
    %159 = vector.extract_strided_slice %148 {offsets = [0, 40], sizes = [16, 8], strides = [1, 1]} : vector<16x96xf32> to vector<16x8xf32>
    %160 = vector.extract_strided_slice %148 {offsets = [0, 48], sizes = [16, 8], strides = [1, 1]} : vector<16x96xf32> to vector<16x8xf32>
    %161 = vector.extract_strided_slice %148 {offsets = [0, 56], sizes = [16, 8], strides = [1, 1]} : vector<16x96xf32> to vector<16x8xf32>
    %162 = vector.shape_cast %158 : vector<16x8xf32> to vector<1x16x8xf32>
    %163 = vector.shape_cast %159 : vector<16x8xf32> to vector<1x16x8xf32>
    %164 = vector.shape_cast %160 : vector<16x8xf32> to vector<1x16x8xf32>
    %165 = vector.shape_cast %161 : vector<16x8xf32> to vector<1x16x8xf32>
    %166 = tpu.concatenate %162, %163, %164, %165 in 0 : vector<1x16x8xf32>, vector<1x16x8xf32>, vector<1x16x8xf32>, vector<1x16x8xf32> -> vector<4x16x8xf32>
    %167 = vector.extract_strided_slice %148 {offsets = [0, 64], sizes = [16, 8], strides = [1, 1]} : vector<16x96xf32> to vector<16x8xf32>
    %168 = vector.extract_strided_slice %148 {offsets = [0, 72], sizes = [16, 8], strides = [1, 1]} : vector<16x96xf32> to vector<16x8xf32>
    %169 = vector.extract_strided_slice %148 {offsets = [0, 80], sizes = [16, 8], strides = [1, 1]} : vector<16x96xf32> to vector<16x8xf32>
    %170 = vector.extract_strided_slice %148 {offsets = [0, 88], sizes = [16, 8], strides = [1, 1]} : vector<16x96xf32> to vector<16x8xf32>
    %171 = vector.shape_cast %167 : vector<16x8xf32> to vector<1x16x8xf32>
    %172 = vector.shape_cast %168 : vector<16x8xf32> to vector<1x16x8xf32>
    %173 = vector.shape_cast %169 : vector<16x8xf32> to vector<1x16x8xf32>
    %174 = vector.shape_cast %170 : vector<16x8xf32> to vector<1x16x8xf32>
    %175 = tpu.concatenate %171, %172, %173, %174 in 0 : vector<1x16x8xf32>, vector<1x16x8xf32>, vector<1x16x8xf32>, vector<1x16x8xf32> -> vector<4x16x8xf32>
    %176 = vector.shape_cast %157 : vector<4x16x8xf32> to vector<8x8x8xf32>
    %177 = arith.truncf %176 : vector<8x8x8xf32> to vector<8x8x8xbf16>
    %178 = vector.shape_cast %166 : vector<4x16x8xf32> to vector<8x8x8xf32>
    %179 = arith.truncf %178 : vector<8x8x8xf32> to vector<8x8x8xbf16>
    %180 = vector.shape_cast %175 : vector<4x16x8xf32> to vector<8x8x8xf32>
    %181 = arith.truncf %180 : vector<8x8x8xf32> to vector<8x8x8xbf16>
    "tpu.trace_start"() <{level = 10 : i32, message = "xtq,xsq->xts"}> : () -> ()
    %cst_72 = arith.constant dense<0.000000e+00> : vector<8x8x8xf32>
    %182 = tpu.matmul %177, %179, %cst_72 {dimension_numbers = #tpu.dot_dimension_numbers<[2], [2], [1], [1], [0, 0, 0, 1, 1, 1], [0], [0]>} : vector<8x8x8xbf16>, vector<8x8x8xbf16>, vector<8x8x8xf32> -> vector<8x8x8xf32>
    "tpu.trace_stop"() : () -> ()
    %cst_73 = arith.constant 0.353553385 : f32
    %183 = vector.broadcast %cst_73 : f32 to vector<8x8x8xf32>
    %184 = arith.mulf %182, %183 : vector<8x8x8xf32>
    %cst_74 = arith.constant dense<0xFF800000> : vector<8x8xf32>
    %185 = vector.multi_reduction <maximumf>, %184, %cst_74 [2] : vector<8x8x8xf32> to vector<8x8xf32>
    %186 = vector.shape_cast %185 : vector<8x8xf32> to vector<8x8x1xf32>
    %187 = vector.broadcast %186 : vector<8x8x1xf32> to vector<8x8x8xf32>
    %188 = arith.subf %184, %187 : vector<8x8x8xf32>
    %189 = math.exp %188 : vector<8x8x8xf32>
    %cst_75 = arith.constant dense<0.000000e+00> : vector<8x8xf32>
    %190 = vector.multi_reduction <add>, %189, %cst_75 [2] : vector<8x8x8xf32> to vector<8x8xf32>
    %191 = vector.shape_cast %190 : vector<8x8xf32> to vector<8x8x1xf32>
    %192 = tpu.reciprocal %191 {approx = true} : vector<8x8x1xf32> -> vector<8x8x1xf32>
    %193 = vector.broadcast %192 : vector<8x8x1xf32> to vector<8x8x8xf32>
    %194 = arith.mulf %189, %193 : vector<8x8x8xf32>
    %195 = arith.truncf %194 : vector<8x8x8xf32> to vector<8x8x8xbf16>
    "tpu.trace_start"() <{level = 10 : i32, message = "xts,xsv->xtv"}> : () -> ()
    %cst_76 = arith.constant dense<0.000000e+00> : vector<8x8x8xf32>
    %196 = tpu.matmul %195, %181, %cst_76 {dimension_numbers = #tpu.dot_dimension_numbers<[2], [1], [1], [2], [0, 0, 0, 1, 1, 2], [0], [0]>} : vector<8x8x8xbf16>, vector<8x8x8xbf16>, vector<8x8x8xf32> -> vector<8x8x8xf32>
    "tpu.trace_stop"() : () -> ()
    %197 = vector.shape_cast %196 : vector<8x8x8xf32> to vector<4x16x8xf32>
    %198 = arith.truncf %197 : vector<4x16x8xf32> to vector<4x16x8xbf16>
    %c1_77 = arith.constant 1 : index
    %c0_78 = arith.constant 0 : index
    %c0_79 = arith.constant 0 : index
    %c0_80 = arith.constant 0 : index
    %199 = vector.load %arg5[%c1_77, %c0_78, %c0_79, %c0_80] : memref<2x4x8x32xbf16, #tpu.memory_space<vmem>>, vector<1x4x8x32xbf16>
    %200 = vector.shape_cast %199 : vector<1x4x8x32xbf16> to vector<4x8x32xbf16>
    "tpu.trace_start"() <{level = 10 : i32, message = "hmv,hvd->hmd"}> : () -> ()
    %cst_81 = arith.constant dense<0.000000e+00> : vector<4x16x32xf32>
    %201 = tpu.matmul %198, %200, %cst_81 {dimension_numbers = #tpu.dot_dimension_numbers<[2], [1], [1], [2], [0, 0, 0, 1, 1, 2], [0], [0]>} : vector<4x16x8xbf16>, vector<4x8x32xbf16>, vector<4x16x32xf32> -> vector<4x16x32xf32>
    "tpu.trace_stop"() : () -> ()
    %cst_82 = arith.constant dense<0.000000e+00> : vector<16x32xf32>
    %202 = vector.multi_reduction <add>, %201, %cst_82 [0] : vector<4x16x32xf32> to vector<16x32xf32>
    %c1_83 = arith.constant 1 : index
    %c0_84 = arith.constant 0 : index
    %c0_85 = arith.constant 0 : index
    %c0_86 = arith.constant 0 : index
    %203 = vector.load %arg6[%c1_83, %c0_84, %c0_85, %c0_86] : memref<2x6x1x32xf32, #tpu.memory_space<vmem>>, vector<1x1x1x32xf32>
    %204 = vector.shape_cast %203 : vector<1x1x1x32xf32> to vector<1x32xf32>
    %205 = vector.broadcast %204 : vector<1x32xf32> to vector<16x32xf32>
    %206 = arith.addf %202, %205 : vector<16x32xf32>
    %207 = arith.addf %206, %140 : vector<16x32xf32>
    %c1_87 = arith.constant 1 : index
    %c2_88 = arith.constant 2 : index
    %c0_89 = arith.constant 0 : index
    %c0_90 = arith.constant 0 : index
    %208 = vector.load %arg6[%c1_87, %c2_88, %c0_89, %c0_90] : memref<2x6x1x32xf32, #tpu.memory_space<vmem>>, vector<1x1x1x32xf32>
    %209 = vector.shape_cast %208 : vector<1x1x1x32xf32> to vector<1x32xf32>
    %c1_91 = arith.constant 1 : index
    %c3_92 = arith.constant 3 : index
    %c0_93 = arith.constant 0 : index
    %c0_94 = arith.constant 0 : index
    %210 = vector.load %arg6[%c1_91, %c3_92, %c0_93, %c0_94] : memref<2x6x1x32xf32, #tpu.memory_space<vmem>>, vector<1x1x1x32xf32>
    %211 = vector.shape_cast %210 : vector<1x1x1x32xf32> to vector<1x32xf32>
    %cst_95 = arith.constant dense<0.000000e+00> : vector<16xf32>
    %212 = vector.multi_reduction <add>, %207, %cst_95 [1] : vector<16x32xf32> to vector<16xf32>
    %213 = vector.shape_cast %212 : vector<16xf32> to vector<16x1xf32>
    %cst_96 = arith.constant 3.200000e+01 : f32
    %214 = vector.broadcast %cst_96 : f32 to vector<16x1xf32>
    %215 = arith.divf %213, %214 : vector<16x1xf32>
    %216 = vector.broadcast %215 : vector<16x1xf32> to vector<16x32xf32>
    %217 = arith.subf %207, %216 : vector<16x32xf32>
    %218 = arith.mulf %217, %217 : vector<16x32xf32>
    %cst_97 = arith.constant dense<0.000000e+00> : vector<16xf32>
    %219 = vector.multi_reduction <add>, %218, %cst_97 [1] : vector<16x32xf32> to vector<16xf32>
    %220 = vector.shape_cast %219 : vector<16xf32> to vector<16x1xf32>
    %cst_98 = arith.constant 3.200000e+01 : f32
    %221 = vector.broadcast %cst_98 : f32 to vector<16x1xf32>
    %222 = arith.divf %220, %221 : vector<16x1xf32>
    %cst_99 = arith.constant 9.99999974E-6 : f32
    %223 = vector.broadcast %cst_99 : f32 to vector<16x1xf32>
    %224 = arith.addf %222, %223 : vector<16x1xf32>
    %225 = math.rsqrt %224 : vector<16x1xf32>
    %226 = vector.broadcast %225 : vector<16x1xf32> to vector<16x32xf32>
    %227 = arith.mulf %217, %226 : vector<16x32xf32>
    %228 = vector.broadcast %209 : vector<1x32xf32> to vector<16x32xf32>
    %229 = arith.mulf %227, %228 : vector<16x32xf32>
    %230 = vector.broadcast %211 : vector<1x32xf32> to vector<16x32xf32>
    %231 = arith.addf %229, %230 : vector<16x32xf32>
    %232 = arith.truncf %231 : vector<16x32xf32> to vector<16x32xbf16>
    %c1_100 = arith.constant 1 : index
    %c0_101 = arith.constant 0 : index
    %c0_102 = arith.constant 0 : index
    %233 = vector.load %arg7[%c1_100, %c0_101, %c0_102] : memref<2x32x2048xbf16, #tpu.memory_space<vmem>>, vector<1x32x2048xbf16>
    %234 = vector.shape_cast %233 : vector<1x32x2048xbf16> to vector<32x2048xbf16>
    %cst_103 = arith.constant dense<0.000000e+00> : vector<16x2048xf32>
    %235 = tpu.matmul %232, %234, %cst_103 {dimension_numbers = #tpu.dot_dimension_numbers<[1], [0], [0], [1], [0, 0, 1, 1], [], []>} : vector<16x32xbf16>, vector<32x2048xbf16>, vector<16x2048xf32> -> vector<16x2048xf32>
    %c1_104 = arith.constant 1 : index
    %c0_105 = arith.constant 0 : index
    %c0_106 = arith.constant 0 : index
    %236 = vector.load %arg8[%c1_104, %c0_105, %c0_106] : memref<2x1x2048xf32, #tpu.memory_space<vmem>>, vector<1x1x2048xf32>
    %237 = vector.shape_cast %236 : vector<1x1x2048xf32> to vector<1x2048xf32>
    %238 = vector.broadcast %237 : vector<1x2048xf32> to vector<16x2048xf32>
    %239 = arith.addf %235, %238 : vector<16x2048xf32>
    %cst_107 = arith.constant 0.000000e+00 : f32
    %240 = vector.broadcast %cst_107 : f32 to vector<16x2048xf32>
    %241 = arith.maximumf %239, %240 : vector<16x2048xf32>
    %242 = arith.truncf %241 : vector<16x2048xf32> to vector<16x2048xbf16>
    %c1_108 = arith.constant 1 : index
    %c0_109 = arith.constant 0 : index
    %c0_110 = arith.constant 0 : index
    %243 = vector.load %arg9[%c1_108, %c0_109, %c0_110] : memref<2x32x2048xbf16, #tpu.memory_space<vmem>>, vector<1x32x2048xbf16>
    %244 = vector.shape_cast %243 : vector<1x32x2048xbf16> to vector<32x2048xbf16>
    %cst_111 = arith.constant dense<0.000000e+00> : vector<16x32xf32>
    %245 = tpu.matmul %242, %244, %cst_111 {dimension_numbers = #tpu.dot_dimension_numbers<[1], [1], [0], [0], [0, 0, 1, 0], [], []>} : vector<16x2048xbf16>, vector<32x2048xbf16>, vector<16x32xf32> -> vector<16x32xf32>
    %c1_112 = arith.constant 1 : index
    %c1_113 = arith.constant 1 : index
    %c0_114 = arith.constant 0 : index
    %c0_115 = arith.constant 0 : index
    %246 = vector.load %arg6[%c1_112, %c1_113, %c0_114, %c0_115] : memref<2x6x1x32xf32, #tpu.memory_space<vmem>>, vector<1x1x1x32xf32>
    %247 = vector.shape_cast %246 : vector<1x1x1x32xf32> to vector<1x32xf32>
    %248 = vector.broadcast %247 : vector<1x32xf32> to vector<16x32xf32>
    %249 = arith.addf %245, %248 : vector<16x32xf32>
    %250 = arith.addf %249, %231 : vector<16x32xf32>
    %c1_116 = arith.constant 1 : index
    %c4_117 = arith.constant 4 : index
    %c0_118 = arith.constant 0 : index
    %c0_119 = arith.constant 0 : index
    %251 = vector.load %arg6[%c1_116, %c4_117, %c0_118, %c0_119] : memref<2x6x1x32xf32, #tpu.memory_space<vmem>>, vector<1x1x1x32xf32>
    %252 = vector.shape_cast %251 : vector<1x1x1x32xf32> to vector<1x32xf32>
    %c1_120 = arith.constant 1 : index
    %c5_121 = arith.constant 5 : index
    %c0_122 = arith.constant 0 : index
    %c0_123 = arith.constant 0 : index
    %253 = vector.load %arg6[%c1_120, %c5_121, %c0_122, %c0_123] : memref<2x6x1x32xf32, #tpu.memory_space<vmem>>, vector<1x1x1x32xf32>
    %254 = vector.shape_cast %253 : vector<1x1x1x32xf32> to vector<1x32xf32>
    %cst_124 = arith.constant dense<0.000000e+00> : vector<16xf32>
    %255 = vector.multi_reduction <add>, %250, %cst_124 [1] : vector<16x32xf32> to vector<16xf32>
    %256 = vector.shape_cast %255 : vector<16xf32> to vector<16x1xf32>
    %cst_125 = arith.constant 3.200000e+01 : f32
    %257 = vector.broadcast %cst_125 : f32 to vector<16x1xf32>
    %258 = arith.divf %256, %257 : vector<16x1xf32>
    %259 = vector.broadcast %258 : vector<16x1xf32> to vector<16x32xf32>
    %260 = arith.subf %250, %259 : vector<16x32xf32>
    %261 = arith.mulf %260, %260 : vector<16x32xf32>
    %cst_126 = arith.constant dense<0.000000e+00> : vector<16xf32>
    %262 = vector.multi_reduction <add>, %261, %cst_126 [1] : vector<16x32xf32> to vector<16xf32>
    %263 = vector.shape_cast %262 : vector<16xf32> to vector<16x1xf32>
    %cst_127 = arith.constant 3.200000e+01 : f32
    %264 = vector.broadcast %cst_127 : f32 to vector<16x1xf32>
    %265 = arith.divf %263, %264 : vector<16x1xf32>
    %cst_128 = arith.constant 9.99999974E-6 : f32
    %266 = vector.broadcast %cst_128 : f32 to vector<16x1xf32>
    %267 = arith.addf %265, %266 : vector<16x1xf32>
    %268 = math.rsqrt %267 : vector<16x1xf32>
    %269 = vector.broadcast %268 : vector<16x1xf32> to vector<16x32xf32>
    %270 = arith.mulf %260, %269 : vector<16x32xf32>
    %271 = vector.broadcast %252 : vector<1x32xf32> to vector<16x32xf32>
    %272 = arith.mulf %270, %271 : vector<16x32xf32>
    %273 = vector.broadcast %254 : vector<1x32xf32> to vector<16x32xf32>
    %274 = arith.addf %272, %273 : vector<16x32xf32>
    %275 = vector.shape_cast %274 : vector<16x32xf32> to vector<2x8x32xf32>
    %276 = vector.extract_strided_slice %275 {offsets = [0, 0, 0], sizes = [2, 1, 32], strides = [1, 1, 1]} : vector<2x8x32xf32> to vector<2x1x32xf32>
    %277 = vector.shape_cast %276 : vector<2x1x32xf32> to vector<2x32xf32>
    %278 = vector.extract_strided_slice %275 {offsets = [0, 1, 0], sizes = [2, 1, 32], strides = [1, 1, 1]} : vector<2x8x32xf32> to vector<2x1x32xf32>
    %279 = vector.shape_cast %278 : vector<2x1x32xf32> to vector<2x32xf32>
    %280 = vector.extract_strided_slice %275 {offsets = [0, 2, 0], sizes = [2, 1, 32], strides = [1, 1, 1]} : vector<2x8x32xf32> to vector<2x1x32xf32>
    %281 = vector.shape_cast %280 : vector<2x1x32xf32> to vector<2x32xf32>
    %282 = vector.extract_strided_slice %275 {offsets = [0, 3, 0], sizes = [2, 1, 32], strides = [1, 1, 1]} : vector<2x8x32xf32> to vector<2x1x32xf32>
    %283 = vector.shape_cast %282 : vector<2x1x32xf32> to vector<2x32xf32>
    %284 = vector.extract_strided_slice %275 {offsets = [0, 4, 0], sizes = [2, 1, 32], strides = [1, 1, 1]} : vector<2x8x32xf32> to vector<2x1x32xf32>
    %285 = vector.shape_cast %284 : vector<2x1x32xf32> to vector<2x32xf32>
    %286 = vector.extract_strided_slice %275 {offsets = [0, 5, 0], sizes = [2, 1, 32], strides = [1, 1, 1]} : vector<2x8x32xf32> to vector<2x1x32xf32>
    %287 = vector.shape_cast %286 : vector<2x1x32xf32> to vector<2x32xf32>
    %288 = vector.extract_strided_slice %275 {offsets = [0, 6, 0], sizes = [2, 1, 32], strides = [1, 1, 1]} : vector<2x8x32xf32> to vector<2x1x32xf32>
    %289 = vector.shape_cast %288 : vector<2x1x32xf32> to vector<2x32xf32>
    %290 = vector.extract_strided_slice %275 {offsets = [0, 7, 0], sizes = [2, 1, 32], strides = [1, 1, 1]} : vector<2x8x32xf32> to vector<2x1x32xf32>
    %291 = vector.shape_cast %290 : vector<2x1x32xf32> to vector<2x32xf32>
    %292 = vector.shape_cast %277 : vector<2x32xf32> to vector<1x2x32xf32>
    %293 = vector.shape_cast %279 : vector<2x32xf32> to vector<1x2x32xf32>
    %294 = vector.shape_cast %281 : vector<2x32xf32> to vector<1x2x32xf32>
    %295 = vector.shape_cast %283 : vector<2x32xf32> to vector<1x2x32xf32>
    %296 = vector.shape_cast %285 : vector<2x32xf32> to vector<1x2x32xf32>
    %297 = vector.shape_cast %287 : vector<2x32xf32> to vector<1x2x32xf32>
    %298 = vector.shape_cast %289 : vector<2x32xf32> to vector<1x2x32xf32>
    %299 = vector.shape_cast %291 : vector<2x32xf32> to vector<1x2x32xf32>
    %300 = tpu.concatenate %292, %293, %294, %295, %296, %297, %298, %299 in 0 : vector<1x2x32xf32>, vector<1x2x32xf32>, vector<1x2x32xf32>, vector<1x2x32xf32>, vector<1x2x32xf32>, vector<1x2x32xf32>, vector<1x2x32xf32>, vector<1x2x32xf32> -> vector<8x2x32xf32>
    %301 = arith.truncf %300 : vector<8x2x32xf32> to vector<8x2x32xbf16>
    %c0_129 = arith.constant 0 : index
    %c0_130 = arith.constant 0 : index
    %c0_131 = arith.constant 0 : index
    %302 = vector.load %arg10[%c0_129, %c0_130, %c0_131] : memref<8x4x32xbf16, #tpu.memory_space<vmem>>, vector<8x4x32xbf16>
    "tpu.trace_start"() <{level = 10 : i32, message = "tbd,tod->tbo"}> : () -> ()
    %cst_132 = arith.constant dense<0.000000e+00> : vector<8x2x4xf32>
    %303 = tpu.matmul %301, %302, %cst_132 {dimension_numbers = #tpu.dot_dimension_numbers<[2], [2], [1], [1], [0, 0, 0, 1, 1, 1], [0], [0]>} : vector<8x2x32xbf16>, vector<8x4x32xbf16>, vector<8x2x4xf32> -> vector<8x2x4xf32>
    "tpu.trace_stop"() : () -> ()
    %cst_133 = arith.constant dense<0.000000e+00> : vector<2x4xf32>
    %304 = vector.multi_reduction <add>, %303, %cst_133 [0] : vector<8x2x4xf32> to vector<2x4xf32>
    %c0_134 = arith.constant 0 : index
    %c0_135 = arith.constant 0 : index
    %305 = vector.load %arg11[%c0_134, %c0_135] : memref<1x4xf32, #tpu.memory_space<vmem>>, vector<1x4xf32>
    %306 = vector.broadcast %305 : vector<1x4xf32> to vector<2x4xf32>
    %307 = arith.addf %304, %306 : vector<2x4xf32>
    %c0_136 = arith.constant 0 : index
    %c0_137 = arith.constant 0 : index
    %308 = vector.load %arg12[%c0_136, %c0_137] : memref<2x4xf32, #tpu.memory_space<vmem>>, vector<2x4xf32>
    tpu.vector_store %arg12[%c0_136, %c0_137], %307 {strides = array<i32>} : memref<2x4xf32, #tpu.memory_space<vmem>>, vector<2x4xf32>,
    return
  }
}

</mosaic_0001>

<llo_original>
// kernel: tpu_custom_call.1
$region0: #{tpu_custom_call.1}
  #allocation0 [shape = 'u32[]', space=smem, size = 0x4, offset = 0x4, fixed_abs, tag = 'smem constant byte address 0x4 - core index']
  #allocation1 [shape = 'u32[144,128]{1,0:T(1,128)}', space=vmem, size = 0x12000, scoped, tag = 'internal scratch']
  %s0 = inlined_call_operand.vmem [shape: f32[2,8,4], index: 0, kind: input, shape index: {}]
  %s1 = inlined_call_operand.hbm [shape: f32[16,32], index: 1, kind: input, shape index: {}]
  %s2 = inlined_call_operand.hbm [shape: bf16[4,32], index: 2, kind: input, shape index: {}]
  %s3 = inlined_call_operand.hbm [shape: bf16[2,32,96], index: 3, kind: input, shape index: {}]
  %s4 = inlined_call_operand.hbm [shape: f32[2,1,96], index: 4, kind: input, shape index: {}]
  %s5 = inlined_call_operand.vmem [shape: bf16[2,4,8,32], index: 5, kind: input, shape index: {}]
  %s6 = inlined_call_operand.hbm [shape: f32[2,6,1,32], index: 6, kind: input, shape index: {}]
  %s7 = inlined_call_operand.hbm [shape: bf16[2,32,2048], index: 7, kind: input, shape index: {}]
  %s8 = inlined_call_operand.hbm [shape: f32[2,1,2048], index: 8, kind: input, shape index: {}]
  %s9 = inlined_call_operand.hbm [shape: bf16[2,32,2048], index: 9, kind: input, shape index: {}]
  %s10 = inlined_call_operand.hbm [shape: bf16[8,4,32], index: 10, kind: input, shape index: {}]
  %s11 = inlined_call_operand.vmem [shape: f32[1,4], index: 11, kind: input, shape index: {}]
  %s12 = inlined_call_operand.hbm [shape: f32[2,4], index: 12, kind: output, shape index: {}]
  %s13 = sld [smem:[#allocation0]]
  $region94: #{tpu_custom_call.1} parent=0
    _
  %s15 = ssub.s32 1, %s13
  %s16 = scalar_select 0, %s15, %s13
  $region1: #{tpu_custom_call.1} parent=0
    #allocation2 [shape = 'u8[8192]{0}', space=vmem, size = 0x2000, scoped, tag = 'input window, operand 1, single buffered']
    #allocation3 [shape = 's32[1]{0}', space=sflag, size = 0x4, scoped, tag = 'scoped memory for tpu_custom_call.1']
    #allocation4 [shape = 's32[1]{0}', space=sflag, size = 0x4, scoped, tag = 'scoped memory for tpu_custom_call.1']
    #allocation5 [shape = 'u8[1024]{0}', space=vmem, size = 0x400, scoped, tag = 'input window, operand 2, single buffered']
    #allocation6 [shape = 's32[1]{0}', space=sflag, size = 0x4, scoped, tag = 'scoped memory for tpu_custom_call.1']
    #allocation7 [shape = 'u8[16384]{0}', space=vmem, size = 0x4000, scoped, tag = 'input window, operand 3, single buffered']
    #allocation8 [shape = 'u8[1024]{0}', space=vmem, size = 0x400, scoped, tag = 'input window, operand 4, single buffered']
    #allocation9 [shape = 's32[1]{0}', space=sflag, size = 0x4, scoped, tag = 'scoped memory for tpu_custom_call.1']
    #allocation10 [shape = 'u8[6144]{0}', space=vmem, size = 0x1800, scoped, tag = 'input window, operand 6, single buffered']
    #allocation11 [shape = 'u8[262144]{0}', space=vmem, size = 0x40000, scoped, tag = 'input window, operand 7, single buffered']
    #allocation12 [shape = 's32[1]{0}', space=sflag, size = 0x4, scoped, tag = 'scoped memory for tpu_custom_call.1']
    #allocation13 [shape = 'u8[16384]{0}', space=vmem, size = 0x4000, scoped, tag = 'input window, operand 8, single buffered']
    #allocation14 [shape = 'u8[262144]{0}', space=vmem, size = 0x40000, scoped, tag = 'input window, operand 9, single buffered']
    #allocation15 [shape = 's32[1]{0}', space=sflag, size = 0x4, scoped, tag = 'scoped memory for tpu_custom_call.1']
    #allocation16 [shape = 'u8[8192]{0}', space=vmem, size = 0x2000, scoped, tag = 'input window, operand 10, single buffered']
    #allocation17 [shape = 'u8[1024]{0}', space=vmem, size = 0x400, scoped, tag = 'output window, operand 0, single buffered']
    %17 = vsyncpa [#allocation3], 0
    %18 = vsyncpa [#allocation6], 0
    %19 = vsyncpa [#allocation9], 0
    %20 = vsyncpa [#allocation12], 0
    %21 = vsyncpa [#allocation15], 0
    %22 = vsyncpa [#allocation4], 0
    // Predicated region
    $region2: #{tpu_custom_call.1} parent=1 // pred_check
      _
    $region3: #{tpu_custom_call.1} parent=1 // pred_check_branch
      %24 = sbr.rel (0) target = $region5
    $region4: #{tpu_custom_call.1} parent=1 // pred_region
      _
    $region5: #{tpu_custom_call.1} parent=1 // pred_fallthru
      _
    // Predicated region
    $region6: #{tpu_custom_call.1} parent=1 // pred_check
      _
    $region7: #{tpu_custom_call.1} parent=1 // pred_check_branch
      %26 = sbr.rel (0) target = $region9
    $region8: #{tpu_custom_call.1} parent=1 // pred_region
      %s28 = ssub.s32 256, 256
      %29 = vsyncadd [#allocation3], %s28
      %s30 = sshll.u32 [#allocation2], 4
      %s31 = int_to_ptr.vmem [resolvable:$true] %s30
      %36 = dma.hbm_to_vmem [thread:$0]  %s1, 256, %s31, [#allocation3], 128, 128, 8
    $region9: #{tpu_custom_call.1} parent=1 // pred_fallthru
      _
    // Predicated region
    $region10: #{tpu_custom_call.1} parent=1 // pred_check
      _
    $region11: #{tpu_custom_call.1} parent=1 // pred_check_branch
      %38 = sbr.rel (0) target = $region13
    $region12: #{tpu_custom_call.1} parent=1 // pred_region
      %s40 = ssub.s32 32, 32
      %41 = vsyncadd [#allocation6], %s40
      %s43 = sshll.u32 [#allocation5], 4
      %s44 = int_to_ptr.vmem [resolvable:$true] %s43
      %46 = dma.hbm_to_vmem [thread:$0]  %s2, 32, %s44, [#allocation6]
    $region13: #{tpu_custom_call.1} parent=1 // pred_fallthru
      _
    // Predicated region
    $region14: #{tpu_custom_call.1} parent=1 // pred_check
      _
    $region15: #{tpu_custom_call.1} parent=1 // pred_check_branch
      %48 = sbr.rel (0) target = $region17
    $region16: #{tpu_custom_call.1} parent=1 // pred_region
      %s50 = ssub.s32 512, 512
      %51 = vsyncadd [#allocation6], %s50
      %s52 = sshll.u32 [#allocation7], 4
      %s53 = int_to_ptr.vmem [resolvable:$true] %s52
      %58 = dma.hbm_to_vmem [thread:$0]  %s3, 512, %s53, [#allocation6], 64, 64, 4
    $region17: #{tpu_custom_call.1} parent=1 // pred_fallthru
      _
    // Predicated region
    $region18: #{tpu_custom_call.1} parent=1 // pred_check
      _
    $region19: #{tpu_custom_call.1} parent=1 // pred_check_branch
      %60 = sbr.rel (0) target = $region21
    $region20: #{tpu_custom_call.1} parent=1 // pred_region
      %s62 = ssub.s32 32, 32
      %63 = vsyncadd [#allocation9], %s62
      %s64 = sshll.u32 [#allocation8], 4
      %s65 = int_to_ptr.vmem [resolvable:$true] %s64
      %70 = dma.hbm_to_vmem [thread:$0]  %s4, 32, %s65, [#allocation9], 16, 16, 1
    $region21: #{tpu_custom_call.1} parent=1 // pred_fallthru
      _
    // Predicated region
    $region22: #{tpu_custom_call.1} parent=1 // pred_check
      _
    $region23: #{tpu_custom_call.1} parent=1 // pred_check_branch
      %72 = sbr.rel (0) target = $region25
    $region24: #{tpu_custom_call.1} parent=1 // pred_region
      _
    $region25: #{tpu_custom_call.1} parent=1 // pred_fallthru
      _
    // Predicated region
    $region26: #{tpu_custom_call.1} parent=1 // pred_check
      _
    $region27: #{tpu_custom_call.1} parent=1 // pred_check_branch
      %74 = sbr.rel (0) target = $region29
    $region28: #{tpu_custom_call.1} parent=1 // pred_region
      %s76 = ssub.s32 192, 192
      %77 = vsyncadd [#allocation9], %s76
      %s78 = sshll.u32 [#allocation10], 4
      %s79 = int_to_ptr.vmem [resolvable:$true] %s78
      %84 = dma.hbm_to_vmem [thread:$0]  %s6, 192, %s79, [#allocation9], 16, 16, 1
    $region29: #{tpu_custom_call.1} parent=1 // pred_fallthru
      _
    // Predicated region
    $region30: #{tpu_custom_call.1} parent=1 // pred_check
      _
    $region31: #{tpu_custom_call.1} parent=1 // pred_check_branch
      %86 = sbr.rel (0) target = $region33
    $region32: #{tpu_custom_call.1} parent=1 // pred_region
      %s88 = ssub.s32 8192, 8192
      %89 = vsyncadd [#allocation12], %s88
      %s90 = sshll.u32 [#allocation11], 4
      %s91 = int_to_ptr.vmem [resolvable:$true] %s90
      %96 = dma.hbm_to_vmem [thread:$0]  %s7, 8192, %s91, [#allocation12], 1024, 1024, 64
    $region33: #{tpu_custom_call.1} parent=1 // pred_fallthru
      _
    // Predicated region
    $region34: #{tpu_custom_call.1} parent=1 // pred_check
      _
    $region35: #{tpu_custom_call.1} parent=1 // pred_check_branch
      %98 = sbr.rel (0) target = $region37
    $region36: #{tpu_custom_call.1} parent=1 // pred_region
      %s100 = ssub.s32 512, 512
      %101 = vsyncadd [#allocation12], %s100
      %s102 = sshll.u32 [#allocation13], 4
      %s103 = int_to_ptr.vmem [resolvable:$true] %s102
      %108 = dma.hbm_to_vmem [thread:$0]  %s8, 512, %s103, [#allocation12], 256, 256, 16
    $region37: #{tpu_custom_call.1} parent=1 // pred_fallthru
      _
    // Predicated region
    $region38: #{tpu_custom_call.1} parent=1 // pred_check
      _
    $region39: #{tpu_custom_call.1} parent=1 // pred_check_branch
      %110 = sbr.rel (0) target = $region41
    $region40: #{tpu_custom_call.1} parent=1 // pred_region
      %s112 = ssub.s32 8192, 8192
      %113 = vsyncadd [#allocation15], %s112
      %s114 = sshll.u32 [#allocation14], 4
      %s115 = int_to_ptr.vmem [resolvable:$true] %s114
      %120 = dma.hbm_to_vmem [thread:$0]  %s9, 8192, %s115, [#allocation15], 1024, 1024, 64
    $region41: #{tpu_custom_call.1} parent=1 // pred_fallthru
      _
    // Predicated region
    $region42: #{tpu_custom_call.1} parent=1 // pred_check
      _
    $region43: #{tpu_custom_call.1} parent=1 // pred_check_branch
      %122 = sbr.rel (0) target = $region45
    $region44: #{tpu_custom_call.1} parent=1 // pred_region
      %s124 = ssub.s32 256, 256
      %125 = vsyncadd [#allocation15], %s124
      %s126 = sshll.u32 [#allocation16], 4
      %s127 = int_to_ptr.vmem [resolvable:$true] %s126
      %132 = dma.hbm_to_vmem [thread:$0]  %s10, 256, %s127, [#allocation15], 32, 32, 2
    $region45: #{tpu_custom_call.1} parent=1 // pred_fallthru
      _
    // Predicated region
    $region46: #{tpu_custom_call.1} parent=1 // pred_check
      _
    $region47: #{tpu_custom_call.1} parent=1 // pred_check_branch
      %134 = sbr.rel (0) target = $region49
    $region48: #{tpu_custom_call.1} parent=1 // pred_region
      _
    $region49: #{tpu_custom_call.1} parent=1 // pred_fallthru
      _
    // Predicated region
    $region50: #{tpu_custom_call.1} parent=1 // pred_check
      _
    $region51: #{tpu_custom_call.1} parent=1 // pred_check_branch
      %136 = sbr.rel (0) target = $region53
    $region52: #{tpu_custom_call.1} parent=1 // pred_region
      %137 = dma.done [#allocation3], 256
    $region53: #{tpu_custom_call.1} parent=1 // pred_fallthru
      _
    // Predicated region
    $region54: #{tpu_custom_call.1} parent=1 // pred_check
      _
    $region55: #{tpu_custom_call.1} parent=1 // pred_check_branch
      %139 = sbr.rel (0) target = $region57
    $region56: #{tpu_custom_call.1} parent=1 // pred_region
      %140 = dma.done [#allocation6], 32
    $region57: #{tpu_custom_call.1} parent=1 // pred_fallthru
      _
    // Predicated region
    $region58: #{tpu_custom_call.1} parent=1 // pred_check
      _
    $region59: #{tpu_custom_call.1} parent=1 // pred_check_branch
      %142 = sbr.rel (0) target = $region61
    $region60: #{tpu_custom_call.1} parent=1 // pred_region
      %143 = dma.done [#allocation6], 512
    $region61: #{tpu_custom_call.1} parent=1 // pred_fallthru
      _
    // Predicated region
    $region62: #{tpu_custom_call.1} parent=1 // pred_check
      _
    $region63: #{tpu_custom_call.1} parent=1 // pred_check_branch
      %145 = sbr.rel (0) target = $region65
    $region64: #{tpu_custom_call.1} parent=1 // pred_region
      %146 = dma.done [#allocation9], 32
    $region65: #{tpu_custom_call.1} parent=1 // pred_fallthru
      _
    // Predicated region
    $region66: #{tpu_custom_call.1} parent=1 // pred_check
      _
    $region67: #{tpu_custom_call.1} parent=1 // pred_check_branch
      %148 = sbr.rel (0) target = $region69
    $region68: #{tpu_custom_call.1} parent=1 // pred_region
      %149 = dma.done [#allocation9], 192
    $region69: #{tpu_custom_call.1} parent=1 // pred_fallthru
      _
    // Predicated region
    $region70: #{tpu_custom_call.1} parent=1 // pred_check
      _
    $region71: #{tpu_custom_call.1} parent=1 // pred_check_branch
      %151 = sbr.rel (0) target = $region73
    $region72: #{tpu_custom_call.1} parent=1 // pred_region
      %152 = dma.done [#allocation12], 8192
    $region73: #{tpu_custom_call.1} parent=1 // pred_fallthru
      _
    // Predicated region
    $region74: #{tpu_custom_call.1} parent=1 // pred_check
      _
    $region75: #{tpu_custom_call.1} parent=1 // pred_check_branch
      %154 = sbr.rel (0) target = $region77
    $region76: #{tpu_custom_call.1} parent=1 // pred_region
      %155 = dma.done [#allocation12], 512
    $region77: #{tpu_custom_call.1} parent=1 // pred_fallthru
      _
    // Predicated region
    $region78: #{tpu_custom_call.1} parent=1 // pred_check
      _
    $region79: #{tpu_custom_call.1} parent=1 // pred_check_branch
      %157 = sbr.rel (0) target = $region81
    $region80: #{tpu_custom_call.1} parent=1 // pred_region
      %158 = dma.done [#allocation15], 8192
    $region81: #{tpu_custom_call.1} parent=1 // pred_fallthru
      _
    // Predicated region
    $region82: #{tpu_custom_call.1} parent=1 // pred_check
      _
    $region83: #{tpu_custom_call.1} parent=1 // pred_check_branch
      %160 = sbr.rel (0) target = $region85
    $region84: #{tpu_custom_call.1} parent=1 // pred_region
      %161 = dma.done [#allocation15], 256
    $region85: #{tpu_custom_call.1} parent=1 // pred_fallthru
      _
    %v163 = vld [vmem:[%s0] sm:$0xff]
    %v164 = vld [vmem:[%s0 + $0x8] sm:$0xff]
    %v165 = vpack.c.bf16 %v164, %v163
    %v166 = vld [vmem:[#allocation5] sm:$0x3]
    %v167 = vld [vmem:[#allocation2] sm:$0xff]
    %v168 = vld [vmem:[#allocation2 + $0x8] sm:$0xff]
    %vm169 = vcmask 31744
    %v171 = vsel %vm169, %v165, 0
    %vm173 = vcmask 1041408
    %v175 = vsel %vm173, %v166, 0
    %177 = vmatprep.subr.bf16.mxu0 0
    %178 = vmatpush1.bf16.msra.mxu0 0
    %179 = vmatprep.subr.bf16.mxu0 0
    %180 = vmatpush1.bf16.msra.mxu0 0
    %181 = vmatprep.subr.bf16.mxu0 0
    %182 = vmatpush1.bf16.msra.mxu0 0
    %183 = vmatprep.subr.bf16.mxu0 0
    %184 = vmatpush1.bf16.msra.mxu0 0
    %185 = vmatprep.subr.bf16.mxu0 0
    %186 = vmatpush1.bf16.msra.mxu0 0
    %187 = vmatprep.subr.bf16.mxu0 0
    %188 = vmatpush1.bf16.msra.mxu0 0
    %189 = vmatprep.subr.bf16.mxu0 0
    %190 = vmatpush1.bf16.msra.mxu0 0
    %191 = vmatprep.subr.bf16.mxu0 0
    %192 = vmatpush1.bf16.msra.mxu0 %v175
    %193 = vmatprep.subr.bf16.mxu0 0
    %194 = vmatpush2.bf16.msra.mxu0 0
    %195 = vmatprep.subr.bf16.mxu0 0
    %196 = vmatpush2.bf16.msra.mxu0 0
    %197 = vmatprep.subr.bf16.mxu0 0
    %198 = vmatpush2.bf16.msra.mxu0 0
    %199 = vmatprep.subr.bf16.mxu0 0
    %200 = vmatpush2.bf16.msra.mxu0 0
    %201 = vmatprep.subr.bf16.mxu0 0
    %202 = vmatpush2.bf16.msra.mxu0 0
    %203 = vmatprep.subr.bf16.mxu0 0
    %204 = vmatpush2.bf16.msra.mxu0 0
    %205 = vmatprep.subr.bf16.mxu0 0
    %206 = vmatpush2.bf16.msra.mxu0 0
    %207 = vmatprep.subr.bf16.mxu0 0
    %208 = vmatpush2.bf16.msra.mxu0 0
    %209 = vmatprep.mubr.bf16.mxu0 0
    %210 = vmatmul.mubr.bf16.gmra.mxu0 %v171
    %v211 = vpop.f32.mrf.mxu0
    %v212 = vadd.f32 %v167, %v211
    %v213 = vpop.f32.mrf.mxu0
    %v214 = vpop.f32.mrf.mxu0
    %v215 = vadd.f32 %v168, %v214
    %v216 = vpop.f32.mrf.mxu0
    %217 = vdwg.mxu0
    %v218 = vpack.c.bf16 %v215, %v212
    %v219 = vld [vmem:[#allocation7] sm:$0xf]
    %v220 = vld [vmem:[#allocation7 + $0x4] sm:$0xf]
    %v221 = vld [vmem:[#allocation7 + $0x8] sm:$0xf]
    %v222 = vld [vmem:[#allocation7 + $0xc] sm:$0xf]
    %v223 = vld [vmem:[#allocation8] sm:$0x1]
    %v225 = vlaneseq
    %v226 = vshrl.u32 %v225, 7
    %v227 = vsub.s32 0, %v226
    %v228 = vrot.slane %v223, %v227
    %v234 = vunpack.c.l.b16 %v219
    %v235 = vunpack.c.l.b16 %v220
    %v236 = vunpack.c.l.b16 %v221
    %v237 = vunpack.c.l.b16 %v222
    %v238 = vpack.c.b16 %v235, %v234
    %v239 = vpack.c.b16 %v237, %v236
    %vm242 = vcmask 261120
    %v244 = vsel %vm242, %v218, 0
    %246 = vmatprep.subr.bf16.mxu0 0
    %247 = vmatpush1.bf16.msra.mxu0 0
    %248 = vmatprep.subr.bf16.mxu0 0
    %249 = vmatpush1.bf16.msra.mxu0 0
    %250 = vmatprep.subr.bf16.mxu0 0
    %251 = vmatpush1.bf16.msra.mxu0 0
    %252 = vmatprep.subr.bf16.mxu0 0
    %253 = vmatpush1.bf16.msra.mxu0 0
    %254 = vmatprep.subr.bf16.mxu0 0
    %255 = vmatpush1.bf16.msra.mxu0 0
    %256 = vmatprep.subr.bf16.mxu0 0
    %257 = vmatpush1.bf16.msra.mxu0 0
    %258 = vmatprep.subr.bf16.mxu0 0
    %259 = vmatpush1.bf16.msra.mxu0 %v239
    %260 = vmatprep.subr.bf16.mxu0 0
    %261 = vmatpush1.bf16.msra.mxu0 %v238
    %262 = vmatprep.subr.bf16.mxu0 0
    %263 = vmatpush2.bf16.msra.mxu0 0
    %264 = vmatprep.subr.bf16.mxu0 0
    %265 = vmatpush2.bf16.msra.mxu0 0
    %266 = vmatprep.subr.bf16.mxu0 0
    %267 = vmatpush2.bf16.msra.mxu0 0
    %268 = vmatprep.subr.bf16.mxu0 0
    %269 = vmatpush2.bf16.msra.mxu0 0
    %270 = vmatprep.subr.bf16.mxu0 0
    %271 = vmatpush2.bf16.msra.mxu0 0
    %272 = vmatprep.subr.bf16.mxu0 0
    %273 = vmatpush2.bf16.msra.mxu0 0
    %274 = vmatprep.subr.bf16.mxu0 0
    %275 = vmatpush2.bf16.msra.mxu0 0
    %276 = vmatprep.subr.bf16.mxu0 0
    %277 = vmatpush2.bf16.msra.mxu0 0
    %278 = vmatprep.mubr.bf16.mxu0 0
    %279 = vmatmul.mubr.bf16.gmra.mxu0 %v244
    %v280 = vpop.f32.mrf.mxu0
    %v281 = vadd.f32 %v228, %v280
    %v282 = vpop.f32.mrf.mxu0
    %v283 = vpop.f32.mrf.mxu0
    %v284 = vadd.f32 %v228, %v283
    %v285 = vpop.f32.mrf.mxu0
    %286 = vdwg.mxu0
    %289 = vrot.lane.b32.xlu0 %v281, 120
    %v290 = vpop.permute.xlu0 %289
    %291 = vrot.lane.b32.xlu0 %v284, 120
    %v292 = vpop.permute.xlu0 %291
    %295 = vrot.lane.b32.xlu0 %v281, 112
    %v296 = vpop.permute.xlu0 %295
    %297 = vrot.lane.b32.xlu0 %v284, 112
    %v298 = vpop.permute.xlu0 %297
    %301 = vrot.lane.b32.xlu0 %v281, 104
    %v302 = vpop.permute.xlu0 %301
    %303 = vrot.lane.b32.xlu0 %v284, 104
    %v304 = vpop.permute.xlu0 %303
    %v307 = vpack.c.bf16 %v281, %v281
    %v308 = vpack.c.bf16 %v284, %v284
    %v309 = vpack.c.bf16 %v290, %v290
    %v310 = vpack.c.bf16 %v292, %v292
    %v311 = vpack.c.bf16 %v296, %v296
    %v312 = vpack.c.bf16 %v298, %v298
    %v313 = vpack.c.bf16 %v302, %v302
    %v314 = vpack.c.bf16 %v304, %v304
    %316 = vrot.lane.b32.xlu0 %v307, 96
    %v317 = vpop.permute.xlu0 %316
    %vm318 = vcmask 64512
    %v320 = vsel %vm318, %v307, 0
    %v323 = vsel %vm318, %v317, 0
    %325 = vmatprep.subr.bf16.mxu0 0
    %326 = vmatpush1.bf16.xpose.msra.mxu0 0
    %327 = vmatprep.subr.bf16.mxu0 0
    %328 = vmatpush1.bf16.xpose.msra.mxu0 0
    %329 = vmatprep.subr.bf16.mxu0 0
    %330 = vmatpush1.bf16.xpose.msra.mxu0 0
    %331 = vmatprep.subr.bf16.mxu0 0
    %332 = vmatpush1.bf16.xpose.msra.mxu0 0
    %333 = vmatprep.subr.bf16.mxu0 0
    %334 = vmatpush1.bf16.xpose.msra.mxu0 0
    %335 = vmatprep.subr.bf16.mxu0 0
    %336 = vmatpush1.bf16.xpose.msra.mxu0 0
    %337 = vmatprep.subr.bf16.mxu0 0
    %338 = vmatpush1.bf16.xpose.msra.mxu0 0
    %339 = vmatprep.subr.bf16.mxu0 0
    %340 = vmatpush1.bf16.xpose.msra.mxu0 %v323
    %341 = vmatprep.subr.bf16.mxu0 0
    %342 = vmatpush2.bf16.xpose.msra.mxu0 0
    %343 = vmatprep.subr.bf16.mxu0 0
    %344 = vmatpush2.bf16.xpose.msra.mxu0 0
    %345 = vmatprep.subr.bf16.mxu0 0
    %346 = vmatpush2.bf16.xpose.msra.mxu0 0
    %347 = vmatprep.subr.bf16.mxu0 0
    %348 = vmatpush2.bf16.xpose.msra.mxu0 0
    %349 = vmatprep.subr.bf16.mxu0 0
    %350 = vmatpush2.bf16.xpose.msra.mxu0 0
    %351 = vmatprep.subr.bf16.mxu0 0
    %352 = vmatpush2.bf16.xpose.msra.mxu0 0
    %353 = vmatprep.subr.bf16.mxu0 0
    %354 = vmatpush2.bf16.xpose.msra.mxu0 0
    %355 = vmatprep.subr.bf16.mxu0 0
    %356 = vmatpush2.bf16.xpose.msra.mxu0 0
    %357 = vmatprep.mubr.bf16.mxu0 0
    %358 = vmatmul.mubr.bf16.gmra.mxu0 %v320
    %v359 = vpop.f32.mrf.mxu0
    %v360 = vadd.f32 0.0, %v359
    %v361 = vpop.f32.mrf.mxu0
    %v362 = vpop.f32.mrf.mxu0
    %v363 = vpop.f32.mrf.mxu0
    %364 = vdwg.mxu0
    %366 = vrot.lane.b32.xlu0 %v308, 96
    %v367 = vpop.permute.xlu0 %366
    %v369 = vsel %vm318, %v308, 0
    %v372 = vsel %vm318, %v367, 0
    %374 = vmatprep.subr.bf16.mxu0 0
    %375 = vmatpush1.bf16.xpose.msra.mxu0 0
    %376 = vmatprep.subr.bf16.mxu0 0
    %377 = vmatpush1.bf16.xpose.msra.mxu0 0
    %378 = vmatprep.subr.bf16.mxu0 0
    %379 = vmatpush1.bf16.xpose.msra.mxu0 0
    %380 = vmatprep.subr.bf16.mxu0 0
    %381 = vmatpush1.bf16.xpose.msra.mxu0 0
    %382 = vmatprep.subr.bf16.mxu0 0
    %383 = vmatpush1.bf16.xpose.msra.mxu0 0
    %384 = vmatprep.subr.bf16.mxu0 0
    %385 = vmatpush1.bf16.xpose.msra.mxu0 0
    %386 = vmatprep.subr.bf16.mxu0 0
    %387 = vmatpush1.bf16.xpose.msra.mxu0 0
    %388 = vmatprep.subr.bf16.mxu0 0
    %389 = vmatpush1.bf16.xpose.msra.mxu0 %v372
    %390 = vmatprep.subr.bf16.mxu0 0
    %391 = vmatpush2.bf16.xpose.msra.mxu0 0
    %392 = vmatprep.subr.bf16.mxu0 0
    %393 = vmatpush2.bf16.xpose.msra.mxu0 0
    %394 = vmatprep.subr.bf16.mxu0 0
    %395 = vmatpush2.bf16.xpose.msra.mxu0 0
    %396 = vmatprep.subr.bf16.mxu0 0
    %397 = vmatpush2.bf16.xpose.msra.mxu0 0
    %398 = vmatprep.subr.bf16.mxu0 0
    %399 = vmatpush2.bf16.xpose.msra.mxu0 0
    %400 = vmatprep.subr.bf16.mxu0 0
    %401 = vmatpush2.bf16.xpose.msra.mxu0 0
    %402 = vmatprep.subr.bf16.mxu0 0
    %403 = vmatpush2.bf16.xpose.msra.mxu0 0
    %404 = vmatprep.subr.bf16.mxu0 0
    %405 = vmatpush2.bf16.xpose.msra.mxu0 0
    %406 = vmatprep.mubr.bf16.mxu0 0
    %407 = vmatmul.mubr.bf16.gmra.mxu0 %v369
    %v408 = vpop.f32.mrf.mxu0
    %v409 = vadd.f32 0.0, %v408
    %v410 = vpop.f32.mrf.mxu0
    %v411 = vpop.f32.mrf.mxu0
    %v412 = vpop.f32.mrf.mxu0
    %413 = vdwg.mxu0
    %415 = vrot.lane.b32.xlu0 %v309, 96
    %v416 = vpop.permute.xlu0 %415
    %v418 = vsel %vm318, %v309, 0
    %v421 = vsel %vm318, %v416, 0
    %423 = vmatprep.subr.bf16.mxu0 0
    %424 = vmatpush1.bf16.xpose.msra.mxu0 0
    %425 = vmatprep.subr.bf16.mxu0 0
    %426 = vmatpush1.bf16.xpose.msra.mxu0 0
    %427 = vmatprep.subr.bf16.mxu0 0
    %428 = vmatpush1.bf16.xpose.msra.mxu0 0
    %429 = vmatprep.subr.bf16.mxu0 0
    %430 = vmatpush1.bf16.xpose.msra.mxu0 0
    %431 = vmatprep.subr.bf16.mxu0 0
    %432 = vmatpush1.bf16.xpose.msra.mxu0 0
    %433 = vmatprep.subr.bf16.mxu0 0
    %434 = vmatpush1.bf16.xpose.msra.mxu0 0
    %435 = vmatprep.subr.bf16.mxu0 0
    %436 = vmatpush1.bf16.xpose.msra.mxu0 0
    %437 = vmatprep.subr.bf16.mxu0 0
    %438 = vmatpush1.bf16.xpose.msra.mxu0 %v421
    %439 = vmatprep.subr.bf16.mxu0 0
    %440 = vmatpush2.bf16.xpose.msra.mxu0 0
    %441 = vmatprep.subr.bf16.mxu0 0
    %442 = vmatpush2.bf16.xpose.msra.mxu0 0
    %443 = vmatprep.subr.bf16.mxu0 0
    %444 = vmatpush2.bf16.xpose.msra.mxu0 0
    %445 = vmatprep.subr.bf16.mxu0 0
    %446 = vmatpush2.bf16.xpose.msra.mxu0 0
    %447 = vmatprep.subr.bf16.mxu0 0
    %448 = vmatpush2.bf16.xpose.msra.mxu0 0
    %449 = vmatprep.subr.bf16.mxu0 0
    %450 = vmatpush2.bf16.xpose.msra.mxu0 0
    %451 = vmatprep.subr.bf16.mxu0 0
    %452 = vmatpush2.bf16.xpose.msra.mxu0 0
    %453 = vmatprep.subr.bf16.mxu0 0
    %454 = vmatpush2.bf16.xpose.msra.mxu0 0
    %455 = vmatprep.mubr.bf16.mxu0 0
    %456 = vmatmul.mubr.bf16.gmra.mxu0 %v418
    %v457 = vpop.f32.mrf.mxu0
    %v458 = vadd.f32 0.0, %v457
    %v459 = vpop.f32.mrf.mxu0
    %v460 = vpop.f32.mrf.mxu0
    %v461 = vpop.f32.mrf.mxu0
    %462 = vdwg.mxu0
    %464 = vrot.lane.b32.xlu0 %v310, 96
    %v465 = vpop.permute.xlu0 %464
    %v467 = vsel %vm318, %v310, 0
    %v470 = vsel %vm318, %v465, 0
    %472 = vmatprep.subr.bf16.mxu0 0
    %473 = vmatpush1.bf16.xpose.msra.mxu0 0
    %474 = vmatprep.subr.bf16.mxu0 0
    %475 = vmatpush1.bf16.xpose.msra.mxu0 0
    %476 = vmatprep.subr.bf16.mxu0 0
    %477 = vmatpush1.bf16.xpose.msra.mxu0 0
    %478 = vmatprep.subr.bf16.mxu0 0
    %479 = vmatpush1.bf16.xpose.msra.mxu0 0
    %480 = vmatprep.subr.bf16.mxu0 0
    %481 = vmatpush1.bf16.xpose.msra.mxu0 0
    %482 = vmatprep.subr.bf16.mxu0 0
    %483 = vmatpush1.bf16.xpose.msra.mxu0 0
    %484 = vmatprep.subr.bf16.mxu0 0
    %485 = vmatpush1.bf16.xpose.msra.mxu0 0
    %486 = vmatprep.subr.bf16.mxu0 0
    %487 = vmatpush1.bf16.xpose.msra.mxu0 %v470
    %488 = vmatprep.subr.bf16.mxu0 0
    %489 = vmatpush2.bf16.xpose.msra.mxu0 0
    %490 = vmatprep.subr.bf16.mxu0 0
    %491 = vmatpush2.bf16.xpose.msra.mxu0 0
    %492 = vmatprep.subr.bf16.mxu0 0
    %493 = vmatpush2.bf16.xpose.msra.mxu0 0
    %494 = vmatprep.subr.bf16.mxu0 0
    %495 = vmatpush2.bf16.xpose.msra.mxu0 0
    %496 = vmatprep.subr.bf16.mxu0 0
    %497 = vmatpush2.bf16.xpose.msra.mxu0 0
    %498 = vmatprep.subr.bf16.mxu0 0
    %499 = vmatpush2.bf16.xpose.msra.mxu0 0
    %500 = vmatprep.subr.bf16.mxu0 0
    %501 = vmatpush2.bf16.xpose.msra.mxu0 0
    %502 = vmatprep.subr.bf16.mxu0 0
    %503 = vmatpush2.bf16.xpose.msra.mxu0 0
    %504 = vmatprep.mubr.bf16.mxu0 0
    %505 = vmatmul.mubr.bf16.gmra.mxu0 %v467
    %v506 = vpop.f32.mrf.mxu0
    %v507 = vadd.f32 0.0, %v506
    %v508 = vpop.f32.mrf.mxu0
    %v509 = vpop.f32.mrf.mxu0
    %v510 = vpop.f32.mrf.mxu0
    %511 = vdwg.mxu0
    %513 = vrot.lane.b32.xlu0 %v311, 96
    %v514 = vpop.permute.xlu0 %513
    %v516 = vsel %vm318, %v311, 0
    %v519 = vsel %vm318, %v514, 0
    %521 = vmatprep.subr.bf16.mxu0 0
    %522 = vmatpush1.bf16.xpose.msra.mxu0 0
    %523 = vmatprep.subr.bf16.mxu0 0
    %524 = vmatpush1.bf16.xpose.msra.mxu0 0
    %525 = vmatprep.subr.bf16.mxu0 0
    %526 = vmatpush1.bf16.xpose.msra.mxu0 0
    %527 = vmatprep.subr.bf16.mxu0 0
    %528 = vmatpush1.bf16.xpose.msra.mxu0 0
    %529 = vmatprep.subr.bf16.mxu0 0
    %530 = vmatpush1.bf16.xpose.msra.mxu0 0
    %531 = vmatprep.subr.bf16.mxu0 0
    %532 = vmatpush1.bf16.xpose.msra.mxu0 0
    %533 = vmatprep.subr.bf16.mxu0 0
    %534 = vmatpush1.bf16.xpose.msra.mxu0 0
    %535 = vmatprep.subr.bf16.mxu0 0
    %536 = vmatpush1.bf16.xpose.msra.mxu0 %v519
    %537 = vmatprep.subr.bf16.mxu0 0
    %538 = vmatpush2.bf16.xpose.msra.mxu0 0
    %539 = vmatprep.subr.bf16.mxu0 0
    %540 = vmatpush2.bf16.xpose.msra.mxu0 0
    %541 = vmatprep.subr.bf16.mxu0 0
    %542 = vmatpush2.bf16.xpose.msra.mxu0 0
    %543 = vmatprep.subr.bf16.mxu0 0
    %544 = vmatpush2.bf16.xpose.msra.mxu0 0
    %545 = vmatprep.subr.bf16.mxu0 0
    %546 = vmatpush2.bf16.xpose.msra.mxu0 0
    %547 = vmatprep.subr.bf16.mxu0 0
    %548 = vmatpush2.bf16.xpose.msra.mxu0 0
    %549 = vmatprep.subr.bf16.mxu0 0
    %550 = vmatpush2.bf16.xpose.msra.mxu0 0
    %551 = vmatprep.subr.bf16.mxu0 0
    %552 = vmatpush2.bf16.xpose.msra.mxu0 0
    %553 = vmatprep.mubr.bf16.mxu0 0
    %554 = vmatmul.mubr.bf16.gmra.mxu0 %v516
    %v555 = vpop.f32.mrf.mxu0
    %v556 = vadd.f32 0.0, %v555
    %v557 = vpop.f32.mrf.mxu0
    %v558 = vpop.f32.mrf.mxu0
    %v559 = vpop.f32.mrf.mxu0
    %560 = vdwg.mxu0
    %562 = vrot.lane.b32.xlu0 %v312, 96
    %v563 = vpop.permute.xlu0 %562
    %v565 = vsel %vm318, %v312, 0
    %v568 = vsel %vm318, %v563, 0
    %570 = vmatprep.subr.bf16.mxu0 0
    %571 = vmatpush1.bf16.xpose.msra.mxu0 0
    %572 = vmatprep.subr.bf16.mxu0 0
    %573 = vmatpush1.bf16.xpose.msra.mxu0 0
    %574 = vmatprep.subr.bf16.mxu0 0
    %575 = vmatpush1.bf16.xpose.msra.mxu0 0
    %576 = vmatprep.subr.bf16.mxu0 0
    %577 = vmatpush1.bf16.xpose.msra.mxu0 0
    %578 = vmatprep.subr.bf16.mxu0 0
    %579 = vmatpush1.bf16.xpose.msra.mxu0 0
    %580 = vmatprep.subr.bf16.mxu0 0
    %581 = vmatpush1.bf16.xpose.msra.mxu0 0
    %582 = vmatprep.subr.bf16.mxu0 0
    %583 = vmatpush1.bf16.xpose.msra.mxu0 0
    %584 = vmatprep.subr.bf16.mxu0 0
    %585 = vmatpush1.bf16.xpose.msra.mxu0 %v568
    %586 = vmatprep.subr.bf16.mxu0 0
    %587 = vmatpush2.bf16.xpose.msra.mxu0 0
    %588 = vmatprep.subr.bf16.mxu0 0
    %589 = vmatpush2.bf16.xpose.msra.mxu0 0
    %590 = vmatprep.subr.bf16.mxu0 0
    %591 = vmatpush2.bf16.xpose.msra.mxu0 0
    %592 = vmatprep.subr.bf16.mxu0 0
    %593 = vmatpush2.bf16.xpose.msra.mxu0 0
    %594 = vmatprep.subr.bf16.mxu0 0
    %595 = vmatpush2.bf16.xpose.msra.mxu0 0
    %596 = vmatprep.subr.bf16.mxu0 0
    %597 = vmatpush2.bf16.xpose.msra.mxu0 0
    %598 = vmatprep.subr.bf16.mxu0 0
    %599 = vmatpush2.bf16.xpose.msra.mxu0 0
    %600 = vmatprep.subr.bf16.mxu0 0
    %601 = vmatpush2.bf16.xpose.msra.mxu0 0
    %602 = vmatprep.mubr.bf16.mxu0 0
    %603 = vmatmul.mubr.bf16.gmra.mxu0 %v565
    %v604 = vpop.f32.mrf.mxu0
    %v605 = vadd.f32 0.0, %v604
    %v606 = vpop.f32.mrf.mxu0
    %v607 = vpop.f32.mrf.mxu0
    %v608 = vpop.f32.mrf.mxu0
    %609 = vdwg.mxu0
    %611 = vrot.lane.b32.xlu0 %v313, 96
    %v612 = vpop.permute.xlu0 %611
    %v614 = vsel %vm318, %v313, 0
    %v617 = vsel %vm318, %v612, 0
    %619 = vmatprep.subr.bf16.mxu0 0
    %620 = vmatpush1.bf16.xpose.msra.mxu0 0
    %621 = vmatprep.subr.bf16.mxu0 0
    %622 = vmatpush1.bf16.xpose.msra.mxu0 0
    %623 = vmatprep.subr.bf16.mxu0 0
    %624 = vmatpush1.bf16.xpose.msra.mxu0 0
    %625 = vmatprep.subr.bf16.mxu0 0
    %626 = vmatpush1.bf16.xpose.msra.mxu0 0
    %627 = vmatprep.subr.bf16.mxu0 0
    %628 = vmatpush1.bf16.xpose.msra.mxu0 0
    %629 = vmatprep.subr.bf16.mxu0 0
    %630 = vmatpush1.bf16.xpose.msra.mxu0 0
    %631 = vmatprep.subr.bf16.mxu0 0
    %632 = vmatpush1.bf16.xpose.msra.mxu0 0
    %633 = vmatprep.subr.bf16.mxu0 0
    %634 = vmatpush1.bf16.xpose.msra.mxu0 %v617
    %635 = vmatprep.subr.bf16.mxu0 0
    %636 = vmatpush2.bf16.xpose.msra.mxu0 0
    %637 = vmatprep.subr.bf16.mxu0 0
    %638 = vmatpush2.bf16.xpose.msra.mxu0 0
    %639 = vmatprep.subr.bf16.mxu0 0
    %640 = vmatpush2.bf16.xpose.msra.mxu0 0
    %641 = vmatprep.subr.bf16.mxu0 0
    %642 = vmatpush2.bf16.xpose.msra.mxu0 0
    %643 = vmatprep.subr.bf16.mxu0 0
    %644 = vmatpush2.bf16.xpose.msra.mxu0 0
    %645 = vmatprep.subr.bf16.mxu0 0
    %646 = vmatpush2.bf16.xpose.msra.mxu0 0
    %647 = vmatprep.subr.bf16.mxu0 0
    %648 = vmatpush2.bf16.xpose.msra.mxu0 0
    %649 = vmatprep.subr.bf16.mxu0 0
    %650 = vmatpush2.bf16.xpose.msra.mxu0 0
    %651 = vmatprep.mubr.bf16.mxu0 0
    %652 = vmatmul.mubr.bf16.gmra.mxu0 %v614
    %v653 = vpop.f32.mrf.mxu0
    %v654 = vadd.f32 0.0, %v653
    %v655 = vpop.f32.mrf.mxu0
    %v656 = vpop.f32.mrf.mxu0
    %v657 = vpop.f32.mrf.mxu0
    %658 = vdwg.mxu0
    %660 = vrot.lane.b32.xlu0 %v314, 96
    %v661 = vpop.permute.xlu0 %660
    %v663 = vsel %vm318, %v314, 0
    %v666 = vsel %vm318, %v661, 0
    %668 = vmatprep.subr.bf16.mxu0 0
    %669 = vmatpush1.bf16.xpose.msra.mxu0 0
    %670 = vmatprep.subr.bf16.mxu0 0
    %671 = vmatpush1.bf16.xpose.msra.mxu0 0
    %672 = vmatprep.subr.bf16.mxu0 0
    %673 = vmatpush1.bf16.xpose.msra.mxu0 0
    %674 = vmatprep.subr.bf16.mxu0 0
    %675 = vmatpush1.bf16.xpose.msra.mxu0 0
    %676 = vmatprep.subr.bf16.mxu0 0
    %677 = vmatpush1.bf16.xpose.msra.mxu0 0
    %678 = vmatprep.subr.bf16.mxu0 0
    %679 = vmatpush1.bf16.xpose.msra.mxu0 0
    %680 = vmatprep.subr.bf16.mxu0 0
    %681 = vmatpush1.bf16.xpose.msra.mxu0 0
    %682 = vmatprep.subr.bf16.mxu0 0
    %683 = vmatpush1.bf16.xpose.msra.mxu0 %v666
    %684 = vmatprep.subr.bf16.mxu0 0
    %685 = vmatpush2.bf16.xpose.msra.mxu0 0
    %686 = vmatprep.subr.bf16.mxu0 0
    %687 = vmatpush2.bf16.xpose.msra.mxu0 0
    %688 = vmatprep.subr.bf16.mxu0 0
    %689 = vmatpush2.bf16.xpose.msra.mxu0 0
    %690 = vmatprep.subr.bf16.mxu0 0
    %691 = vmatpush2.bf16.xpose.msra.mxu0 0
    %692 = vmatprep.subr.bf16.mxu0 0
    %693 = vmatpush2.bf16.xpose.msra.mxu0 0
    %694 = vmatprep.subr.bf16.mxu0 0
    %695 = vmatpush2.bf16.xpose.msra.mxu0 0
    %696 = vmatprep.subr.bf16.mxu0 0
    %697 = vmatpush2.bf16.xpose.msra.mxu0 0
    %698 = vmatprep.subr.bf16.mxu0 0
    %699 = vmatpush2.bf16.xpose.msra.mxu0 0
    %700 = vmatprep.mubr.bf16.mxu0 0
    %701 = vmatmul.mubr.bf16.gmra.mxu0 %v663
    %v702 = vpop.f32.mrf.mxu0
    %v703 = vadd.f32 0.0, %v702
    %v704 = vpop.f32.mrf.mxu0
    %v705 = vpop.f32.mrf.mxu0
    %v706 = vpop.f32.mrf.mxu0
    %707 = vdwg.mxu0
    %v708 = vmul.f32 %v360, 0.35355338
    %v709 = vmul.f32 %v409, 0.35355338
    %v710 = vmul.f32 %v458, 0.35355338
    %v711 = vmul.f32 %v507, 0.35355338
    %v712 = vmul.f32 %v556, 0.35355338
    %v713 = vmul.f32 %v605, 0.35355338
    %v714 = vmul.f32 %v654, 0.35355338
    %v715 = vmul.f32 %v703, 0.35355338
    %v716 = vsel %vm318, %v708, -inf
    %717 = vmax.xlane.f32.xlu0 %v716
    %v718 = vpop.xlane.xlu0 %717
    %v719 = vsel %vm318, %v709, -inf
    %720 = vmax.xlane.f32.xlu0 %v719
    %v721 = vpop.xlane.xlu0 %720
    %v722 = vsel %vm318, %v710, -inf
    %723 = vmax.xlane.f32.xlu0 %v722
    %v724 = vpop.xlane.xlu0 %723
    %v725 = vsel %vm318, %v711, -inf
    %726 = vmax.xlane.f32.xlu0 %v725
    %v727 = vpop.xlane.xlu0 %726
    %v728 = vsel %vm318, %v712, -inf
    %729 = vmax.xlane.f32.xlu0 %v728
    %v730 = vpop.xlane.xlu0 %729
    %v731 = vsel %vm318, %v713, -inf
    %732 = vmax.xlane.f32.xlu0 %v731
    %v733 = vpop.xlane.xlu0 %732
    %v734 = vsel %vm318, %v714, -inf
    %735 = vmax.xlane.f32.xlu0 %v734
    %v736 = vpop.xlane.xlu0 %735
    %v737 = vsel %vm318, %v715, -inf
    %738 = vmax.xlane.f32.xlu0 %v737
    %v739 = vpop.xlane.xlu0 %738
    %v740 = vsub.f32 %v708, %v718
    %v741 = vsub.f32 %v709, %v721
    %v742 = vsub.f32 %v710, %v724
    %v743 = vsub.f32 %v711, %v727
    %v744 = vsub.f32 %v712, %v730
    %v745 = vsub.f32 %v713, %v733
    %v746 = vsub.f32 %v714, %v736
    %v747 = vsub.f32 %v715, %v739
    %v748 = vmul.f32 %v740, 1.442695
    %v749 = vpow.pop %v748
    %v750 = vmul.f32 %v741, 1.442695
    %v751 = vpow.pop %v750
    %v752 = vmul.f32 %v742, 1.442695
    %v753 = vpow.pop %v752
    %v754 = vmul.f32 %v743, 1.442695
    %v755 = vpow.pop %v754
    %v756 = vmul.f32 %v744, 1.442695
    %v757 = vpow.pop %v756
    %v758 = vmul.f32 %v745, 1.442695
    %v759 = vpow.pop %v758
    %v760 = vmul.f32 %v746, 1.442695
    %v761 = vpow.pop %v760
    %v762 = vmul.f32 %v747, 1.442695
    %v763 = vpow.pop %v762
    %v764 = vsel %vm318, %v749, 0.0
    %765 = vadd.xlane.f32.xlu0 %v764
    %v766 = vpop.xlane.xlu0 %765
    %v767 = vsel %vm318, %v751, 0.0
    %768 = vadd.xlane.f32.xlu0 %v767
    %v769 = vpop.xlane.xlu0 %768
    %v770 = vsel %vm318, %v753, 0.0
    %771 = vadd.xlane.f32.xlu0 %v770
    %v772 = vpop.xlane.xlu0 %771
    %v773 = vsel %vm318, %v755, 0.0
    %774 = vadd.xlane.f32.xlu0 %v773
    %v775 = vpop.xlane.xlu0 %774
    %v776 = vsel %vm318, %v757, 0.0
    %777 = vadd.xlane.f32.xlu0 %v776
    %v778 = vpop.xlane.xlu0 %777
    %v779 = vsel %vm318, %v759, 0.0
    %780 = vadd.xlane.f32.xlu0 %v779
    %v781 = vpop.xlane.xlu0 %780
    %v782 = vsel %vm318, %v761, 0.0
    %783 = vadd.xlane.f32.xlu0 %v782
    %v784 = vpop.xlane.xlu0 %783
    %v785 = vsel %vm318, %v763, 0.0
    %786 = vadd.xlane.f32.xlu0 %v785
    %v787 = vpop.xlane.xlu0 %786
    %v788 = vrcp.pop %v766
    %v789 = vrcp.pop %v769
    %v790 = vrcp.pop %v772
    %v791 = vrcp.pop %v775
    %v792 = vrcp.pop %v778
    %v793 = vrcp.pop %v781
    %v794 = vrcp.pop %v784
    %v795 = vrcp.pop %v787
    %v796 = vmul.f32 %v749, %v788
    %v797 = vmul.f32 %v751, %v789
    %v798 = vmul.f32 %v753, %v790
    %v799 = vmul.f32 %v755, %v791
    %v800 = vmul.f32 %v757, %v792
    %v801 = vmul.f32 %v759, %v793
    %v802 = vmul.f32 %v761, %v794
    %v803 = vmul.f32 %v763, %v795
    %v804 = vpack.c.bf16 %v796, %v796
    %v805 = vpack.c.bf16 %v797, %v797
    %v806 = vpack.c.bf16 %v798, %v798
    %v807 = vpack.c.bf16 %v799, %v799
    %v808 = vpack.c.bf16 %v800, %v800
    %v809 = vpack.c.bf16 %v801, %v801
    %v810 = vpack.c.bf16 %v802, %v802
    %v811 = vpack.c.bf16 %v803, %v803
    %812 = vrot.lane.b32.xlu0 %v307, 64
    %v813 = vpop.permute.xlu0 %812
    %v815 = vsel %vm318, %v804, 0
    %vm817 = vcmask 1043456
    %v819 = vsel %vm817, %v813, 0
    %821 = vmatprep.subr.bf16.mxu0 0
    %822 = vmatpush1.bf16.msra.mxu0 0
    %823 = vmatprep.subr.bf16.mxu0 0
    %824 = vmatpush1.bf16.msra.mxu0 0
    %825 = vmatprep.subr.bf16.mxu0 0
    %826 = vmatpush1.bf16.msra.mxu0 0
    %827 = vmatprep.subr.bf16.mxu0 0
    %828 = vmatpush1.bf16.msra.mxu0 0
    %829 = vmatprep.subr.bf16.mxu0 0
    %830 = vmatpush1.bf16.msra.mxu0 0
    %831 = vmatprep.subr.bf16.mxu0 0
    %832 = vmatpush1.bf16.msra.mxu0 0
    %833 = vmatprep.subr.bf16.mxu0 0
    %834 = vmatpush1.bf16.msra.mxu0 0
    %835 = vmatprep.subr.bf16.mxu0 0
    %836 = vmatpush1.bf16.msra.mxu0 %v819
    %837 = vmatprep.subr.bf16.mxu0 0
    %838 = vmatpush2.bf16.msra.mxu0 0
    %839 = vmatprep.subr.bf16.mxu0 0
    %840 = vmatpush2.bf16.msra.mxu0 0
    %841 = vmatprep.subr.bf16.mxu0 0
    %842 = vmatpush2.bf16.msra.mxu0 0
    %843 = vmatprep.subr.bf16.mxu0 0
    %844 = vmatpush2.bf16.msra.mxu0 0
    %845 = vmatprep.subr.bf16.mxu0 0
    %846 = vmatpush2.bf16.msra.mxu0 0
    %847 = vmatprep.subr.bf16.mxu0 0
    %848 = vmatpush2.bf16.msra.mxu0 0
    %849 = vmatprep.subr.bf16.mxu0 0
    %850 = vmatpush2.bf16.msra.mxu0 0
    %851 = vmatprep.subr.bf16.mxu0 0
    %852 = vmatpush2.bf16.msra.mxu0 0
    %853 = vmatprep.mubr.bf16.mxu0 0
    %854 = vmatmul.mubr.bf16.gmra.mxu0 %v815
    %v855 = vpop.f32.mrf.mxu0
    %v856 = vadd.f32 0.0, %v855
    %v857 = vpop.f32.mrf.mxu0
    %v858 = vpop.f32.mrf.mxu0
    %v859 = vpop.f32.mrf.mxu0
    %860 = vdwg.mxu0
    %861 = vrot.lane.b32.xlu0 %v308, 64
    %v862 = vpop.permute.xlu0 %861
    %v864 = vsel %vm318, %v805, 0
    %v867 = vsel %vm817, %v862, 0
    %869 = vmatprep.subr.bf16.mxu0 0
    %870 = vmatpush1.bf16.msra.mxu0 0
    %871 = vmatprep.subr.bf16.mxu0 0
    %872 = vmatpush1.bf16.msra.mxu0 0
    %873 = vmatprep.subr.bf16.mxu0 0
    %874 = vmatpush1.bf16.msra.mxu0 0
    %875 = vmatprep.subr.bf16.mxu0 0
    %876 = vmatpush1.bf16.msra.mxu0 0
    %877 = vmatprep.subr.bf16.mxu0 0
    %878 = vmatpush1.bf16.msra.mxu0 0
    %879 = vmatprep.subr.bf16.mxu0 0
    %880 = vmatpush1.bf16.msra.mxu0 0
    %881 = vmatprep.subr.bf16.mxu0 0
    %882 = vmatpush1.bf16.msra.mxu0 0
    %883 = vmatprep.subr.bf16.mxu0 0
    %884 = vmatpush1.bf16.msra.mxu0 %v867
    %885 = vmatprep.subr.bf16.mxu0 0
    %886 = vmatpush2.bf16.msra.mxu0 0
    %887 = vmatprep.subr.bf16.mxu0 0
    %888 = vmatpush2.bf16.msra.mxu0 0
    %889 = vmatprep.subr.bf16.mxu0 0
    %890 = vmatpush2.bf16.msra.mxu0 0
    %891 = vmatprep.subr.bf16.mxu0 0
    %892 = vmatpush2.bf16.msra.mxu0 0
    %893 = vmatprep.subr.bf16.mxu0 0
    %894 = vmatpush2.bf16.msra.mxu0 0
    %895 = vmatprep.subr.bf16.mxu0 0
    %896 = vmatpush2.bf16.msra.mxu0 0
    %897 = vmatprep.subr.bf16.mxu0 0
    %898 = vmatpush2.bf16.msra.mxu0 0
    %899 = vmatprep.subr.bf16.mxu0 0
    %900 = vmatpush2.bf16.msra.mxu0 0
    %901 = vmatprep.mubr.bf16.mxu0 0
    %902 = vmatmul.mubr.bf16.gmra.mxu0 %v864
    %v903 = vpop.f32.mrf.mxu0
    %v904 = vadd.f32 0.0, %v903
    %v905 = vpop.f32.mrf.mxu0
    %v906 = vpop.f32.mrf.mxu0
    %v907 = vpop.f32.mrf.mxu0
    %908 = vdwg.mxu0
    %909 = vrot.lane.b32.xlu0 %v309, 64
    %v910 = vpop.permute.xlu0 %909
    %v912 = vsel %vm318, %v806, 0
    %v915 = vsel %vm817, %v910, 0
    %917 = vmatprep.subr.bf16.mxu0 0
    %918 = vmatpush1.bf16.msra.mxu0 0
    %919 = vmatprep.subr.bf16.mxu0 0
    %920 = vmatpush1.bf16.msra.mxu0 0
    %921 = vmatprep.subr.bf16.mxu0 0
    %922 = vmatpush1.bf16.msra.mxu0 0
    %923 = vmatprep.subr.bf16.mxu0 0
    %924 = vmatpush1.bf16.msra.mxu0 0
    %925 = vmatprep.subr.bf16.mxu0 0
    %926 = vmatpush1.bf16.msra.mxu0 0
    %927 = vmatprep.subr.bf16.mxu0 0
    %928 = vmatpush1.bf16.msra.mxu0 0
    %929 = vmatprep.subr.bf16.mxu0 0
    %930 = vmatpush1.bf16.msra.mxu0 0
    %931 = vmatprep.subr.bf16.mxu0 0
    %932 = vmatpush1.bf16.msra.mxu0 %v915
    %933 = vmatprep.subr.bf16.mxu0 0
    %934 = vmatpush2.bf16.msra.mxu0 0
    %935 = vmatprep.subr.bf16.mxu0 0
    %936 = vmatpush2.bf16.msra.mxu0 0
    %937 = vmatprep.subr.bf16.mxu0 0
    %938 = vmatpush2.bf16.msra.mxu0 0
    %939 = vmatprep.subr.bf16.mxu0 0
    %940 = vmatpush2.bf16.msra.mxu0 0
    %941 = vmatprep.subr.bf16.mxu0 0
    %942 = vmatpush2.bf16.msra.mxu0 0
    %943 = vmatprep.subr.bf16.mxu0 0
    %944 = vmatpush2.bf16.msra.mxu0 0
    %945 = vmatprep.subr.bf16.mxu0 0
    %946 = vmatpush2.bf16.msra.mxu0 0
    %947 = vmatprep.subr.bf16.mxu0 0
    %948 = vmatpush2.bf16.msra.mxu0 0
    %949 = vmatprep.mubr.bf16.mxu0 0
    %950 = vmatmul.mubr.bf16.gmra.mxu0 %v912
    %v951 = vpop.f32.mrf.mxu0
    %v952 = vadd.f32 0.0, %v951
    %v953 = vpop.f32.mrf.mxu0
    %v954 = vpop.f32.mrf.mxu0
    %v955 = vpop.f32.mrf.mxu0
    %956 = vdwg.mxu0
    %957 = vrot.lane.b32.xlu0 %v310, 64
    %v958 = vpop.permute.xlu0 %957
    %v960 = vsel %vm318, %v807, 0
    %v963 = vsel %vm817, %v958, 0
    %965 = vmatprep.subr.bf16.mxu0 0
    %966 = vmatpush1.bf16.msra.mxu0 0
    %967 = vmatprep.subr.bf16.mxu0 0
    %968 = vmatpush1.bf16.msra.mxu0 0
    %969 = vmatprep.subr.bf16.mxu0 0
    %970 = vmatpush1.bf16.msra.mxu0 0
    %971 = vmatprep.subr.bf16.mxu0 0
    %972 = vmatpush1.bf16.msra.mxu0 0
    %973 = vmatprep.subr.bf16.mxu0 0
    %974 = vmatpush1.bf16.msra.mxu0 0
    %975 = vmatprep.subr.bf16.mxu0 0
    %976 = vmatpush1.bf16.msra.mxu0 0
    %977 = vmatprep.subr.bf16.mxu0 0
    %978 = vmatpush1.bf16.msra.mxu0 0
    %979 = vmatprep.subr.bf16.mxu0 0
    %980 = vmatpush1.bf16.msra.mxu0 %v963
    %981 = vmatprep.subr.bf16.mxu0 0
    %982 = vmatpush2.bf16.msra.mxu0 0
    %983 = vmatprep.subr.bf16.mxu0 0
    %984 = vmatpush2.bf16.msra.mxu0 0
    %985 = vmatprep.subr.bf16.mxu0 0
    %986 = vmatpush2.bf16.msra.mxu0 0
    %987 = vmatprep.subr.bf16.mxu0 0
    %988 = vmatpush2.bf16.msra.mxu0 0
    %989 = vmatprep.subr.bf16.mxu0 0
    %990 = vmatpush2.bf16.msra.mxu0 0
    %991 = vmatprep.subr.bf16.mxu0 0
    %992 = vmatpush2.bf16.msra.mxu0 0
    %993 = vmatprep.subr.bf16.mxu0 0
    %994 = vmatpush2.bf16.msra.mxu0 0
    %995 = vmatprep.subr.bf16.mxu0 0
    %996 = vmatpush2.bf16.msra.mxu0 0
    %997 = vmatprep.mubr.bf16.mxu0 0
    %998 = vmatmul.mubr.bf16.gmra.mxu0 %v960
    %v999 = vpop.f32.mrf.mxu0
    %v1000 = vadd.f32 0.0, %v999
    %v1001 = vpop.f32.mrf.mxu0
    %v1002 = vpop.f32.mrf.mxu0
    %v1003 = vpop.f32.mrf.mxu0
    %1004 = vdwg.mxu0
    %1005 = vrot.lane.b32.xlu0 %v311, 64
    %v1006 = vpop.permute.xlu0 %1005
    %v1008 = vsel %vm318, %v808, 0
    %v1011 = vsel %vm817, %v1006, 0
    %1013 = vmatprep.subr.bf16.mxu0 0
    %1014 = vmatpush1.bf16.msra.mxu0 0
    %1015 = vmatprep.subr.bf16.mxu0 0
    %1016 = vmatpush1.bf16.msra.mxu0 0
    %1017 = vmatprep.subr.bf16.mxu0 0
    %1018 = vmatpush1.bf16.msra.mxu0 0
    %1019 = vmatprep.subr.bf16.mxu0 0
    %1020 = vmatpush1.bf16.msra.mxu0 0
    %1021 = vmatprep.subr.bf16.mxu0 0
    %1022 = vmatpush1.bf16.msra.mxu0 0
    %1023 = vmatprep.subr.bf16.mxu0 0
    %1024 = vmatpush1.bf16.msra.mxu0 0
    %1025 = vmatprep.subr.bf16.mxu0 0
    %1026 = vmatpush1.bf16.msra.mxu0 0
    %1027 = vmatprep.subr.bf16.mxu0 0
    %1028 = vmatpush1.bf16.msra.mxu0 %v1011
    %1029 = vmatprep.subr.bf16.mxu0 0
    %1030 = vmatpush2.bf16.msra.mxu0 0
    %1031 = vmatprep.subr.bf16.mxu0 0
    %1032 = vmatpush2.bf16.msra.mxu0 0
    %1033 = vmatprep.subr.bf16.mxu0 0
    %1034 = vmatpush2.bf16.msra.mxu0 0
    %1035 = vmatprep.subr.bf16.mxu0 0
    %1036 = vmatpush2.bf16.msra.mxu0 0
    %1037 = vmatprep.subr.bf16.mxu0 0
    %1038 = vmatpush2.bf16.msra.mxu0 0
    %1039 = vmatprep.subr.bf16.mxu0 0
    %1040 = vmatpush2.bf16.msra.mxu0 0
    %1041 = vmatprep.subr.bf16.mxu0 0
    %1042 = vmatpush2.bf16.msra.mxu0 0
    %1043 = vmatprep.subr.bf16.mxu0 0
    %1044 = vmatpush2.bf16.msra.mxu0 0
    %1045 = vmatprep.mubr.bf16.mxu0 0
    %1046 = vmatmul.mubr.bf16.gmra.mxu0 %v1008
    %v1047 = vpop.f32.mrf.mxu0
    %v1048 = vadd.f32 0.0, %v1047
    %v1049 = vpop.f32.mrf.mxu0
    %v1050 = vpop.f32.mrf.mxu0
    %v1051 = vpop.f32.mrf.mxu0
    %1052 = vdwg.mxu0
    %1053 = vrot.lane.b32.xlu0 %v312, 64
    %v1054 = vpop.permute.xlu0 %1053
    %v1056 = vsel %vm318, %v809, 0
    %v1059 = vsel %vm817, %v1054, 0
    %1061 = vmatprep.subr.bf16.mxu0 0
    %1062 = vmatpush1.bf16.msra.mxu0 0
    %1063 = vmatprep.subr.bf16.mxu0 0
    %1064 = vmatpush1.bf16.msra.mxu0 0
    %1065 = vmatprep.subr.bf16.mxu0 0
    %1066 = vmatpush1.bf16.msra.mxu0 0
    %1067 = vmatprep.subr.bf16.mxu0 0
    %1068 = vmatpush1.bf16.msra.mxu0 0
    %1069 = vmatprep.subr.bf16.mxu0 0
    %1070 = vmatpush1.bf16.msra.mxu0 0
    %1071 = vmatprep.subr.bf16.mxu0 0
    %1072 = vmatpush1.bf16.msra.mxu0 0
    %1073 = vmatprep.subr.bf16.mxu0 0
    %1074 = vmatpush1.bf16.msra.mxu0 0
    %1075 = vmatprep.subr.bf16.mxu0 0
    %1076 = vmatpush1.bf16.msra.mxu0 %v1059
    %1077 = vmatprep.subr.bf16.mxu0 0
    %1078 = vmatpush2.bf16.msra.mxu0 0
    %1079 = vmatprep.subr.bf16.mxu0 0
    %1080 = vmatpush2.bf16.msra.mxu0 0
    %1081 = vmatprep.subr.bf16.mxu0 0
    %1082 = vmatpush2.bf16.msra.mxu0 0
    %1083 = vmatprep.subr.bf16.mxu0 0
    %1084 = vmatpush2.bf16.msra.mxu0 0
    %1085 = vmatprep.subr.bf16.mxu0 0
    %1086 = vmatpush2.bf16.msra.mxu0 0
    %1087 = vmatprep.subr.bf16.mxu0 0
    %1088 = vmatpush2.bf16.msra.mxu0 0
    %1089 = vmatprep.subr.bf16.mxu0 0
    %1090 = vmatpush2.bf16.msra.mxu0 0
    %1091 = vmatprep.subr.bf16.mxu0 0
    %1092 = vmatpush2.bf16.msra.mxu0 0
    %1093 = vmatprep.mubr.bf16.mxu0 0
    %1094 = vmatmul.mubr.bf16.gmra.mxu0 %v1056
    %v1095 = vpop.f32.mrf.mxu0
    %v1096 = vadd.f32 0.0, %v1095
    %v1097 = vpop.f32.mrf.mxu0
    %v1098 = vpop.f32.mrf.mxu0
    %v1099 = vpop.f32.mrf.mxu0
    %1100 = vdwg.mxu0
    %1101 = vrot.lane.b32.xlu0 %v313, 64
    %v1102 = vpop.permute.xlu0 %1101
    %v1104 = vsel %vm318, %v810, 0
    %v1107 = vsel %vm817, %v1102, 0
    %1109 = vmatprep.subr.bf16.mxu0 0
    %1110 = vmatpush1.bf16.msra.mxu0 0
    %1111 = vmatprep.subr.bf16.mxu0 0
    %1112 = vmatpush1.bf16.msra.mxu0 0
    %1113 = vmatprep.subr.bf16.mxu0 0
    %1114 = vmatpush1.bf16.msra.mxu0 0
    %1115 = vmatprep.subr.bf16.mxu0 0
    %1116 = vmatpush1.bf16.msra.mxu0 0
    %1117 = vmatprep.subr.bf16.mxu0 0
    %1118 = vmatpush1.bf16.msra.mxu0 0
    %1119 = vmatprep.subr.bf16.mxu0 0
    %1120 = vmatpush1.bf16.msra.mxu0 0
    %1121 = vmatprep.subr.bf16.mxu0 0
    %1122 = vmatpush1.bf16.msra.mxu0 0
    %1123 = vmatprep.subr.bf16.mxu0 0
    %1124 = vmatpush1.bf16.msra.mxu0 %v1107
    %1125 = vmatprep.subr.bf16.mxu0 0
    %1126 = vmatpush2.bf16.msra.mxu0 0
    %1127 = vmatprep.subr.bf16.mxu0 0
    %1128 = vmatpush2.bf16.msra.mxu0 0
    %1129 = vmatprep.subr.bf16.mxu0 0
    %1130 = vmatpush2.bf16.msra.mxu0 0
    %1131 = vmatprep.subr.bf16.mxu0 0
    %1132 = vmatpush2.bf16.msra.mxu0 0
    %1133 = vmatprep.subr.bf16.mxu0 0
    %1134 = vmatpush2.bf16.msra.mxu0 0
    %1135 = vmatprep.subr.bf16.mxu0 0
    %1136 = vmatpush2.bf16.msra.mxu0 0
    %1137 = vmatprep.subr.bf16.mxu0 0
    %1138 = vmatpush2.bf16.msra.mxu0 0
    %1139 = vmatprep.subr.bf16.mxu0 0
    %1140 = vmatpush2.bf16.msra.mxu0 0
    %1141 = vmatprep.mubr.bf16.mxu0 0
    %1142 = vmatmul.mubr.bf16.gmra.mxu0 %v1104
    %v1143 = vpop.f32.mrf.mxu0
    %v1144 = vadd.f32 0.0, %v1143
    %v1145 = vpop.f32.mrf.mxu0
    %v1146 = vpop.f32.mrf.mxu0
    %v1147 = vpop.f32.mrf.mxu0
    %1148 = vdwg.mxu0
    %1149 = vrot.lane.b32.xlu0 %v314, 64
    %v1150 = vpop.permute.xlu0 %1149
    %v1152 = vsel %vm318, %v811, 0
    %v1155 = vsel %vm817, %v1150, 0
    %1157 = vmatprep.subr.bf16.mxu0 0
    %1158 = vmatpush1.bf16.msra.mxu0 0
    %1159 = vmatprep.subr.bf16.mxu0 0
    %1160 = vmatpush1.bf16.msra.mxu0 0
    %1161 = vmatprep.subr.bf16.mxu0 0
    %1162 = vmatpush1.bf16.msra.mxu0 0
    %1163 = vmatprep.subr.bf16.mxu0 0
    %1164 = vmatpush1.bf16.msra.mxu0 0
    %1165 = vmatprep.subr.bf16.mxu0 0
    %1166 = vmatpush1.bf16.msra.mxu0 0
    %1167 = vmatprep.subr.bf16.mxu0 0
    %1168 = vmatpush1.bf16.msra.mxu0 0
    %1169 = vmatprep.subr.bf16.mxu0 0
    %1170 = vmatpush1.bf16.msra.mxu0 0
    %1171 = vmatprep.subr.bf16.mxu0 0
    %1172 = vmatpush1.bf16.msra.mxu0 %v1155
    %1173 = vmatprep.subr.bf16.mxu0 0
    %1174 = vmatpush2.bf16.msra.mxu0 0
    %1175 = vmatprep.subr.bf16.mxu0 0
    %1176 = vmatpush2.bf16.msra.mxu0 0
    %1177 = vmatprep.subr.bf16.mxu0 0
    %1178 = vmatpush2.bf16.msra.mxu0 0
    %1179 = vmatprep.subr.bf16.mxu0 0
    %1180 = vmatpush2.bf16.msra.mxu0 0
    %1181 = vmatprep.subr.bf16.mxu0 0
    %1182 = vmatpush2.bf16.msra.mxu0 0
    %1183 = vmatprep.subr.bf16.mxu0 0
    %1184 = vmatpush2.bf16.msra.mxu0 0
    %1185 = vmatprep.subr.bf16.mxu0 0
    %1186 = vmatpush2.bf16.msra.mxu0 0
    %1187 = vmatprep.subr.bf16.mxu0 0
    %1188 = vmatpush2.bf16.msra.mxu0 0
    %1189 = vmatprep.mubr.bf16.mxu0 0
    %1190 = vmatmul.mubr.bf16.gmra.mxu0 %v1152
    %v1191 = vpop.f32.mrf.mxu0
    %v1192 = vadd.f32 0.0, %v1191
    %v1193 = vpop.f32.mrf.mxu0
    %v1194 = vpop.f32.mrf.mxu0
    %v1195 = vpop.f32.mrf.mxu0
    %1196 = vdwg.mxu0
    %v1197 = vpack.c.bf16 %v904, %v856
    %v1198 = vpack.c.bf16 %v1000, %v952
    %v1199 = vpack.c.bf16 %v1096, %v1048
    %v1200 = vpack.c.bf16 %v1192, %v1144
    %v1201 = vld [vmem:[%s5] sm:$0xf]
    %v1202 = vld [vmem:[%s5 + $0x4] sm:$0xf]
    %v1203 = vld [vmem:[%s5 + $0x8] sm:$0xf]
    %v1204 = vld [vmem:[%s5 + $0xc] sm:$0xf]
    %v1206 = vsel %vm318, %v1197, 0
    %v1209 = vsel %vm817, %v1201, 0
    %1211 = vmatprep.subr.bf16.mxu0 0
    %1212 = vmatpush1.bf16.msra.mxu0 0
    %1213 = vmatprep.subr.bf16.mxu0 0
    %1214 = vmatpush1.bf16.msra.mxu0 0
    %1215 = vmatprep.subr.bf16.mxu0 0
    %1216 = vmatpush1.bf16.msra.mxu0 0
    %1217 = vmatprep.subr.bf16.mxu0 0
    %1218 = vmatpush1.bf16.msra.mxu0 0
    %1219 = vmatprep.subr.bf16.mxu0 0
    %1220 = vmatpush1.bf16.msra.mxu0 0
    %1221 = vmatprep.subr.bf16.mxu0 0
    %1222 = vmatpush1.bf16.msra.mxu0 0
    %1223 = vmatprep.subr.bf16.mxu0 0
    %1224 = vmatpush1.bf16.msra.mxu0 0
    %1225 = vmatprep.subr.bf16.mxu0 0
    %1226 = vmatpush1.bf16.msra.mxu0 %v1209
    %1227 = vmatprep.subr.bf16.mxu0 0
    %1228 = vmatpush2.bf16.msra.mxu0 0
    %1229 = vmatprep.subr.bf16.mxu0 0
    %1230 = vmatpush2.bf16.msra.mxu0 0
    %1231 = vmatprep.subr.bf16.mxu0 0
    %1232 = vmatpush2.bf16.msra.mxu0 0
    %1233 = vmatprep.subr.bf16.mxu0 0
    %1234 = vmatpush2.bf16.msra.mxu0 0
    %1235 = vmatprep.subr.bf16.mxu0 0
    %1236 = vmatpush2.bf16.msra.mxu0 0
    %1237 = vmatprep.subr.bf16.mxu0 0
    %1238 = vmatpush2.bf16.msra.mxu0 0
    %1239 = vmatprep.subr.bf16.mxu0 0
    %1240 = vmatpush2.bf16.msra.mxu0 0
    %1241 = vmatprep.subr.bf16.mxu0 0
    %1242 = vmatpush2.bf16.msra.mxu0 0
    %1243 = vmatprep.mubr.bf16.mxu0 0
    %1244 = vmatmul.mubr.bf16.gmra.mxu0 %v1206
    %v1245 = vpop.f32.mrf.mxu0
    %v1246 = vadd.f32 0.0, %v1245
    %v1247 = vpop.f32.mrf.mxu0
    %v1248 = vpop.f32.mrf.mxu0
    %v1249 = vadd.f32 0.0, %v1248
    %v1250 = vpop.f32.mrf.mxu0
    %1251 = vdwg.mxu0
    %v1253 = vsel %vm318, %v1198, 0
    %v1256 = vsel %vm817, %v1202, 0
    %1258 = vmatprep.subr.bf16.mxu0 0
    %1259 = vmatpush1.bf16.msra.mxu0 0
    %1260 = vmatprep.subr.bf16.mxu0 0
    %1261 = vmatpush1.bf16.msra.mxu0 0
    %1262 = vmatprep.subr.bf16.mxu0 0
    %1263 = vmatpush1.bf16.msra.mxu0 0
    %1264 = vmatprep.subr.bf16.mxu0 0
    %1265 = vmatpush1.bf16.msra.mxu0 0
    %1266 = vmatprep.subr.bf16.mxu0 0
    %1267 = vmatpush1.bf16.msra.mxu0 0
    %1268 = vmatprep.subr.bf16.mxu0 0
    %1269 = vmatpush1.bf16.msra.mxu0 0
    %1270 = vmatprep.subr.bf16.mxu0 0
    %1271 = vmatpush1.bf16.msra.mxu0 0
    %1272 = vmatprep.subr.bf16.mxu0 0
    %1273 = vmatpush1.bf16.msra.mxu0 %v1256
    %1274 = vmatprep.subr.bf16.mxu0 0
    %1275 = vmatpush2.bf16.msra.mxu0 0
    %1276 = vmatprep.subr.bf16.mxu0 0
    %1277 = vmatpush2.bf16.msra.mxu0 0
    %1278 = vmatprep.subr.bf16.mxu0 0
    %1279 = vmatpush2.bf16.msra.mxu0 0
    %1280 = vmatprep.subr.bf16.mxu0 0
    %1281 = vmatpush2.bf16.msra.mxu0 0
    %1282 = vmatprep.subr.bf16.mxu0 0
    %1283 = vmatpush2.bf16.msra.mxu0 0
    %1284 = vmatprep.subr.bf16.mxu0 0
    %1285 = vmatpush2.bf16.msra.mxu0 0
    %1286 = vmatprep.subr.bf16.mxu0 0
    %1287 = vmatpush2.bf16.msra.mxu0 0
    %1288 = vmatprep.subr.bf16.mxu0 0
    %1289 = vmatpush2.bf16.msra.mxu0 0
    %1290 = vmatprep.mubr.bf16.mxu0 0
    %1291 = vmatmul.mubr.bf16.gmra.mxu0 %v1253
    %v1292 = vpop.f32.mrf.mxu0
    %v1293 = vadd.f32 0.0, %v1292
    %v1294 = vpop.f32.mrf.mxu0
    %v1295 = vpop.f32.mrf.mxu0
    %v1296 = vadd.f32 0.0, %v1295
    %v1297 = vpop.f32.mrf.mxu0
    %1298 = vdwg.mxu0
    %v1300 = vsel %vm318, %v1199, 0
    %v1303 = vsel %vm817, %v1203, 0
    %1305 = vmatprep.subr.bf16.mxu0 0
    %1306 = vmatpush1.bf16.msra.mxu0 0
    %1307 = vmatprep.subr.bf16.mxu0 0
    %1308 = vmatpush1.bf16.msra.mxu0 0
    %1309 = vmatprep.subr.bf16.mxu0 0
    %1310 = vmatpush1.bf16.msra.mxu0 0
    %1311 = vmatprep.subr.bf16.mxu0 0
    %1312 = vmatpush1.bf16.msra.mxu0 0
    %1313 = vmatprep.subr.bf16.mxu0 0
    %1314 = vmatpush1.bf16.msra.mxu0 0
    %1315 = vmatprep.subr.bf16.mxu0 0
    %1316 = vmatpush1.bf16.msra.mxu0 0
    %1317 = vmatprep.subr.bf16.mxu0 0
    %1318 = vmatpush1.bf16.msra.mxu0 0
    %1319 = vmatprep.subr.bf16.mxu0 0
    %1320 = vmatpush1.bf16.msra.mxu0 %v1303
    %1321 = vmatprep.subr.bf16.mxu0 0
    %1322 = vmatpush2.bf16.msra.mxu0 0
    %1323 = vmatprep.subr.bf16.mxu0 0
    %1324 = vmatpush2.bf16.msra.mxu0 0
    %1325 = vmatprep.subr.bf16.mxu0 0
    %1326 = vmatpush2.bf16.msra.mxu0 0
    %1327 = vmatprep.subr.bf16.mxu0 0
    %1328 = vmatpush2.bf16.msra.mxu0 0
    %1329 = vmatprep.subr.bf16.mxu0 0
    %1330 = vmatpush2.bf16.msra.mxu0 0
    %1331 = vmatprep.subr.bf16.mxu0 0
    %1332 = vmatpush2.bf16.msra.mxu0 0
    %1333 = vmatprep.subr.bf16.mxu0 0
    %1334 = vmatpush2.bf16.msra.mxu0 0
    %1335 = vmatprep.subr.bf16.mxu0 0
    %1336 = vmatpush2.bf16.msra.mxu0 0
    %1337 = vmatprep.mubr.bf16.mxu0 0
    %1338 = vmatmul.mubr.bf16.gmra.mxu0 %v1300
    %v1339 = vpop.f32.mrf.mxu0
    %v1340 = vadd.f32 0.0, %v1339
    %v1341 = vpop.f32.mrf.mxu0
    %v1342 = vpop.f32.mrf.mxu0
    %v1343 = vadd.f32 0.0, %v1342
    %v1344 = vpop.f32.mrf.mxu0
    %1345 = vdwg.mxu0
    %v1347 = vsel %vm318, %v1200, 0
    %v1350 = vsel %vm817, %v1204, 0
    %1352 = vmatprep.subr.bf16.mxu0 0
    %1353 = vmatpush1.bf16.msra.mxu0 0
    %1354 = vmatprep.subr.bf16.mxu0 0
    %1355 = vmatpush1.bf16.msra.mxu0 0
    %1356 = vmatprep.subr.bf16.mxu0 0
    %1357 = vmatpush1.bf16.msra.mxu0 0
    %1358 = vmatprep.subr.bf16.mxu0 0
    %1359 = vmatpush1.bf16.msra.mxu0 0
    %1360 = vmatprep.subr.bf16.mxu0 0
    %1361 = vmatpush1.bf16.msra.mxu0 0
    %1362 = vmatprep.subr.bf16.mxu0 0
    %1363 = vmatpush1.bf16.msra.mxu0 0
    %1364 = vmatprep.subr.bf16.mxu0 0
    %1365 = vmatpush1.bf16.msra.mxu0 0
    %1366 = vmatprep.subr.bf16.mxu0 0
    %1367 = vmatpush1.bf16.msra.mxu0 %v1350
    %1368 = vmatprep.subr.bf16.mxu0 0
    %1369 = vmatpush2.bf16.msra.mxu0 0
    %1370 = vmatprep.subr.bf16.mxu0 0
    %1371 = vmatpush2.bf16.msra.mxu0 0
    %1372 = vmatprep.subr.bf16.mxu0 0
    %1373 = vmatpush2.bf16.msra.mxu0 0
    %1374 = vmatprep.subr.bf16.mxu0 0
    %1375 = vmatpush2.bf16.msra.mxu0 0
    %1376 = vmatprep.subr.bf16.mxu0 0
    %1377 = vmatpush2.bf16.msra.mxu0 0
    %1378 = vmatprep.subr.bf16.mxu0 0
    %1379 = vmatpush2.bf16.msra.mxu0 0
    %1380 = vmatprep.subr.bf16.mxu0 0
    %1381 = vmatpush2.bf16.msra.mxu0 0
    %1382 = vmatprep.subr.bf16.mxu0 0
    %1383 = vmatpush2.bf16.msra.mxu0 0
    %1384 = vmatprep.mubr.bf16.mxu0 0
    %1385 = vmatmul.mubr.bf16.gmra.mxu0 %v1347
    %v1386 = vpop.f32.mrf.mxu0
    %v1387 = vadd.f32 0.0, %v1386
    %v1388 = vpop.f32.mrf.mxu0
    %v1389 = vpop.f32.mrf.mxu0
    %v1390 = vadd.f32 0.0, %v1389
    %v1391 = vpop.f32.mrf.mxu0
    %1392 = vdwg.mxu0
    %v1393 = vsel %vm242, %v1246, 0.0
    %v1394 = vsel %vm242, %v1293, 0.0
    %v1395 = vadd.f32 %v1393, %v1394
    %v1396 = vsel %vm242, %v1340, 0.0
    %v1397 = vadd.f32 %v1395, %v1396
    %v1398 = vsel %vm242, %v1387, 0.0
    %v1399 = vadd.f32 %v1397, %v1398
    %v1400 = vsel %vm242, %v1249, 0.0
    %v1401 = vsel %vm242, %v1296, 0.0
    %v1402 = vadd.f32 %v1400, %v1401
    %v1403 = vsel %vm242, %v1343, 0.0
    %v1404 = vadd.f32 %v1402, %v1403
    %v1405 = vsel %vm242, %v1390, 0.0
    %v1406 = vadd.f32 %v1404, %v1405
    %v1407 = vld [vmem:[#allocation10] sm:$0x1]
    %v1409 = vlaneseq
    %v1410 = vshrl.u32 %v1409, 7
    %v1411 = vsub.s32 0, %v1410
    %v1412 = vrot.slane %v1407, %v1411
    %v1414 = vadd.f32 %v1399, %v1412
    %v1415 = vadd.f32 %v1406, %v1412
    %v1416 = vadd.f32 %v1414, %v212
    %v1417 = vadd.f32 %v1415, %v215
    %s1418 = scalar_lea.vmem [#allocation10], 2
    %v1419 = vld [vmem:[%s1418] sm:$0x1]
    %s1420 = scalar_lea.vmem [#allocation10], 3
    %v1421 = vld [vmem:[%s1420] sm:$0x1]
    %v1422 = vsel %vm242, %v1416, 0.0
    %1423 = vadd.xlane.f32.xlu0 %v1422
    %v1424 = vpop.xlane.xlu0 %1423
    %v1425 = vsel %vm242, %v1417, 0.0
    %1426 = vadd.xlane.f32.xlu0 %v1425
    %v1427 = vpop.xlane.xlu0 %1426
    %v1428 = vrcp.pop 32.0
    %v1429 = vmul.f32 %v1424, %v1428
    %v1430 = vmul.f32 %v1427, %v1428
    %v1431 = vsub.f32 %v1416, %v1429
    %v1432 = vsub.f32 %v1417, %v1430
    %v1433 = vmul.f32 %v1431, %v1431
    %v1434 = vmul.f32 %v1432, %v1432
    %v1435 = vsel %vm242, %v1433, 0.0
    %1436 = vadd.xlane.f32.xlu0 %v1435
    %v1437 = vpop.xlane.xlu0 %1436
    %v1438 = vsel %vm242, %v1434, 0.0
    %1439 = vadd.xlane.f32.xlu0 %v1438
    %v1440 = vpop.xlane.xlu0 %1439
    %v1441 = vmul.f32 %v1437, %v1428
    %v1442 = vmul.f32 %v1440, %v1428
    %v1443 = vadd.f32 %v1441, 1e-05
    %v1444 = vadd.f32 %v1442, 1e-05
    %v1445 = vrsqrt.pop %v1443
    %v1446 = vrsqrt.pop %v1444
    %v1447 = vmul.f32 %v1431, %v1445
    %v1448 = vmul.f32 %v1432, %v1446
    %v1450 = vlaneseq
    %v1451 = vshrl.u32 %v1450, 7
    %v1452 = vsub.s32 0, %v1451
    %v1453 = vrot.slane %v1419, %v1452
    %v1455 = vmul.f32 %v1447, %v1453
    %v1456 = vmul.f32 %v1448, %v1453
    %v1458 = vlaneseq
    %v1459 = vshrl.u32 %v1458, 7
    %v1460 = vsub.s32 0, %v1459
    %v1461 = vrot.slane %v1421, %v1460
    %v1463 = vadd.f32 %v1455, %v1461
    %v1464 = vadd.f32 %v1456, %v1461
    %v1465 = vpack.c.bf16 %v1464, %v1463
    %v1466 = vld [vmem:[#allocation11] sm:$0xff]
    %v1467 = vld [vmem:[#allocation11 + $0x8] sm:$0xff]
    %v1468 = vld [vmem:[#allocation11 + $0x10] sm:$0xff]
    %v1469 = vld [vmem:[#allocation11 + $0x18] sm:$0xff]
    %v1470 = vld [vmem:[#allocation11 + $0x20] sm:$0xff]
    %v1471 = vld [vmem:[#allocation11 + $0x28] sm:$0xff]
    %v1472 = vld [vmem:[#allocation11 + $0x30] sm:$0xff]
    %v1473 = vld [vmem:[#allocation11 + $0x38] sm:$0xff]
    %v1474 = vld [vmem:[#allocation11 + $0x40] sm:$0xff]
    %v1475 = vld [vmem:[#allocation11 + $0x48] sm:$0xff]
    %v1476 = vld [vmem:[#allocation11 + $0x50] sm:$0xff]
    %v1477 = vld [vmem:[#allocation11 + $0x58] sm:$0xff]
    %v1478 = vld [vmem:[#allocation11 + $0x60] sm:$0xff]
    %v1479 = vld [vmem:[#allocation11 + $0x68] sm:$0xff]
    %v1480 = vld [vmem:[#allocation11 + $0x70] sm:$0xff]
    %v1481 = vld [vmem:[#allocation11 + $0x78] sm:$0xff]
    %v1482 = vld [vmem:[#allocation11 + $0x80] sm:$0xff]
    %v1483 = vld [vmem:[#allocation11 + $0x88] sm:$0xff]
    %v1484 = vld [vmem:[#allocation11 + $0x90] sm:$0xff]
    %v1485 = vld [vmem:[#allocation11 + $0x98] sm:$0xff]
    %v1486 = vld [vmem:[#allocation11 + $0xa0] sm:$0xff]
    %v1487 = vld [vmem:[#allocation11 + $0xa8] sm:$0xff]
    %v1488 = vld [vmem:[#allocation11 + $0xb0] sm:$0xff]
    %v1489 = vld [vmem:[#allocation11 + $0xb8] sm:$0xff]
    %v1490 = vld [vmem:[#allocation11 + $0xc0] sm:$0xff]
    %v1491 = vld [vmem:[#allocation11 + $0xc8] sm:$0xff]
    %v1492 = vld [vmem:[#allocation11 + $0xd0] sm:$0xff]
    %v1493 = vld [vmem:[#allocation11 + $0xd8] sm:$0xff]
    %v1494 = vld [vmem:[#allocation11 + $0xe0] sm:$0xff]
    %v1495 = vld [vmem:[#allocation11 + $0xe8] sm:$0xff]
    %v1496 = vld [vmem:[#allocation11 + $0xf0] sm:$0xff]
    %v1497 = vld [vmem:[#allocation11 + $0xf8] sm:$0xff]
    %v1498 = vld [vmem:[#allocation13] sm:$0xff]
    %v1499 = vld [vmem:[#allocation13 + $0x8] sm:$0xff]
    %v1502 = vlaneseq
    %v1503 = vshrl.u32 %v1502, 7
    %v1504 = vsub.s32 0, %v1503
    %v1505 = vrot.slane %v1498, %v1504
    %v1506 = vlaneseq
    %v1507 = vshrl.u32 %v1506, 7
    %v1508 = vsub.s32 1, %v1507
    %v1509 = vrot.slane %v1498, %v1508
    %v1510 = vlaneseq
    %v1511 = vshrl.u32 %v1510, 7
    %v1512 = vsub.s32 2, %v1511
    %v1513 = vrot.slane %v1498, %v1512
    %v1514 = vlaneseq
    %v1515 = vshrl.u32 %v1514, 7
    %v1516 = vsub.s32 3, %v1515
    %v1517 = vrot.slane %v1498, %v1516
    %v1518 = vlaneseq
    %v1519 = vshrl.u32 %v1518, 7
    %v1520 = vsub.s32 4, %v1519
    %v1521 = vrot.slane %v1498, %v1520
    %v1522 = vlaneseq
    %v1523 = vshrl.u32 %v1522, 7
    %v1524 = vsub.s32 5, %v1523
    %v1525 = vrot.slane %v1498, %v1524
    %v1526 = vlaneseq
    %v1527 = vshrl.u32 %v1526, 7
    %v1528 = vsub.s32 6, %v1527
    %v1529 = vrot.slane %v1498, %v1528
    %v1530 = vlaneseq
    %v1531 = vshrl.u32 %v1530, 7
    %v1532 = vsub.s32 7, %v1531
    %v1533 = vrot.slane %v1498, %v1532
    %v1534 = vlaneseq
    %v1535 = vshrl.u32 %v1534, 7
    %v1536 = vsub.s32 0, %v1535
    %v1537 = vrot.slane %v1499, %v1536
    %v1538 = vlaneseq
    %v1539 = vshrl.u32 %v1538, 7
    %v1540 = vsub.s32 1, %v1539
    %v1541 = vrot.slane %v1499, %v1540
    %v1542 = vlaneseq
    %v1543 = vshrl.u32 %v1542, 7
    %v1544 = vsub.s32 2, %v1543
    %v1545 = vrot.slane %v1499, %v1544
    %v1546 = vlaneseq
    %v1547 = vshrl.u32 %v1546, 7
    %v1548 = vsub.s32 3, %v1547
    %v1549 = vrot.slane %v1499, %v1548
    %v1550 = vlaneseq
    %v1551 = vshrl.u32 %v1550, 7
    %v1552 = vsub.s32 4, %v1551
    %v1553 = vrot.slane %v1499, %v1552
    %v1554 = vlaneseq
    %v1555 = vshrl.u32 %v1554, 7
    %v1556 = vsub.s32 5, %v1555
    %v1557 = vrot.slane %v1499, %v1556
    %v1558 = vlaneseq
    %v1559 = vshrl.u32 %v1558, 7
    %v1560 = vsub.s32 6, %v1559
    %v1561 = vrot.slane %v1499, %v1560
    %v1562 = vlaneseq
    %v1563 = vshrl.u32 %v1562, 7
    %v1564 = vsub.s32 7, %v1563
    %v1565 = vrot.slane %v1499, %v1564
    %v1614 = vunpack.c.l.b16 %v1466
    %v1615 = vunpack.c.h.b16 %v1466
    %v1616 = vunpack.c.l.b16 %v1467
    %v1617 = vunpack.c.h.b16 %v1467
    %v1618 = vunpack.c.l.b16 %v1468
    %v1619 = vunpack.c.h.b16 %v1468
    %v1620 = vunpack.c.l.b16 %v1469
    %v1621 = vunpack.c.h.b16 %v1469
    %v1622 = vunpack.c.l.b16 %v1470
    %v1623 = vunpack.c.h.b16 %v1470
    %v1624 = vunpack.c.l.b16 %v1471
    %v1625 = vunpack.c.h.b16 %v1471
    %v1626 = vunpack.c.l.b16 %v1472
    %v1627 = vunpack.c.h.b16 %v1472
    %v1628 = vunpack.c.l.b16 %v1473
    %v1629 = vunpack.c.h.b16 %v1473
    %v1630 = vunpack.c.l.b16 %v1474
    %v1631 = vunpack.c.h.b16 %v1474
    %v1632 = vunpack.c.l.b16 %v1475
    %v1633 = vunpack.c.h.b16 %v1475
    %v1634 = vunpack.c.l.b16 %v1476
    %v1635 = vunpack.c.h.b16 %v1476
    %v1636 = vunpack.c.l.b16 %v1477
    %v1637 = vunpack.c.h.b16 %v1477
    %v1638 = vunpack.c.l.b16 %v1478
    %v1639 = vunpack.c.h.b16 %v1478
    %v1640 = vunpack.c.l.b16 %v1479
    %v1641 = vunpack.c.h.b16 %v1479
    %v1642 = vunpack.c.l.b16 %v1480
    %v1643 = vunpack.c.h.b16 %v1480
    %v1644 = vunpack.c.l.b16 %v1481
    %v1645 = vunpack.c.h.b16 %v1481
    %v1646 = vunpack.c.l.b16 %v1482
    %v1647 = vunpack.c.h.b16 %v1482
    %v1648 = vunpack.c.l.b16 %v1483
    %v1649 = vunpack.c.h.b16 %v1483
    %v1650 = vunpack.c.l.b16 %v1484
    %v1651 = vunpack.c.h.b16 %v1484
    %v1652 = vunpack.c.l.b16 %v1485
    %v1653 = vunpack.c.h.b16 %v1485
    %v1654 = vunpack.c.l.b16 %v1486
    %v1655 = vunpack.c.h.b16 %v1486
    %v1656 = vunpack.c.l.b16 %v1487
    %v1657 = vunpack.c.h.b16 %v1487
    %v1658 = vunpack.c.l.b16 %v1488
    %v1659 = vunpack.c.h.b16 %v1488
    %v1660 = vunpack.c.l.b16 %v1489
    %v1661 = vunpack.c.h.b16 %v1489
    %v1662 = vunpack.c.l.b16 %v1490
    %v1663 = vunpack.c.h.b16 %v1490
    %v1664 = vunpack.c.l.b16 %v1491
    %v1665 = vunpack.c.h.b16 %v1491
    %v1666 = vunpack.c.l.b16 %v1492
    %v1667 = vunpack.c.h.b16 %v1492
    %v1668 = vunpack.c.l.b16 %v1493
    %v1669 = vunpack.c.h.b16 %v1493
    %v1670 = vunpack.c.l.b16 %v1494
    %v1671 = vunpack.c.h.b16 %v1494
    %v1672 = vunpack.c.l.b16 %v1495
    %v1673 = vunpack.c.h.b16 %v1495
    %v1674 = vunpack.c.l.b16 %v1496
    %v1675 = vunpack.c.h.b16 %v1496
    %v1676 = vunpack.c.l.b16 %v1497
    %v1677 = vunpack.c.h.b16 %v1497
    %v1678 = vpack.c.b16 %v1630, %v1614
    %v1679 = vpack.c.b16 %v1631, %v1615
    %v1680 = vpack.c.b16 %v1632, %v1616
    %v1681 = vpack.c.b16 %v1633, %v1617
    %v1682 = vpack.c.b16 %v1634, %v1618
    %v1683 = vpack.c.b16 %v1635, %v1619
    %v1684 = vpack.c.b16 %v1636, %v1620
    %v1685 = vpack.c.b16 %v1637, %v1621
    %v1686 = vpack.c.b16 %v1638, %v1622
    %v1687 = vpack.c.b16 %v1639, %v1623
    %v1688 = vpack.c.b16 %v1640, %v1624
    %v1689 = vpack.c.b16 %v1641, %v1625
    %v1690 = vpack.c.b16 %v1642, %v1626
    %v1691 = vpack.c.b16 %v1643, %v1627
    %v1692 = vpack.c.b16 %v1644, %v1628
    %v1693 = vpack.c.b16 %v1645, %v1629
    %v1694 = vpack.c.b16 %v1662, %v1646
    %v1695 = vpack.c.b16 %v1663, %v1647
    %v1696 = vpack.c.b16 %v1664, %v1648
    %v1697 = vpack.c.b16 %v1665, %v1649
    %v1698 = vpack.c.b16 %v1666, %v1650
    %v1699 = vpack.c.b16 %v1667, %v1651
    %v1700 = vpack.c.b16 %v1668, %v1652
    %v1701 = vpack.c.b16 %v1669, %v1653
    %v1702 = vpack.c.b16 %v1670, %v1654
    %v1703 = vpack.c.b16 %v1671, %v1655
    %v1704 = vpack.c.b16 %v1672, %v1656
    %v1705 = vpack.c.b16 %v1673, %v1657
    %v1706 = vpack.c.b16 %v1674, %v1658
    %v1707 = vpack.c.b16 %v1675, %v1659
    %v1708 = vpack.c.b16 %v1676, %v1660
    %v1709 = vpack.c.b16 %v1677, %v1661
    %v1743 = vsel %vm242, %v1465, 0
    %1745 = vmatprep.subr.bf16.mxu0 0
    %1746 = vmatpush1.bf16.msra.mxu0 0
    %1747 = vmatprep.subr.bf16.mxu0 0
    %1748 = vmatpush1.bf16.msra.mxu0 0
    %1749 = vmatprep.subr.bf16.mxu0 0
    %1750 = vmatpush1.bf16.msra.mxu0 0
    %1751 = vmatprep.subr.bf16.mxu0 0
    %1752 = vmatpush1.bf16.msra.mxu0 0
    %1753 = vmatprep.subr.bf16.mxu0 0
    %1754 = vmatpush1.bf16.msra.mxu0 0
    %1755 = vmatprep.subr.bf16.mxu0 0
    %1756 = vmatpush1.bf16.msra.mxu0 0
    %1757 = vmatprep.subr.bf16.mxu0 %v1695
    %1758 = vmatpush1.bf16.msra.mxu0 %v1694
    %1759 = vmatprep.subr.bf16.mxu0 %v1679
    %1760 = vmatpush1.bf16.msra.mxu0 %v1678
    %1761 = vmatprep.subr.bf16.mxu0 0
    %1762 = vmatpush2.bf16.msra.mxu0 0
    %1763 = vmatprep.subr.bf16.mxu0 0
    %1764 = vmatpush2.bf16.msra.mxu0 0
    %1765 = vmatprep.subr.bf16.mxu0 0
    %1766 = vmatpush2.bf16.msra.mxu0 0
    %1767 = vmatprep.subr.bf16.mxu0 0
    %1768 = vmatpush2.bf16.msra.mxu0 0
    %1769 = vmatprep.subr.bf16.mxu0 0
    %1770 = vmatpush2.bf16.msra.mxu0 0
    %1771 = vmatprep.subr.bf16.mxu0 0
    %1772 = vmatpush2.bf16.msra.mxu0 0
    %1773 = vmatprep.subr.bf16.mxu0 0
    %1774 = vmatpush2.bf16.msra.mxu0 0
    %1775 = vmatprep.subr.bf16.mxu0 0
    %1776 = vmatpush2.bf16.msra.mxu0 0
    %1777 = vmatprep.mubr.bf16.mxu0 0
    %1778 = vmatmul.mubr.bf16.gmra.mxu0 %v1743
    %v1779 = vpop.f32.mrf.mxu0
    %v1780 = vadd.f32 %v1505, %v1779
    %v1781 = vpop.f32.mrf.mxu0
    %v1782 = vadd.f32 %v1509, %v1781
    %v1783 = vpop.f32.mrf.mxu0
    %v1784 = vadd.f32 %v1505, %v1783
    %v1785 = vpop.f32.mrf.mxu0
    %v1786 = vadd.f32 %v1509, %v1785
    %1787 = vdwg.mxu0
    %1788 = vmatprep.subr.bf16.mxu0 0
    %1789 = vmatpush1.bf16.msra.mxu0 0
    %1790 = vmatprep.subr.bf16.mxu0 0
    %1791 = vmatpush1.bf16.msra.mxu0 0
    %1792 = vmatprep.subr.bf16.mxu0 0
    %1793 = vmatpush1.bf16.msra.mxu0 0
    %1794 = vmatprep.subr.bf16.mxu0 0
    %1795 = vmatpush1.bf16.msra.mxu0 0
    %1796 = vmatprep.subr.bf16.mxu0 0
    %1797 = vmatpush1.bf16.msra.mxu0 0
    %1798 = vmatprep.subr.bf16.mxu0 0
    %1799 = vmatpush1.bf16.msra.mxu0 0
    %1800 = vmatprep.subr.bf16.mxu0 %v1697
    %1801 = vmatpush1.bf16.msra.mxu0 %v1696
    %1802 = vmatprep.subr.bf16.mxu0 %v1681
    %1803 = vmatpush1.bf16.msra.mxu0 %v1680
    %1804 = vmatprep.subr.bf16.mxu0 0
    %1805 = vmatpush2.bf16.msra.mxu0 0
    %1806 = vmatprep.subr.bf16.mxu0 0
    %1807 = vmatpush2.bf16.msra.mxu0 0
    %1808 = vmatprep.subr.bf16.mxu0 0
    %1809 = vmatpush2.bf16.msra.mxu0 0
    %1810 = vmatprep.subr.bf16.mxu0 0
    %1811 = vmatpush2.bf16.msra.mxu0 0
    %1812 = vmatprep.subr.bf16.mxu0 0
    %1813 = vmatpush2.bf16.msra.mxu0 0
    %1814 = vmatprep.subr.bf16.mxu0 0
    %1815 = vmatpush2.bf16.msra.mxu0 0
    %1816 = vmatprep.subr.bf16.mxu0 0
    %1817 = vmatpush2.bf16.msra.mxu0 0
    %1818 = vmatprep.subr.bf16.mxu0 0
    %1819 = vmatpush2.bf16.msra.mxu0 0
    %1820 = vmatprep.mubr.bf16.mxu0 0
    %1821 = vmatmul.mubr.bf16.gmra.mxu0 %v1743
    %v1822 = vpop.f32.mrf.mxu0
    %v1823 = vadd.f32 %v1513, %v1822
    %v1824 = vpop.f32.mrf.mxu0
    %v1825 = vadd.f32 %v1517, %v1824
    %v1826 = vpop.f32.mrf.mxu0
    %v1827 = vadd.f32 %v1513, %v1826
    %v1828 = vpop.f32.mrf.mxu0
    %v1829 = vadd.f32 %v1517, %v1828
    %1830 = vdwg.mxu0
    %1831 = vmatprep.subr.bf16.mxu0 0
    %1832 = vmatpush1.bf16.msra.mxu0 0
    %1833 = vmatprep.subr.bf16.mxu0 0
    %1834 = vmatpush1.bf16.msra.mxu0 0
    %1835 = vmatprep.subr.bf16.mxu0 0
    %1836 = vmatpush1.bf16.msra.mxu0 0
    %1837 = vmatprep.subr.bf16.mxu0 0
    %1838 = vmatpush1.bf16.msra.mxu0 0
    %1839 = vmatprep.subr.bf16.mxu0 0
    %1840 = vmatpush1.bf16.msra.mxu0 0
    %1841 = vmatprep.subr.bf16.mxu0 0
    %1842 = vmatpush1.bf16.msra.mxu0 0
    %1843 = vmatprep.subr.bf16.mxu0 %v1699
    %1844 = vmatpush1.bf16.msra.mxu0 %v1698
    %1845 = vmatprep.subr.bf16.mxu0 %v1683
    %1846 = vmatpush1.bf16.msra.mxu0 %v1682
    %1847 = vmatprep.subr.bf16.mxu0 0
    %1848 = vmatpush2.bf16.msra.mxu0 0
    %1849 = vmatprep.subr.bf16.mxu0 0
    %1850 = vmatpush2.bf16.msra.mxu0 0
    %1851 = vmatprep.subr.bf16.mxu0 0
    %1852 = vmatpush2.bf16.msra.mxu0 0
    %1853 = vmatprep.subr.bf16.mxu0 0
    %1854 = vmatpush2.bf16.msra.mxu0 0
    %1855 = vmatprep.subr.bf16.mxu0 0
    %1856 = vmatpush2.bf16.msra.mxu0 0
    %1857 = vmatprep.subr.bf16.mxu0 0
    %1858 = vmatpush2.bf16.msra.mxu0 0
    %1859 = vmatprep.subr.bf16.mxu0 0
    %1860 = vmatpush2.bf16.msra.mxu0 0
    %1861 = vmatprep.subr.bf16.mxu0 0
    %1862 = vmatpush2.bf16.msra.mxu0 0
    %1863 = vmatprep.mubr.bf16.mxu0 0
    %1864 = vmatmul.mubr.bf16.gmra.mxu0 %v1743
    %v1865 = vpop.f32.mrf.mxu0
    %v1866 = vadd.f32 %v1521, %v1865
    %v1867 = vpop.f32.mrf.mxu0
    %v1868 = vadd.f32 %v1525, %v1867
    %v1869 = vpop.f32.mrf.mxu0
    %v1870 = vadd.f32 %v1521, %v1869
    %v1871 = vpop.f32.mrf.mxu0
    %v1872 = vadd.f32 %v1525, %v1871
    %1873 = vdwg.mxu0
    %1874 = vmatprep.subr.bf16.mxu0 0
    %1875 = vmatpush1.bf16.msra.mxu0 0
    %1876 = vmatprep.subr.bf16.mxu0 0
    %1877 = vmatpush1.bf16.msra.mxu0 0
    %1878 = vmatprep.subr.bf16.mxu0 0
    %1879 = vmatpush1.bf16.msra.mxu0 0
    %1880 = vmatprep.subr.bf16.mxu0 0
    %1881 = vmatpush1.bf16.msra.mxu0 0
    %1882 = vmatprep.subr.bf16.mxu0 0
    %1883 = vmatpush1.bf16.msra.mxu0 0
    %1884 = vmatprep.subr.bf16.mxu0 0
    %1885 = vmatpush1.bf16.msra.mxu0 0
    %1886 = vmatprep.subr.bf16.mxu0 %v1701
    %1887 = vmatpush1.bf16.msra.mxu0 %v1700
    %1888 = vmatprep.subr.bf16.mxu0 %v1685
    %1889 = vmatpush1.bf16.msra.mxu0 %v1684
    %1890 = vmatprep.subr.bf16.mxu0 0
    %1891 = vmatpush2.bf16.msra.mxu0 0
    %1892 = vmatprep.subr.bf16.mxu0 0
    %1893 = vmatpush2.bf16.msra.mxu0 0
    %1894 = vmatprep.subr.bf16.mxu0 0
    %1895 = vmatpush2.bf16.msra.mxu0 0
    %1896 = vmatprep.subr.bf16.mxu0 0
    %1897 = vmatpush2.bf16.msra.mxu0 0
    %1898 = vmatprep.subr.bf16.mxu0 0
    %1899 = vmatpush2.bf16.msra.mxu0 0
    %1900 = vmatprep.subr.bf16.mxu0 0
    %1901 = vmatpush2.bf16.msra.mxu0 0
    %1902 = vmatprep.subr.bf16.mxu0 0
    %1903 = vmatpush2.bf16.msra.mxu0 0
    %1904 = vmatprep.subr.bf16.mxu0 0
    %1905 = vmatpush2.bf16.msra.mxu0 0
    %1906 = vmatprep.mubr.bf16.mxu0 0
    %1907 = vmatmul.mubr.bf16.gmra.mxu0 %v1743
    %v1908 = vpop.f32.mrf.mxu0
    %v1909 = vadd.f32 %v1529, %v1908
    %v1910 = vpop.f32.mrf.mxu0
    %v1911 = vadd.f32 %v1533, %v1910
    %v1912 = vpop.f32.mrf.mxu0
    %v1913 = vadd.f32 %v1529, %v1912
    %v1914 = vpop.f32.mrf.mxu0
    %v1915 = vadd.f32 %v1533, %v1914
    %1916 = vdwg.mxu0
    %1917 = vmatprep.subr.bf16.mxu0 0
    %1918 = vmatpush1.bf16.msra.mxu0 0
    %1919 = vmatprep.subr.bf16.mxu0 0
    %1920 = vmatpush1.bf16.msra.mxu0 0
    %1921 = vmatprep.subr.bf16.mxu0 0
    %1922 = vmatpush1.bf16.msra.mxu0 0
    %1923 = vmatprep.subr.bf16.mxu0 0
    %1924 = vmatpush1.bf16.msra.mxu0 0
    %1925 = vmatprep.subr.bf16.mxu0 0
    %1926 = vmatpush1.bf16.msra.mxu0 0
    %1927 = vmatprep.subr.bf16.mxu0 0
    %1928 = vmatpush1.bf16.msra.mxu0 0
    %1929 = vmatprep.subr.bf16.mxu0 %v1703
    %1930 = vmatpush1.bf16.msra.mxu0 %v1702
    %1931 = vmatprep.subr.bf16.mxu0 %v1687
    %1932 = vmatpush1.bf16.msra.mxu0 %v1686
    %1933 = vmatprep.subr.bf16.mxu0 0
    %1934 = vmatpush2.bf16.msra.mxu0 0
    %1935 = vmatprep.subr.bf16.mxu0 0
    %1936 = vmatpush2.bf16.msra.mxu0 0
    %1937 = vmatprep.subr.bf16.mxu0 0
    %1938 = vmatpush2.bf16.msra.mxu0 0
    %1939 = vmatprep.subr.bf16.mxu0 0
    %1940 = vmatpush2.bf16.msra.mxu0 0
    %1941 = vmatprep.subr.bf16.mxu0 0
    %1942 = vmatpush2.bf16.msra.mxu0 0
    %1943 = vmatprep.subr.bf16.mxu0 0
    %1944 = vmatpush2.bf16.msra.mxu0 0
    %1945 = vmatprep.subr.bf16.mxu0 0
    %1946 = vmatpush2.bf16.msra.mxu0 0
    %1947 = vmatprep.subr.bf16.mxu0 0
    %1948 = vmatpush2.bf16.msra.mxu0 0
    %1949 = vmatprep.mubr.bf16.mxu0 0
    %1950 = vmatmul.mubr.bf16.gmra.mxu0 %v1743
    %v1951 = vpop.f32.mrf.mxu0
    %v1952 = vadd.f32 %v1537, %v1951
    %v1953 = vpop.f32.mrf.mxu0
    %v1954 = vadd.f32 %v1541, %v1953
    %v1955 = vpop.f32.mrf.mxu0
    %v1956 = vadd.f32 %v1537, %v1955
    %v1957 = vpop.f32.mrf.mxu0
    %v1958 = vadd.f32 %v1541, %v1957
    %1959 = vdwg.mxu0
    %1960 = vmatprep.subr.bf16.mxu0 0
    %1961 = vmatpush1.bf16.msra.mxu0 0
    %1962 = vmatprep.subr.bf16.mxu0 0
    %1963 = vmatpush1.bf16.msra.mxu0 0
    %1964 = vmatprep.subr.bf16.mxu0 0
    %1965 = vmatpush1.bf16.msra.mxu0 0
    %1966 = vmatprep.subr.bf16.mxu0 0
    %1967 = vmatpush1.bf16.msra.mxu0 0
    %1968 = vmatprep.subr.bf16.mxu0 0
    %1969 = vmatpush1.bf16.msra.mxu0 0
    %1970 = vmatprep.subr.bf16.mxu0 0
    %1971 = vmatpush1.bf16.msra.mxu0 0
    %1972 = vmatprep.subr.bf16.mxu0 %v1705
    %1973 = vmatpush1.bf16.msra.mxu0 %v1704
    %1974 = vmatprep.subr.bf16.mxu0 %v1689
    %1975 = vmatpush1.bf16.msra.mxu0 %v1688
    %1976 = vmatprep.subr.bf16.mxu0 0
    %1977 = vmatpush2.bf16.msra.mxu0 0
    %1978 = vmatprep.subr.bf16.mxu0 0
    %1979 = vmatpush2.bf16.msra.mxu0 0
    %1980 = vmatprep.subr.bf16.mxu0 0
    %1981 = vmatpush2.bf16.msra.mxu0 0
    %1982 = vmatprep.subr.bf16.mxu0 0
    %1983 = vmatpush2.bf16.msra.mxu0 0
    %1984 = vmatprep.subr.bf16.mxu0 0
    %1985 = vmatpush2.bf16.msra.mxu0 0
    %1986 = vmatprep.subr.bf16.mxu0 0
    %1987 = vmatpush2.bf16.msra.mxu0 0
    %1988 = vmatprep.subr.bf16.mxu0 0
    %1989 = vmatpush2.bf16.msra.mxu0 0
    %1990 = vmatprep.subr.bf16.mxu0 0
    %1991 = vmatpush2.bf16.msra.mxu0 0
    %1992 = vmatprep.mubr.bf16.mxu0 0
    %1993 = vmatmul.mubr.bf16.gmra.mxu0 %v1743
    %v1994 = vpop.f32.mrf.mxu0
    %v1995 = vadd.f32 %v1545, %v1994
    %v1996 = vpop.f32.mrf.mxu0
    %v1997 = vadd.f32 %v1549, %v1996
    %v1998 = vpop.f32.mrf.mxu0
    %v1999 = vadd.f32 %v1545, %v1998
    %v2000 = vpop.f32.mrf.mxu0
    %v2001 = vadd.f32 %v1549, %v2000
    %2002 = vdwg.mxu0
    %2003 = vmatprep.subr.bf16.mxu0 0
    %2004 = vmatpush1.bf16.msra.mxu0 0
    %2005 = vmatprep.subr.bf16.mxu0 0
    %2006 = vmatpush1.bf16.msra.mxu0 0
    %2007 = vmatprep.subr.bf16.mxu0 0
    %2008 = vmatpush1.bf16.msra.mxu0 0
    %2009 = vmatprep.subr.bf16.mxu0 0
    %2010 = vmatpush1.bf16.msra.mxu0 0
    %2011 = vmatprep.subr.bf16.mxu0 0
    %2012 = vmatpush1.bf16.msra.mxu0 0
    %2013 = vmatprep.subr.bf16.mxu0 0
    %2014 = vmatpush1.bf16.msra.mxu0 0
    %2015 = vmatprep.subr.bf16.mxu0 %v1707
    %2016 = vmatpush1.bf16.msra.mxu0 %v1706
    %2017 = vmatprep.subr.bf16.mxu0 %v1691
    %2018 = vmatpush1.bf16.msra.mxu0 %v1690
    %2019 = vmatprep.subr.bf16.mxu0 0
    %2020 = vmatpush2.bf16.msra.mxu0 0
    %2021 = vmatprep.subr.bf16.mxu0 0
    %2022 = vmatpush2.bf16.msra.mxu0 0
    %2023 = vmatprep.subr.bf16.mxu0 0
    %2024 = vmatpush2.bf16.msra.mxu0 0
    %2025 = vmatprep.subr.bf16.mxu0 0
    %2026 = vmatpush2.bf16.msra.mxu0 0
    %2027 = vmatprep.subr.bf16.mxu0 0
    %2028 = vmatpush2.bf16.msra.mxu0 0
    %2029 = vmatprep.subr.bf16.mxu0 0
    %2030 = vmatpush2.bf16.msra.mxu0 0
    %2031 = vmatprep.subr.bf16.mxu0 0
    %2032 = vmatpush2.bf16.msra.mxu0 0
    %2033 = vmatprep.subr.bf16.mxu0 0
    %2034 = vmatpush2.bf16.msra.mxu0 0
    %2035 = vmatprep.mubr.bf16.mxu0 0
    %2036 = vmatmul.mubr.bf16.gmra.mxu0 %v1743
    %v2037 = vpop.f32.mrf.mxu0
    %v2038 = vadd.f32 %v1553, %v2037
    %v2039 = vpop.f32.mrf.mxu0
    %v2040 = vadd.f32 %v1557, %v2039
    %v2041 = vpop.f32.mrf.mxu0
    %v2042 = vadd.f32 %v1553, %v2041
    %v2043 = vpop.f32.mrf.mxu0
    %v2044 = vadd.f32 %v1557, %v2043
    %2045 = vdwg.mxu0
    %2046 = vmatprep.subr.bf16.mxu0 0
    %2047 = vmatpush1.bf16.msra.mxu0 0
    %2048 = vmatprep.subr.bf16.mxu0 0
    %2049 = vmatpush1.bf16.msra.mxu0 0
    %2050 = vmatprep.subr.bf16.mxu0 0
    %2051 = vmatpush1.bf16.msra.mxu0 0
    %2052 = vmatprep.subr.bf16.mxu0 0
    %2053 = vmatpush1.bf16.msra.mxu0 0
    %2054 = vmatprep.subr.bf16.mxu0 0
    %2055 = vmatpush1.bf16.msra.mxu0 0
    %2056 = vmatprep.subr.bf16.mxu0 0
    %2057 = vmatpush1.bf16.msra.mxu0 0
    %2058 = vmatprep.subr.bf16.mxu0 %v1709
    %2059 = vmatpush1.bf16.msra.mxu0 %v1708
    %2060 = vmatprep.subr.bf16.mxu0 %v1693
    %2061 = vmatpush1.bf16.msra.mxu0 %v1692
    %2062 = vmatprep.subr.bf16.mxu0 0
    %2063 = vmatpush2.bf16.msra.mxu0 0
    %2064 = vmatprep.subr.bf16.mxu0 0
    %2065 = vmatpush2.bf16.msra.mxu0 0
    %2066 = vmatprep.subr.bf16.mxu0 0
    %2067 = vmatpush2.bf16.msra.mxu0 0
    %2068 = vmatprep.subr.bf16.mxu0 0
    %2069 = vmatpush2.bf16.msra.mxu0 0
    %2070 = vmatprep.subr.bf16.mxu0 0
    %2071 = vmatpush2.bf16.msra.mxu0 0
    %2072 = vmatprep.subr.bf16.mxu0 0
    %2073 = vmatpush2.bf16.msra.mxu0 0
    %2074 = vmatprep.subr.bf16.mxu0 0
    %2075 = vmatpush2.bf16.msra.mxu0 0
    %2076 = vmatprep.subr.bf16.mxu0 0
    %2077 = vmatpush2.bf16.msra.mxu0 0
    %2078 = vmatprep.mubr.bf16.mxu0 0
    %2079 = vmatmul.mubr.bf16.gmra.mxu0 %v1743
    %v2080 = vpop.f32.mrf.mxu0
    %v2081 = vadd.f32 %v1561, %v2080
    %v2082 = vpop.f32.mrf.mxu0
    %v2083 = vadd.f32 %v1565, %v2082
    %v2084 = vpop.f32.mrf.mxu0
    %v2085 = vadd.f32 %v1561, %v2084
    %v2086 = vpop.f32.mrf.mxu0
    %v2087 = vadd.f32 %v1565, %v2086
    %2088 = vdwg.mxu0
    %v2089 = vmax.f32 %v1780, 0.0
    %v2090 = vmax.f32 %v1782, 0.0
    %v2091 = vmax.f32 %v1823, 0.0
    %v2092 = vmax.f32 %v1825, 0.0
    %v2093 = vmax.f32 %v1866, 0.0
    %v2094 = vmax.f32 %v1868, 0.0
    %v2095 = vmax.f32 %v1909, 0.0
    %v2096 = vmax.f32 %v1911, 0.0
    %v2097 = vmax.f32 %v1952, 0.0
    %v2098 = vmax.f32 %v1954, 0.0
    %v2099 = vmax.f32 %v1995, 0.0
    %v2100 = vmax.f32 %v1997, 0.0
    %v2101 = vmax.f32 %v2038, 0.0
    %v2102 = vmax.f32 %v2040, 0.0
    %v2103 = vmax.f32 %v2081, 0.0
    %v2104 = vmax.f32 %v2083, 0.0
    %v2105 = vmax.f32 %v1784, 0.0
    %v2106 = vmax.f32 %v1786, 0.0
    %v2107 = vmax.f32 %v1827, 0.0
    %v2108 = vmax.f32 %v1829, 0.0
    %v2109 = vmax.f32 %v1870, 0.0
    %v2110 = vmax.f32 %v1872, 0.0
    %v2111 = vmax.f32 %v1913, 0.0
    %v2112 = vmax.f32 %v1915, 0.0
    %v2113 = vmax.f32 %v1956, 0.0
    %v2114 = vmax.f32 %v1958, 0.0
    %v2115 = vmax.f32 %v1999, 0.0
    %v2116 = vmax.f32 %v2001, 0.0
    %v2117 = vmax.f32 %v2042, 0.0
    %v2118 = vmax.f32 %v2044, 0.0
    %v2119 = vmax.f32 %v2085, 0.0
    %v2120 = vmax.f32 %v2087, 0.0
    %v2121 = vpack.c.bf16 %v2105, %v2089
    %v2122 = vpack.c.bf16 %v2106, %v2090
    %v2123 = vpack.c.bf16 %v2107, %v2091
    %v2124 = vpack.c.bf16 %v2108, %v2092
    %v2125 = vpack.c.bf16 %v2109, %v2093
    %v2126 = vpack.c.bf16 %v2110, %v2094
    %v2127 = vpack.c.bf16 %v2111, %v2095
    %v2128 = vpack.c.bf16 %v2112, %v2096
    %v2129 = vpack.c.bf16 %v2113, %v2097
    %v2130 = vpack.c.bf16 %v2114, %v2098
    %v2131 = vpack.c.bf16 %v2115, %v2099
    %v2132 = vpack.c.bf16 %v2116, %v2100
    %v2133 = vpack.c.bf16 %v2117, %v2101
    %v2134 = vpack.c.bf16 %v2118, %v2102
    %v2135 = vpack.c.bf16 %v2119, %v2103
    %v2136 = vpack.c.bf16 %v2120, %v2104
    %v2137 = vld [vmem:[#allocation14] sm:$0xff]
    %v2138 = vld [vmem:[#allocation14 + $0x8] sm:$0xff]
    %v2139 = vld [vmem:[#allocation14 + $0x10] sm:$0xff]
    %v2140 = vld [vmem:[#allocation14 + $0x18] sm:$0xff]
    %v2141 = vld [vmem:[#allocation14 + $0x20] sm:$0xff]
    %v2142 = vld [vmem:[#allocation14 + $0x28] sm:$0xff]
    %v2143 = vld [vmem:[#allocation14 + $0x30] sm:$0xff]
    %v2144 = vld [vmem:[#allocation14 + $0x38] sm:$0xff]
    %v2145 = vld [vmem:[#allocation14 + $0x40] sm:$0xff]
    %v2146 = vld [vmem:[#allocation14 + $0x48] sm:$0xff]
    %v2147 = vld [vmem:[#allocation14 + $0x50] sm:$0xff]
    %v2148 = vld [vmem:[#allocation14 + $0x58] sm:$0xff]
    %v2149 = vld [vmem:[#allocation14 + $0x60] sm:$0xff]
    %v2150 = vld [vmem:[#allocation14 + $0x68] sm:$0xff]
    %v2151 = vld [vmem:[#allocation14 + $0x70] sm:$0xff]
    %v2152 = vld [vmem:[#allocation14 + $0x78] sm:$0xff]
    %v2153 = vld [vmem:[#allocation14 + $0x80] sm:$0xff]
    %v2154 = vld [vmem:[#allocation14 + $0x88] sm:$0xff]
    %v2155 = vld [vmem:[#allocation14 + $0x90] sm:$0xff]
    %v2156 = vld [vmem:[#allocation14 + $0x98] sm:$0xff]
    %v2157 = vld [vmem:[#allocation14 + $0xa0] sm:$0xff]
    %v2158 = vld [vmem:[#allocation14 + $0xa8] sm:$0xff]
    %v2159 = vld [vmem:[#allocation14 + $0xb0] sm:$0xff]
    %v2160 = vld [vmem:[#allocation14 + $0xb8] sm:$0xff]
    %v2161 = vld [vmem:[#allocation14 + $0xc0] sm:$0xff]
    %v2162 = vld [vmem:[#allocation14 + $0xc8] sm:$0xff]
    %v2163 = vld [vmem:[#allocation14 + $0xd0] sm:$0xff]
    %v2164 = vld [vmem:[#allocation14 + $0xd8] sm:$0xff]
    %v2165 = vld [vmem:[#allocation14 + $0xe0] sm:$0xff]
    %v2166 = vld [vmem:[#allocation14 + $0xe8] sm:$0xff]
    %v2167 = vld [vmem:[#allocation14 + $0xf0] sm:$0xff]
    %v2168 = vld [vmem:[#allocation14 + $0xf8] sm:$0xff]
    %s2169 = scalar_lea.vmem [#allocation10], 1
    %v2170 = vld [vmem:[%s2169] sm:$0x1]
    %v2172 = vlaneseq
    %v2173 = vshrl.u32 %v2172, 7
    %v2174 = vsub.s32 0, %v2173
    %v2175 = vrot.slane %v2170, %v2174
    %v2209 = vunpack.c.l.b16 %v2137
    %v2210 = vunpack.c.h.b16 %v2137
    %v2211 = vunpack.c.l.b16 %v2138
    %v2212 = vunpack.c.h.b16 %v2138
    %v2213 = vunpack.c.l.b16 %v2139
    %v2214 = vunpack.c.h.b16 %v2139
    %v2215 = vunpack.c.l.b16 %v2140
    %v2216 = vunpack.c.h.b16 %v2140
    %v2217 = vunpack.c.l.b16 %v2141
    %v2218 = vunpack.c.h.b16 %v2141
    %v2219 = vunpack.c.l.b16 %v2142
    %v2220 = vunpack.c.h.b16 %v2142
    %v2221 = vunpack.c.l.b16 %v2143
    %v2222 = vunpack.c.h.b16 %v2143
    %v2223 = vunpack.c.l.b16 %v2144
    %v2224 = vunpack.c.h.b16 %v2144
    %v2225 = vunpack.c.l.b16 %v2145
    %v2226 = vunpack.c.h.b16 %v2145
    %v2227 = vunpack.c.l.b16 %v2146
    %v2228 = vunpack.c.h.b16 %v2146
    %v2229 = vunpack.c.l.b16 %v2147
    %v2230 = vunpack.c.h.b16 %v2147
    %v2231 = vunpack.c.l.b16 %v2148
    %v2232 = vunpack.c.h.b16 %v2148
    %v2233 = vunpack.c.l.b16 %v2149
    %v2234 = vunpack.c.h.b16 %v2149
    %v2235 = vunpack.c.l.b16 %v2150
    %v2236 = vunpack.c.h.b16 %v2150
    %v2237 = vunpack.c.l.b16 %v2151
    %v2238 = vunpack.c.h.b16 %v2151
    %v2239 = vunpack.c.l.b16 %v2152
    %v2240 = vunpack.c.h.b16 %v2152
    %v2241 = vunpack.c.l.b16 %v2153
    %v2242 = vunpack.c.h.b16 %v2153
    %v2243 = vunpack.c.l.b16 %v2154
    %v2244 = vunpack.c.h.b16 %v2154
    %v2245 = vunpack.c.l.b16 %v2155
    %v2246 = vunpack.c.h.b16 %v2155
    %v2247 = vunpack.c.l.b16 %v2156
    %v2248 = vunpack.c.h.b16 %v2156
    %v2249 = vunpack.c.l.b16 %v2157
    %v2250 = vunpack.c.h.b16 %v2157
    %v2251 = vunpack.c.l.b16 %v2158
    %v2252 = vunpack.c.h.b16 %v2158
    %v2253 = vunpack.c.l.b16 %v2159
    %v2254 = vunpack.c.h.b16 %v2159
    %v2255 = vunpack.c.l.b16 %v2160
    %v2256 = vunpack.c.h.b16 %v2160
    %v2257 = vunpack.c.l.b16 %v2161
    %v2258 = vunpack.c.h.b16 %v2161
    %v2259 = vunpack.c.l.b16 %v2162
    %v2260 = vunpack.c.h.b16 %v2162
    %v2261 = vunpack.c.l.b16 %v2163
    %v2262 = vunpack.c.h.b16 %v2163
    %v2263 = vunpack.c.l.b16 %v2164
    %v2264 = vunpack.c.h.b16 %v2164
    %v2265 = vunpack.c.l.b16 %v2165
    %v2266 = vunpack.c.h.b16 %v2165
    %v2267 = vunpack.c.l.b16 %v2166
    %v2268 = vunpack.c.h.b16 %v2166
    %v2269 = vunpack.c.l.b16 %v2167
    %v2270 = vunpack.c.h.b16 %v2167
    %v2271 = vunpack.c.l.b16 %v2168
    %v2272 = vunpack.c.h.b16 %v2168
    %v2273 = vpack.c.b16 %v2225, %v2209
    %v2274 = vpack.c.b16 %v2226, %v2210
    %v2275 = vpack.c.b16 %v2227, %v2211
    %v2276 = vpack.c.b16 %v2228, %v2212
    %v2277 = vpack.c.b16 %v2229, %v2213
    %v2278 = vpack.c.b16 %v2230, %v2214
    %v2279 = vpack.c.b16 %v2231, %v2215
    %v2280 = vpack.c.b16 %v2232, %v2216
    %v2281 = vpack.c.b16 %v2233, %v2217
    %v2282 = vpack.c.b16 %v2234, %v2218
    %v2283 = vpack.c.b16 %v2235, %v2219
    %v2284 = vpack.c.b16 %v2236, %v2220
    %v2285 = vpack.c.b16 %v2237, %v2221
    %v2286 = vpack.c.b16 %v2238, %v2222
    %v2287 = vpack.c.b16 %v2239, %v2223
    %v2288 = vpack.c.b16 %v2240, %v2224
    %v2289 = vpack.c.b16 %v2257, %v2241
    %v2290 = vpack.c.b16 %v2258, %v2242
    %v2291 = vpack.c.b16 %v2259, %v2243
    %v2292 = vpack.c.b16 %v2260, %v2244
    %v2293 = vpack.c.b16 %v2261, %v2245
    %v2294 = vpack.c.b16 %v2262, %v2246
    %v2295 = vpack.c.b16 %v2263, %v2247
    %v2296 = vpack.c.b16 %v2264, %v2248
    %v2297 = vpack.c.b16 %v2265, %v2249
    %v2298 = vpack.c.b16 %v2266, %v2250
    %v2299 = vpack.c.b16 %v2267, %v2251
    %v2300 = vpack.c.b16 %v2268, %v2252
    %v2301 = vpack.c.b16 %v2269, %v2253
    %v2302 = vpack.c.b16 %v2270, %v2254
    %v2303 = vpack.c.b16 %v2271, %v2255
    %v2304 = vpack.c.b16 %v2272, %v2256
    %2337 = vmatprep.subr.bf16.mxu0 0
    %2338 = vmatpush1.bf16.xpose.msra.mxu0 0
    %2339 = vmatprep.subr.bf16.mxu0 0
    %2340 = vmatpush1.bf16.xpose.msra.mxu0 0
    %2341 = vmatprep.subr.bf16.mxu0 0
    %2342 = vmatpush1.bf16.xpose.msra.mxu0 0
    %2343 = vmatprep.subr.bf16.mxu0 0
    %2344 = vmatpush1.bf16.xpose.msra.mxu0 0
    %2345 = vmatprep.subr.bf16.mxu0 0
    %2346 = vmatpush1.bf16.xpose.msra.mxu0 0
    %2347 = vmatprep.subr.bf16.mxu0 0
    %2348 = vmatpush1.bf16.xpose.msra.mxu0 0
    %2349 = vmatprep.subr.bf16.mxu0 %v2290
    %2350 = vmatpush1.bf16.xpose.msra.mxu0 %v2289
    %2351 = vmatprep.subr.bf16.mxu0 %v2274
    %2352 = vmatpush1.bf16.xpose.msra.mxu0 %v2273
    %2353 = vmatprep.subr.bf16.mxu0 0
    %2354 = vmatpush2.bf16.xpose.msra.mxu0 0
    %2355 = vmatprep.subr.bf16.mxu0 0
    %2356 = vmatpush2.bf16.xpose.msra.mxu0 0
    %2357 = vmatprep.subr.bf16.mxu0 0
    %2358 = vmatpush2.bf16.xpose.msra.mxu0 0
    %2359 = vmatprep.subr.bf16.mxu0 0
    %2360 = vmatpush2.bf16.xpose.msra.mxu0 0
    %2361 = vmatprep.subr.bf16.mxu0 0
    %2362 = vmatpush2.bf16.xpose.msra.mxu0 0
    %2363 = vmatprep.subr.bf16.mxu0 0
    %2364 = vmatpush2.bf16.xpose.msra.mxu0 0
    %2365 = vmatprep.subr.bf16.mxu0 0
    %2366 = vmatpush2.bf16.xpose.msra.mxu0 0
    %2367 = vmatprep.subr.bf16.mxu0 0
    %2368 = vmatpush2.bf16.xpose.msra.mxu0 0
    %2369 = vmatprep.mubr.bf16.mxu0 %v2122
    %2370 = vmatmul.mubr.bf16.gmra.mxu0 %v2121
    %v2371 = vpop.f32.mrf.mxu0
    %v2372 = vadd.f32 %v2175, %v2371
    %v2373 = vpop.f32.mrf.mxu0
    %v2374 = vpop.f32.mrf.mxu0
    %v2375 = vadd.f32 %v2175, %v2374
    %v2376 = vpop.f32.mrf.mxu0
    %2377 = vdwg.mxu0
    %2378 = vmatprep.subr.bf16.mxu0 0
    %2379 = vmatpush1.bf16.xpose.msra.mxu0 0
    %2380 = vmatprep.subr.bf16.mxu0 0
    %2381 = vmatpush1.bf16.xpose.msra.mxu0 0
    %2382 = vmatprep.subr.bf16.mxu0 0
    %2383 = vmatpush1.bf16.xpose.msra.mxu0 0
    %2384 = vmatprep.subr.bf16.mxu0 0
    %2385 = vmatpush1.bf16.xpose.msra.mxu0 0
    %2386 = vmatprep.subr.bf16.mxu0 0
    %2387 = vmatpush1.bf16.xpose.msra.mxu0 0
    %2388 = vmatprep.subr.bf16.mxu0 0
    %2389 = vmatpush1.bf16.xpose.msra.mxu0 0
    %2390 = vmatprep.subr.bf16.mxu0 %v2292
    %2391 = vmatpush1.bf16.xpose.msra.mxu0 %v2291
    %2392 = vmatprep.subr.bf16.mxu0 %v2276
    %2393 = vmatpush1.bf16.xpose.msra.mxu0 %v2275
    %2394 = vmatprep.subr.bf16.mxu0 0
    %2395 = vmatpush2.bf16.xpose.msra.mxu0 0
    %2396 = vmatprep.subr.bf16.mxu0 0
    %2397 = vmatpush2.bf16.xpose.msra.mxu0 0
    %2398 = vmatprep.subr.bf16.mxu0 0
    %2399 = vmatpush2.bf16.xpose.msra.mxu0 0
    %2400 = vmatprep.subr.bf16.mxu0 0
    %2401 = vmatpush2.bf16.xpose.msra.mxu0 0
    %2402 = vmatprep.subr.bf16.mxu0 0
    %2403 = vmatpush2.bf16.xpose.msra.mxu0 0
    %2404 = vmatprep.subr.bf16.mxu0 0
    %2405 = vmatpush2.bf16.xpose.msra.mxu0 0
    %2406 = vmatprep.subr.bf16.mxu0 0
    %2407 = vmatpush2.bf16.xpose.msra.mxu0 0
    %2408 = vmatprep.subr.bf16.mxu0 0
    %2409 = vmatpush2.bf16.xpose.msra.mxu0 0
    %2410 = vmatprep.mubr.bf16.mxu0 %v2124
    %2411 = vmatmul.mubr.bf16.gmra.mxu0 %v2123
    %v2412 = vpop.f32.mrf.mxu0
    %v2413 = vadd.f32 %v2372, %v2412
    %v2414 = vpop.f32.mrf.mxu0
    %v2415 = vpop.f32.mrf.mxu0
    %v2416 = vadd.f32 %v2375, %v2415
    %v2417 = vpop.f32.mrf.mxu0
    %2418 = vdwg.mxu0
    %2419 = vmatprep.subr.bf16.mxu0 0
    %2420 = vmatpush1.bf16.xpose.msra.mxu0 0
    %2421 = vmatprep.subr.bf16.mxu0 0
    %2422 = vmatpush1.bf16.xpose.msra.mxu0 0
    %2423 = vmatprep.subr.bf16.mxu0 0
    %2424 = vmatpush1.bf16.xpose.msra.mxu0 0
    %2425 = vmatprep.subr.bf16.mxu0 0
    %2426 = vmatpush1.bf16.xpose.msra.mxu0 0
    %2427 = vmatprep.subr.bf16.mxu0 0
    %2428 = vmatpush1.bf16.xpose.msra.mxu0 0
    %2429 = vmatprep.subr.bf16.mxu0 0
    %2430 = vmatpush1.bf16.xpose.msra.mxu0 0
    %2431 = vmatprep.subr.bf16.mxu0 %v2294
    %2432 = vmatpush1.bf16.xpose.msra.mxu0 %v2293
    %2433 = vmatprep.subr.bf16.mxu0 %v2278
    %2434 = vmatpush1.bf16.xpose.msra.mxu0 %v2277
    %2435 = vmatprep.subr.bf16.mxu0 0
    %2436 = vmatpush2.bf16.xpose.msra.mxu0 0
    %2437 = vmatprep.subr.bf16.mxu0 0
    %2438 = vmatpush2.bf16.xpose.msra.mxu0 0
    %2439 = vmatprep.subr.bf16.mxu0 0
    %2440 = vmatpush2.bf16.xpose.msra.mxu0 0
    %2441 = vmatprep.subr.bf16.mxu0 0
    %2442 = vmatpush2.bf16.xpose.msra.mxu0 0
    %2443 = vmatprep.subr.bf16.mxu0 0
    %2444 = vmatpush2.bf16.xpose.msra.mxu0 0
    %2445 = vmatprep.subr.bf16.mxu0 0
    %2446 = vmatpush2.bf16.xpose.msra.mxu0 0
    %2447 = vmatprep.subr.bf16.mxu0 0
    %2448 = vmatpush2.bf16.xpose.msra.mxu0 0
    %2449 = vmatprep.subr.bf16.mxu0 0
    %2450 = vmatpush2.bf16.xpose.msra.mxu0 0
    %2451 = vmatprep.mubr.bf16.mxu0 %v2126
    %2452 = vmatmul.mubr.bf16.gmra.mxu0 %v2125
    %v2453 = vpop.f32.mrf.mxu0
    %v2454 = vadd.f32 %v2413, %v2453
    %v2455 = vpop.f32.mrf.mxu0
    %v2456 = vpop.f32.mrf.mxu0
    %v2457 = vadd.f32 %v2416, %v2456
    %v2458 = vpop.f32.mrf.mxu0
    %2459 = vdwg.mxu0
    %2460 = vmatprep.subr.bf16.mxu0 0
    %2461 = vmatpush1.bf16.xpose.msra.mxu0 0
    %2462 = vmatprep.subr.bf16.mxu0 0
    %2463 = vmatpush1.bf16.xpose.msra.mxu0 0
    %2464 = vmatprep.subr.bf16.mxu0 0
    %2465 = vmatpush1.bf16.xpose.msra.mxu0 0
    %2466 = vmatprep.subr.bf16.mxu0 0
    %2467 = vmatpush1.bf16.xpose.msra.mxu0 0
    %2468 = vmatprep.subr.bf16.mxu0 0
    %2469 = vmatpush1.bf16.xpose.msra.mxu0 0
    %2470 = vmatprep.subr.bf16.mxu0 0
    %2471 = vmatpush1.bf16.xpose.msra.mxu0 0
    %2472 = vmatprep.subr.bf16.mxu0 %v2296
    %2473 = vmatpush1.bf16.xpose.msra.mxu0 %v2295
    %2474 = vmatprep.subr.bf16.mxu0 %v2280
    %2475 = vmatpush1.bf16.xpose.msra.mxu0 %v2279
    %2476 = vmatprep.subr.bf16.mxu0 0
    %2477 = vmatpush2.bf16.xpose.msra.mxu0 0
    %2478 = vmatprep.subr.bf16.mxu0 0
    %2479 = vmatpush2.bf16.xpose.msra.mxu0 0
    %2480 = vmatprep.subr.bf16.mxu0 0
    %2481 = vmatpush2.bf16.xpose.msra.mxu0 0
    %2482 = vmatprep.subr.bf16.mxu0 0
    %2483 = vmatpush2.bf16.xpose.msra.mxu0 0
    %2484 = vmatprep.subr.bf16.mxu0 0
    %2485 = vmatpush2.bf16.xpose.msra.mxu0 0
    %2486 = vmatprep.subr.bf16.mxu0 0
    %2487 = vmatpush2.bf16.xpose.msra.mxu0 0
    %2488 = vmatprep.subr.bf16.mxu0 0
    %2489 = vmatpush2.bf16.xpose.msra.mxu0 0
    %2490 = vmatprep.subr.bf16.mxu0 0
    %2491 = vmatpush2.bf16.xpose.msra.mxu0 0
    %2492 = vmatprep.mubr.bf16.mxu0 %v2128
    %2493 = vmatmul.mubr.bf16.gmra.mxu0 %v2127
    %v2494 = vpop.f32.mrf.mxu0
    %v2495 = vadd.f32 %v2454, %v2494
    %v2496 = vpop.f32.mrf.mxu0
    %v2497 = vpop.f32.mrf.mxu0
    %v2498 = vadd.f32 %v2457, %v2497
    %v2499 = vpop.f32.mrf.mxu0
    %2500 = vdwg.mxu0
    %2501 = vmatprep.subr.bf16.mxu0 0
    %2502 = vmatpush1.bf16.xpose.msra.mxu0 0
    %2503 = vmatprep.subr.bf16.mxu0 0
    %2504 = vmatpush1.bf16.xpose.msra.mxu0 0
    %2505 = vmatprep.subr.bf16.mxu0 0
    %2506 = vmatpush1.bf16.xpose.msra.mxu0 0
    %2507 = vmatprep.subr.bf16.mxu0 0
    %2508 = vmatpush1.bf16.xpose.msra.mxu0 0
    %2509 = vmatprep.subr.bf16.mxu0 0
    %2510 = vmatpush1.bf16.xpose.msra.mxu0 0
    %2511 = vmatprep.subr.bf16.mxu0 0
    %2512 = vmatpush1.bf16.xpose.msra.mxu0 0
    %2513 = vmatprep.subr.bf16.mxu0 %v2298
    %2514 = vmatpush1.bf16.xpose.msra.mxu0 %v2297
    %2515 = vmatprep.subr.bf16.mxu0 %v2282
    %2516 = vmatpush1.bf16.xpose.msra.mxu0 %v2281
    %2517 = vmatprep.subr.bf16.mxu0 0
    %2518 = vmatpush2.bf16.xpose.msra.mxu0 0
    %2519 = vmatprep.subr.bf16.mxu0 0
    %2520 = vmatpush2.bf16.xpose.msra.mxu0 0
    %2521 = vmatprep.subr.bf16.mxu0 0
    %2522 = vmatpush2.bf16.xpose.msra.mxu0 0
    %2523 = vmatprep.subr.bf16.mxu0 0
    %2524 = vmatpush2.bf16.xpose.msra.mxu0 0
    %2525 = vmatprep.subr.bf16.mxu0 0
    %2526 = vmatpush2.bf16.xpose.msra.mxu0 0
    %2527 = vmatprep.subr.bf16.mxu0 0
    %2528 = vmatpush2.bf16.xpose.msra.mxu0 0
    %2529 = vmatprep.subr.bf16.mxu0 0
    %2530 = vmatpush2.bf16.xpose.msra.mxu0 0
    %2531 = vmatprep.subr.bf16.mxu0 0
    %2532 = vmatpush2.bf16.xpose.msra.mxu0 0
    %2533 = vmatprep.mubr.bf16.mxu0 %v2130
    %2534 = vmatmul.mubr.bf16.gmra.mxu0 %v2129
    %v2535 = vpop.f32.mrf.mxu0
    %v2536 = vadd.f32 %v2495, %v2535
    %v2537 = vpop.f32.mrf.mxu0
    %v2538 = vpop.f32.mrf.mxu0
    %v2539 = vadd.f32 %v2498, %v2538
    %v2540 = vpop.f32.mrf.mxu0
    %2541 = vdwg.mxu0
    %2542 = vmatprep.subr.bf16.mxu0 0
    %2543 = vmatpush1.bf16.xpose.msra.mxu0 0
    %2544 = vmatprep.subr.bf16.mxu0 0
    %2545 = vmatpush1.bf16.xpose.msra.mxu0 0
    %2546 = vmatprep.subr.bf16.mxu0 0
    %2547 = vmatpush1.bf16.xpose.msra.mxu0 0
    %2548 = vmatprep.subr.bf16.mxu0 0
    %2549 = vmatpush1.bf16.xpose.msra.mxu0 0
    %2550 = vmatprep.subr.bf16.mxu0 0
    %2551 = vmatpush1.bf16.xpose.msra.mxu0 0
    %2552 = vmatprep.subr.bf16.mxu0 0
    %2553 = vmatpush1.bf16.xpose.msra.mxu0 0
    %2554 = vmatprep.subr.bf16.mxu0 %v2300
    %2555 = vmatpush1.bf16.xpose.msra.mxu0 %v2299
    %2556 = vmatprep.subr.bf16.mxu0 %v2284
    %2557 = vmatpush1.bf16.xpose.msra.mxu0 %v2283
    %2558 = vmatprep.subr.bf16.mxu0 0
    %2559 = vmatpush2.bf16.xpose.msra.mxu0 0
    %2560 = vmatprep.subr.bf16.mxu0 0
    %2561 = vmatpush2.bf16.xpose.msra.mxu0 0
    %2562 = vmatprep.subr.bf16.mxu0 0
    %2563 = vmatpush2.bf16.xpose.msra.mxu0 0
    %2564 = vmatprep.subr.bf16.mxu0 0
    %2565 = vmatpush2.bf16.xpose.msra.mxu0 0
    %2566 = vmatprep.subr.bf16.mxu0 0
    %2567 = vmatpush2.bf16.xpose.msra.mxu0 0
    %2568 = vmatprep.subr.bf16.mxu0 0
    %2569 = vmatpush2.bf16.xpose.msra.mxu0 0
    %2570 = vmatprep.subr.bf16.mxu0 0
    %2571 = vmatpush2.bf16.xpose.msra.mxu0 0
    %2572 = vmatprep.subr.bf16.mxu0 0
    %2573 = vmatpush2.bf16.xpose.msra.mxu0 0
    %2574 = vmatprep.mubr.bf16.mxu0 %v2132
    %2575 = vmatmul.mubr.bf16.gmra.mxu0 %v2131
    %v2576 = vpop.f32.mrf.mxu0
    %v2577 = vadd.f32 %v2536, %v2576
    %v2578 = vpop.f32.mrf.mxu0
    %v2579 = vpop.f32.mrf.mxu0
    %v2580 = vadd.f32 %v2539, %v2579
    %v2581 = vpop.f32.mrf.mxu0
    %2582 = vdwg.mxu0
    %2583 = vmatprep.subr.bf16.mxu0 0
    %2584 = vmatpush1.bf16.xpose.msra.mxu0 0
    %2585 = vmatprep.subr.bf16.mxu0 0
    %2586 = vmatpush1.bf16.xpose.msra.mxu0 0
    %2587 = vmatprep.subr.bf16.mxu0 0
    %2588 = vmatpush1.bf16.xpose.msra.mxu0 0
    %2589 = vmatprep.subr.bf16.mxu0 0
    %2590 = vmatpush1.bf16.xpose.msra.mxu0 0
    %2591 = vmatprep.subr.bf16.mxu0 0
    %2592 = vmatpush1.bf16.xpose.msra.mxu0 0
    %2593 = vmatprep.subr.bf16.mxu0 0
    %2594 = vmatpush1.bf16.xpose.msra.mxu0 0
    %2595 = vmatprep.subr.bf16.mxu0 %v2302
    %2596 = vmatpush1.bf16.xpose.msra.mxu0 %v2301
    %2597 = vmatprep.subr.bf16.mxu0 %v2286
    %2598 = vmatpush1.bf16.xpose.msra.mxu0 %v2285
    %2599 = vmatprep.subr.bf16.mxu0 0
    %2600 = vmatpush2.bf16.xpose.msra.mxu0 0
    %2601 = vmatprep.subr.bf16.mxu0 0
    %2602 = vmatpush2.bf16.xpose.msra.mxu0 0
    %2603 = vmatprep.subr.bf16.mxu0 0
    %2604 = vmatpush2.bf16.xpose.msra.mxu0 0
    %2605 = vmatprep.subr.bf16.mxu0 0
    %2606 = vmatpush2.bf16.xpose.msra.mxu0 0
    %2607 = vmatprep.subr.bf16.mxu0 0
    %2608 = vmatpush2.bf16.xpose.msra.mxu0 0
    %2609 = vmatprep.subr.bf16.mxu0 0
    %2610 = vmatpush2.bf16.xpose.msra.mxu0 0
    %2611 = vmatprep.subr.bf16.mxu0 0
    %2612 = vmatpush2.bf16.xpose.msra.mxu0 0
    %2613 = vmatprep.subr.bf16.mxu0 0
    %2614 = vmatpush2.bf16.xpose.msra.mxu0 0
    %2615 = vmatprep.mubr.bf16.mxu0 %v2134
    %2616 = vmatmul.mubr.bf16.gmra.mxu0 %v2133
    %v2617 = vpop.f32.mrf.mxu0
    %v2618 = vadd.f32 %v2577, %v2617
    %v2619 = vpop.f32.mrf.mxu0
    %v2620 = vpop.f32.mrf.mxu0
    %v2621 = vadd.f32 %v2580, %v2620
    %v2622 = vpop.f32.mrf.mxu0
    %2623 = vdwg.mxu0
    %2624 = vmatprep.subr.bf16.mxu0 0
    %2625 = vmatpush1.bf16.xpose.msra.mxu0 0
    %2626 = vmatprep.subr.bf16.mxu0 0
    %2627 = vmatpush1.bf16.xpose.msra.mxu0 0
    %2628 = vmatprep.subr.bf16.mxu0 0
    %2629 = vmatpush1.bf16.xpose.msra.mxu0 0
    %2630 = vmatprep.subr.bf16.mxu0 0
    %2631 = vmatpush1.bf16.xpose.msra.mxu0 0
    %2632 = vmatprep.subr.bf16.mxu0 0
    %2633 = vmatpush1.bf16.xpose.msra.mxu0 0
    %2634 = vmatprep.subr.bf16.mxu0 0
    %2635 = vmatpush1.bf16.xpose.msra.mxu0 0
    %2636 = vmatprep.subr.bf16.mxu0 %v2304
    %2637 = vmatpush1.bf16.xpose.msra.mxu0 %v2303
    %2638 = vmatprep.subr.bf16.mxu0 %v2288
    %2639 = vmatpush1.bf16.xpose.msra.mxu0 %v2287
    %2640 = vmatprep.subr.bf16.mxu0 0
    %2641 = vmatpush2.bf16.xpose.msra.mxu0 0
    %2642 = vmatprep.subr.bf16.mxu0 0
    %2643 = vmatpush2.bf16.xpose.msra.mxu0 0
    %2644 = vmatprep.subr.bf16.mxu0 0
    %2645 = vmatpush2.bf16.xpose.msra.mxu0 0
    %2646 = vmatprep.subr.bf16.mxu0 0
    %2647 = vmatpush2.bf16.xpose.msra.mxu0 0
    %2648 = vmatprep.subr.bf16.mxu0 0
    %2649 = vmatpush2.bf16.xpose.msra.mxu0 0
    %2650 = vmatprep.subr.bf16.mxu0 0
    %2651 = vmatpush2.bf16.xpose.msra.mxu0 0
    %2652 = vmatprep.subr.bf16.mxu0 0
    %2653 = vmatpush2.bf16.xpose.msra.mxu0 0
    %2654 = vmatprep.subr.bf16.mxu0 0
    %2655 = vmatpush2.bf16.xpose.msra.mxu0 0
    %2656 = vmatprep.mubr.bf16.mxu0 %v2136
    %2657 = vmatmul.mubr.bf16.gmra.mxu0 %v2135
    %v2658 = vpop.f32.mrf.mxu0
    %v2659 = vadd.f32 %v2618, %v2658
    %v2660 = vpop.f32.mrf.mxu0
    %v2661 = vpop.f32.mrf.mxu0
    %v2662 = vadd.f32 %v2621, %v2661
    %v2663 = vpop.f32.mrf.mxu0
    %2664 = vdwg.mxu0
    %v2665 = vadd.f32 %v2659, %v1463
    %v2666 = vadd.f32 %v2662, %v1464
    %s2667 = scalar_lea.vmem [#allocation10], 4
    %v2668 = vld [vmem:[%s2667] sm:$0x1]
    %s2669 = scalar_lea.vmem [#allocation10], 5
    %v2670 = vld [vmem:[%s2669] sm:$0x1]
    %v2671 = vsel %vm242, %v2665, 0.0
    %2672 = vadd.xlane.f32.xlu0 %v2671
    %v2673 = vpop.xlane.xlu0 %2672
    %v2674 = vsel %vm242, %v2666, 0.0
    %2675 = vadd.xlane.f32.xlu0 %v2674
    %v2676 = vpop.xlane.xlu0 %2675
    %v2677 = vmul.f32 %v2673, %v1428
    %v2678 = vmul.f32 %v2676, %v1428
    %v2679 = vsub.f32 %v2665, %v2677
    %v2680 = vsub.f32 %v2666, %v2678
    %v2681 = vmul.f32 %v2679, %v2679
    %v2682 = vmul.f32 %v2680, %v2680
    %v2683 = vsel %vm242, %v2681, 0.0
    %2684 = vadd.xlane.f32.xlu0 %v2683
    %v2685 = vpop.xlane.xlu0 %2684
    %v2686 = vsel %vm242, %v2682, 0.0
    %2687 = vadd.xlane.f32.xlu0 %v2686
    %v2688 = vpop.xlane.xlu0 %2687
    %v2689 = vmul.f32 %v2685, %v1428
    %v2690 = vmul.f32 %v2688, %v1428
    %v2691 = vadd.f32 %v2689, 1e-05
    %v2692 = vadd.f32 %v2690, 1e-05
    %v2693 = vrsqrt.pop %v2691
    %v2694 = vrsqrt.pop %v2692
    %v2695 = vmul.f32 %v2679, %v2693
    %v2696 = vmul.f32 %v2680, %v2694
    %v2698 = vlaneseq
    %v2699 = vshrl.u32 %v2698, 7
    %v2700 = vsub.s32 0, %v2699
    %v2701 = vrot.slane %v2668, %v2700
    %v2703 = vmul.f32 %v2695, %v2701
    %v2704 = vmul.f32 %v2696, %v2701
    %v2706 = vlaneseq
    %v2707 = vshrl.u32 %v2706, 7
    %v2708 = vsub.s32 0, %v2707
    %v2709 = vrot.slane %v2670, %v2708
    %v2711 = vadd.f32 %v2703, %v2709
    %v2712 = vadd.f32 %v2704, %v2709
    %v2713 = vpack.c.bf16 %v2712, %v2711
    %s2714 = scalar_lea.vmem [#allocation7], 16
    %v2715 = vld [vmem:[%s2714] sm:$0xf]
    %v2716 = vld [vmem:[%s2714 + $0x4] sm:$0xf]
    %v2717 = vld [vmem:[%s2714 + $0x8] sm:$0xf]
    %v2718 = vld [vmem:[%s2714 + $0xc] sm:$0xf]
    %s2719 = scalar_lea.vmem [#allocation8], 1
    %v2720 = vld [vmem:[%s2719] sm:$0x1]
    %v2722 = vlaneseq
    %v2723 = vshrl.u32 %v2722, 7
    %v2724 = vsub.s32 0, %v2723
    %v2725 = vrot.slane %v2720, %v2724
    %v2731 = vunpack.c.l.b16 %v2715
    %v2732 = vunpack.c.l.b16 %v2716
    %v2733 = vunpack.c.l.b16 %v2717
    %v2734 = vunpack.c.l.b16 %v2718
    %v2735 = vpack.c.b16 %v2732, %v2731
    %v2736 = vpack.c.b16 %v2734, %v2733
    %v2740 = vsel %vm242, %v2713, 0
    %2742 = vmatprep.subr.bf16.mxu0 0
    %2743 = vmatpush1.bf16.msra.mxu0 0
    %2744 = vmatprep.subr.bf16.mxu0 0
    %2745 = vmatpush1.bf16.msra.mxu0 0
    %2746 = vmatprep.subr.bf16.mxu0 0
    %2747 = vmatpush1.bf16.msra.mxu0 0
    %2748 = vmatprep.subr.bf16.mxu0 0
    %2749 = vmatpush1.bf16.msra.mxu0 0
    %2750 = vmatprep.subr.bf16.mxu0 0
    %2751 = vmatpush1.bf16.msra.mxu0 0
    %2752 = vmatprep.subr.bf16.mxu0 0
    %2753 = vmatpush1.bf16.msra.mxu0 0
    %2754 = vmatprep.subr.bf16.mxu0 0
    %2755 = vmatpush1.bf16.msra.mxu0 %v2736
    %2756 = vmatprep.subr.bf16.mxu0 0
    %2757 = vmatpush1.bf16.msra.mxu0 %v2735
    %2758 = vmatprep.subr.bf16.mxu0 0
    %2759 = vmatpush2.bf16.msra.mxu0 0
    %2760 = vmatprep.subr.bf16.mxu0 0
    %2761 = vmatpush2.bf16.msra.mxu0 0
    %2762 = vmatprep.subr.bf16.mxu0 0
    %2763 = vmatpush2.bf16.msra.mxu0 0
    %2764 = vmatprep.subr.bf16.mxu0 0
    %2765 = vmatpush2.bf16.msra.mxu0 0
    %2766 = vmatprep.subr.bf16.mxu0 0
    %2767 = vmatpush2.bf16.msra.mxu0 0
    %2768 = vmatprep.subr.bf16.mxu0 0
    %2769 = vmatpush2.bf16.msra.mxu0 0
    %2770 = vmatprep.subr.bf16.mxu0 0
    %2771 = vmatpush2.bf16.msra.mxu0 0
    %2772 = vmatprep.subr.bf16.mxu0 0
    %2773 = vmatpush2.bf16.msra.mxu0 0
    %2774 = vmatprep.mubr.bf16.mxu0 0
    %2775 = vmatmul.mubr.bf16.gmra.mxu0 %v2740
    %v2776 = vpop.f32.mrf.mxu0
    %v2777 = vadd.f32 %v2725, %v2776
    %v2778 = vpop.f32.mrf.mxu0
    %v2779 = vpop.f32.mrf.mxu0
    %v2780 = vadd.f32 %v2725, %v2779
    %v2781 = vpop.f32.mrf.mxu0
    %2782 = vdwg.mxu0
    %2785 = vrot.lane.b32.xlu0 %v2777, 120
    %v2786 = vpop.permute.xlu0 %2785
    %2787 = vrot.lane.b32.xlu0 %v2780, 120
    %v2788 = vpop.permute.xlu0 %2787
    %2791 = vrot.lane.b32.xlu0 %v2777, 112
    %v2792 = vpop.permute.xlu0 %2791
    %2793 = vrot.lane.b32.xlu0 %v2780, 112
    %v2794 = vpop.permute.xlu0 %2793
    %2797 = vrot.lane.b32.xlu0 %v2777, 104
    %v2798 = vpop.permute.xlu0 %2797
    %2799 = vrot.lane.b32.xlu0 %v2780, 104
    %v2800 = vpop.permute.xlu0 %2799
    %v2803 = vpack.c.bf16 %v2777, %v2777
    %v2804 = vpack.c.bf16 %v2780, %v2780
    %v2805 = vpack.c.bf16 %v2786, %v2786
    %v2806 = vpack.c.bf16 %v2788, %v2788
    %v2807 = vpack.c.bf16 %v2792, %v2792
    %v2808 = vpack.c.bf16 %v2794, %v2794
    %v2809 = vpack.c.bf16 %v2798, %v2798
    %v2810 = vpack.c.bf16 %v2800, %v2800
    %2812 = vrot.lane.b32.xlu0 %v2803, 96
    %v2813 = vpop.permute.xlu0 %2812
    %v2815 = vsel %vm318, %v2803, 0
    %v2818 = vsel %vm318, %v2813, 0
    %2820 = vmatprep.subr.bf16.mxu0 0
    %2821 = vmatpush1.bf16.xpose.msra.mxu0 0
    %2822 = vmatprep.subr.bf16.mxu0 0
    %2823 = vmatpush1.bf16.xpose.msra.mxu0 0
    %2824 = vmatprep.subr.bf16.mxu0 0
    %2825 = vmatpush1.bf16.xpose.msra.mxu0 0
    %2826 = vmatprep.subr.bf16.mxu0 0
    %2827 = vmatpush1.bf16.xpose.msra.mxu0 0
    %2828 = vmatprep.subr.bf16.mxu0 0
    %2829 = vmatpush1.bf16.xpose.msra.mxu0 0
    %2830 = vmatprep.subr.bf16.mxu0 0
    %2831 = vmatpush1.bf16.xpose.msra.mxu0 0
    %2832 = vmatprep.subr.bf16.mxu0 0
    %2833 = vmatpush1.bf16.xpose.msra.mxu0 0
    %2834 = vmatprep.subr.bf16.mxu0 0
    %2835 = vmatpush1.bf16.xpose.msra.mxu0 %v2818
    %2836 = vmatprep.subr.bf16.mxu0 0
    %2837 = vmatpush2.bf16.xpose.msra.mxu0 0
    %2838 = vmatprep.subr.bf16.mxu0 0
    %2839 = vmatpush2.bf16.xpose.msra.mxu0 0
    %2840 = vmatprep.subr.bf16.mxu0 0
    %2841 = vmatpush2.bf16.xpose.msra.mxu0 0
    %2842 = vmatprep.subr.bf16.mxu0 0
    %2843 = vmatpush2.bf16.xpose.msra.mxu0 0
    %2844 = vmatprep.subr.bf16.mxu0 0
    %2845 = vmatpush2.bf16.xpose.msra.mxu0 0
    %2846 = vmatprep.subr.bf16.mxu0 0
    %2847 = vmatpush2.bf16.xpose.msra.mxu0 0
    %2848 = vmatprep.subr.bf16.mxu0 0
    %2849 = vmatpush2.bf16.xpose.msra.mxu0 0
    %2850 = vmatprep.subr.bf16.mxu0 0
    %2851 = vmatpush2.bf16.xpose.msra.mxu0 0
    %2852 = vmatprep.mubr.bf16.mxu0 0
    %2853 = vmatmul.mubr.bf16.gmra.mxu0 %v2815
    %v2854 = vpop.f32.mrf.mxu0
    %v2855 = vadd.f32 0.0, %v2854
    %v2856 = vpop.f32.mrf.mxu0
    %v2857 = vpop.f32.mrf.mxu0
    %v2858 = vpop.f32.mrf.mxu0
    %2859 = vdwg.mxu0
    %2861 = vrot.lane.b32.xlu0 %v2804, 96
    %v2862 = vpop.permute.xlu0 %2861
    %v2864 = vsel %vm318, %v2804, 0
    %v2867 = vsel %vm318, %v2862, 0
    %2869 = vmatprep.subr.bf16.mxu0 0
    %2870 = vmatpush1.bf16.xpose.msra.mxu0 0
    %2871 = vmatprep.subr.bf16.mxu0 0
    %2872 = vmatpush1.bf16.xpose.msra.mxu0 0
    %2873 = vmatprep.subr.bf16.mxu0 0
    %2874 = vmatpush1.bf16.xpose.msra.mxu0 0
    %2875 = vmatprep.subr.bf16.mxu0 0
    %2876 = vmatpush1.bf16.xpose.msra.mxu0 0
    %2877 = vmatprep.subr.bf16.mxu0 0
    %2878 = vmatpush1.bf16.xpose.msra.mxu0 0
    %2879 = vmatprep.subr.bf16.mxu0 0
    %2880 = vmatpush1.bf16.xpose.msra.mxu0 0
    %2881 = vmatprep.subr.bf16.mxu0 0
    %2882 = vmatpush1.bf16.xpose.msra.mxu0 0
    %2883 = vmatprep.subr.bf16.mxu0 0
    %2884 = vmatpush1.bf16.xpose.msra.mxu0 %v2867
    %2885 = vmatprep.subr.bf16.mxu0 0
    %2886 = vmatpush2.bf16.xpose.msra.mxu0 0
    %2887 = vmatprep.subr.bf16.mxu0 0
    %2888 = vmatpush2.bf16.xpose.msra.mxu0 0
    %2889 = vmatprep.subr.bf16.mxu0 0
    %2890 = vmatpush2.bf16.xpose.msra.mxu0 0
    %2891 = vmatprep.subr.bf16.mxu0 0
    %2892 = vmatpush2.bf16.xpose.msra.mxu0 0
    %2893 = vmatprep.subr.bf16.mxu0 0
    %2894 = vmatpush2.bf16.xpose.msra.mxu0 0
    %2895 = vmatprep.subr.bf16.mxu0 0
    %2896 = vmatpush2.bf16.xpose.msra.mxu0 0
    %2897 = vmatprep.subr.bf16.mxu0 0
    %2898 = vmatpush2.bf16.xpose.msra.mxu0 0
    %2899 = vmatprep.subr.bf16.mxu0 0
    %2900 = vmatpush2.bf16.xpose.msra.mxu0 0
    %2901 = vmatprep.mubr.bf16.mxu0 0
    %2902 = vmatmul.mubr.bf16.gmra.mxu0 %v2864
    %v2903 = vpop.f32.mrf.mxu0
    %v2904 = vadd.f32 0.0, %v2903
    %v2905 = vpop.f32.mrf.mxu0
    %v2906 = vpop.f32.mrf.mxu0
    %v2907 = vpop.f32.mrf.mxu0
    %2908 = vdwg.mxu0
    %2910 = vrot.lane.b32.xlu0 %v2805, 96
    %v2911 = vpop.permute.xlu0 %2910
    %v2913 = vsel %vm318, %v2805, 0
    %v2916 = vsel %vm318, %v2911, 0
    %2918 = vmatprep.subr.bf16.mxu0 0
    %2919 = vmatpush1.bf16.xpose.msra.mxu0 0
    %2920 = vmatprep.subr.bf16.mxu0 0
    %2921 = vmatpush1.bf16.xpose.msra.mxu0 0
    %2922 = vmatprep.subr.bf16.mxu0 0
    %2923 = vmatpush1.bf16.xpose.msra.mxu0 0
    %2924 = vmatprep.subr.bf16.mxu0 0
    %2925 = vmatpush1.bf16.xpose.msra.mxu0 0
    %2926 = vmatprep.subr.bf16.mxu0 0
    %2927 = vmatpush1.bf16.xpose.msra.mxu0 0
    %2928 = vmatprep.subr.bf16.mxu0 0
    %2929 = vmatpush1.bf16.xpose.msra.mxu0 0
    %2930 = vmatprep.subr.bf16.mxu0 0
    %2931 = vmatpush1.bf16.xpose.msra.mxu0 0
    %2932 = vmatprep.subr.bf16.mxu0 0
    %2933 = vmatpush1.bf16.xpose.msra.mxu0 %v2916
    %2934 = vmatprep.subr.bf16.mxu0 0
    %2935 = vmatpush2.bf16.xpose.msra.mxu0 0
    %2936 = vmatprep.subr.bf16.mxu0 0
    %2937 = vmatpush2.bf16.xpose.msra.mxu0 0
    %2938 = vmatprep.subr.bf16.mxu0 0
    %2939 = vmatpush2.bf16.xpose.msra.mxu0 0
    %2940 = vmatprep.subr.bf16.mxu0 0
    %2941 = vmatpush2.bf16.xpose.msra.mxu0 0
    %2942 = vmatprep.subr.bf16.mxu0 0
    %2943 = vmatpush2.bf16.xpose.msra.mxu0 0
    %2944 = vmatprep.subr.bf16.mxu0 0
    %2945 = vmatpush2.bf16.xpose.msra.mxu0 0
    %2946 = vmatprep.subr.bf16.mxu0 0
    %2947 = vmatpush2.bf16.xpose.msra.mxu0 0
    %2948 = vmatprep.subr.bf16.mxu0 0
    %2949 = vmatpush2.bf16.xpose.msra.mxu0 0
    %2950 = vmatprep.mubr.bf16.mxu0 0
    %2951 = vmatmul.mubr.bf16.gmra.mxu0 %v2913
    %v2952 = vpop.f32.mrf.mxu0
    %v2953 = vadd.f32 0.0, %v2952
    %v2954 = vpop.f32.mrf.mxu0
    %v2955 = vpop.f32.mrf.mxu0
    %v2956 = vpop.f32.mrf.mxu0
    %2957 = vdwg.mxu0
    %2959 = vrot.lane.b32.xlu0 %v2806, 96
    %v2960 = vpop.permute.xlu0 %2959
    %v2962 = vsel %vm318, %v2806, 0
    %v2965 = vsel %vm318, %v2960, 0
    %2967 = vmatprep.subr.bf16.mxu0 0
    %2968 = vmatpush1.bf16.xpose.msra.mxu0 0
    %2969 = vmatprep.subr.bf16.mxu0 0
    %2970 = vmatpush1.bf16.xpose.msra.mxu0 0
    %2971 = vmatprep.subr.bf16.mxu0 0
    %2972 = vmatpush1.bf16.xpose.msra.mxu0 0
    %2973 = vmatprep.subr.bf16.mxu0 0
    %2974 = vmatpush1.bf16.xpose.msra.mxu0 0
    %2975 = vmatprep.subr.bf16.mxu0 0
    %2976 = vmatpush1.bf16.xpose.msra.mxu0 0
    %2977 = vmatprep.subr.bf16.mxu0 0
    %2978 = vmatpush1.bf16.xpose.msra.mxu0 0
    %2979 = vmatprep.subr.bf16.mxu0 0
    %2980 = vmatpush1.bf16.xpose.msra.mxu0 0
    %2981 = vmatprep.subr.bf16.mxu0 0
    %2982 = vmatpush1.bf16.xpose.msra.mxu0 %v2965
    %2983 = vmatprep.subr.bf16.mxu0 0
    %2984 = vmatpush2.bf16.xpose.msra.mxu0 0
    %2985 = vmatprep.subr.bf16.mxu0 0
    %2986 = vmatpush2.bf16.xpose.msra.mxu0 0
    %2987 = vmatprep.subr.bf16.mxu0 0
    %2988 = vmatpush2.bf16.xpose.msra.mxu0 0
    %2989 = vmatprep.subr.bf16.mxu0 0
    %2990 = vmatpush2.bf16.xpose.msra.mxu0 0
    %2991 = vmatprep.subr.bf16.mxu0 0
    %2992 = vmatpush2.bf16.xpose.msra.mxu0 0
    %2993 = vmatprep.subr.bf16.mxu0 0
    %2994 = vmatpush2.bf16.xpose.msra.mxu0 0
    %2995 = vmatprep.subr.bf16.mxu0 0
    %2996 = vmatpush2.bf16.xpose.msra.mxu0 0
    %2997 = vmatprep.subr.bf16.mxu0 0
    %2998 = vmatpush2.bf16.xpose.msra.mxu0 0
    %2999 = vmatprep.mubr.bf16.mxu0 0
    %3000 = vmatmul.mubr.bf16.gmra.mxu0 %v2962
    %v3001 = vpop.f32.mrf.mxu0
    %v3002 = vadd.f32 0.0, %v3001
    %v3003 = vpop.f32.mrf.mxu0
    %v3004 = vpop.f32.mrf.mxu0
    %v3005 = vpop.f32.mrf.mxu0
    %3006 = vdwg.mxu0
    %3008 = vrot.lane.b32.xlu0 %v2807, 96
    %v3009 = vpop.permute.xlu0 %3008
    %v3011 = vsel %vm318, %v2807, 0
    %v3014 = vsel %vm318, %v3009, 0
    %3016 = vmatprep.subr.bf16.mxu0 0
    %3017 = vmatpush1.bf16.xpose.msra.mxu0 0
    %3018 = vmatprep.subr.bf16.mxu0 0
    %3019 = vmatpush1.bf16.xpose.msra.mxu0 0
    %3020 = vmatprep.subr.bf16.mxu0 0
    %3021 = vmatpush1.bf16.xpose.msra.mxu0 0
    %3022 = vmatprep.subr.bf16.mxu0 0
    %3023 = vmatpush1.bf16.xpose.msra.mxu0 0
    %3024 = vmatprep.subr.bf16.mxu0 0
    %3025 = vmatpush1.bf16.xpose.msra.mxu0 0
    %3026 = vmatprep.subr.bf16.mxu0 0
    %3027 = vmatpush1.bf16.xpose.msra.mxu0 0
    %3028 = vmatprep.subr.bf16.mxu0 0
    %3029 = vmatpush1.bf16.xpose.msra.mxu0 0
    %3030 = vmatprep.subr.bf16.mxu0 0
    %3031 = vmatpush1.bf16.xpose.msra.mxu0 %v3014
    %3032 = vmatprep.subr.bf16.mxu0 0
    %3033 = vmatpush2.bf16.xpose.msra.mxu0 0
    %3034 = vmatprep.subr.bf16.mxu0 0
    %3035 = vmatpush2.bf16.xpose.msra.mxu0 0
    %3036 = vmatprep.subr.bf16.mxu0 0
    %3037 = vmatpush2.bf16.xpose.msra.mxu0 0
    %3038 = vmatprep.subr.bf16.mxu0 0
    %3039 = vmatpush2.bf16.xpose.msra.mxu0 0
    %3040 = vmatprep.subr.bf16.mxu0 0
    %3041 = vmatpush2.bf16.xpose.msra.mxu0 0
    %3042 = vmatprep.subr.bf16.mxu0 0
    %3043 = vmatpush2.bf16.xpose.msra.mxu0 0
    %3044 = vmatprep.subr.bf16.mxu0 0
    %3045 = vmatpush2.bf16.xpose.msra.mxu0 0
    %3046 = vmatprep.subr.bf16.mxu0 0
    %3047 = vmatpush2.bf16.xpose.msra.mxu0 0
    %3048 = vmatprep.mubr.bf16.mxu0 0
    %3049 = vmatmul.mubr.bf16.gmra.mxu0 %v3011
    %v3050 = vpop.f32.mrf.mxu0
    %v3051 = vadd.f32 0.0, %v3050
    %v3052 = vpop.f32.mrf.mxu0
    %v3053 = vpop.f32.mrf.mxu0
    %v3054 = vpop.f32.mrf.mxu0
    %3055 = vdwg.mxu0
    %3057 = vrot.lane.b32.xlu0 %v2808, 96
    %v3058 = vpop.permute.xlu0 %3057
    %v3060 = vsel %vm318, %v2808, 0
    %v3063 = vsel %vm318, %v3058, 0
    %3065 = vmatprep.subr.bf16.mxu0 0
    %3066 = vmatpush1.bf16.xpose.msra.mxu0 0
    %3067 = vmatprep.subr.bf16.mxu0 0
    %3068 = vmatpush1.bf16.xpose.msra.mxu0 0
    %3069 = vmatprep.subr.bf16.mxu0 0
    %3070 = vmatpush1.bf16.xpose.msra.mxu0 0
    %3071 = vmatprep.subr.bf16.mxu0 0
    %3072 = vmatpush1.bf16.xpose.msra.mxu0 0
    %3073 = vmatprep.subr.bf16.mxu0 0
    %3074 = vmatpush1.bf16.xpose.msra.mxu0 0
    %3075 = vmatprep.subr.bf16.mxu0 0
    %3076 = vmatpush1.bf16.xpose.msra.mxu0 0
    %3077 = vmatprep.subr.bf16.mxu0 0
    %3078 = vmatpush1.bf16.xpose.msra.mxu0 0
    %3079 = vmatprep.subr.bf16.mxu0 0
    %3080 = vmatpush1.bf16.xpose.msra.mxu0 %v3063
    %3081 = vmatprep.subr.bf16.mxu0 0
    %3082 = vmatpush2.bf16.xpose.msra.mxu0 0
    %3083 = vmatprep.subr.bf16.mxu0 0
    %3084 = vmatpush2.bf16.xpose.msra.mxu0 0
    %3085 = vmatprep.subr.bf16.mxu0 0
    %3086 = vmatpush2.bf16.xpose.msra.mxu0 0
    %3087 = vmatprep.subr.bf16.mxu0 0
    %3088 = vmatpush2.bf16.xpose.msra.mxu0 0
    %3089 = vmatprep.subr.bf16.mxu0 0
    %3090 = vmatpush2.bf16.xpose.msra.mxu0 0
    %3091 = vmatprep.subr.bf16.mxu0 0
    %3092 = vmatpush2.bf16.xpose.msra.mxu0 0
    %3093 = vmatprep.subr.bf16.mxu0 0
    %3094 = vmatpush2.bf16.xpose.msra.mxu0 0
    %3095 = vmatprep.subr.bf16.mxu0 0
    %3096 = vmatpush2.bf16.xpose.msra.mxu0 0
    %3097 = vmatprep.mubr.bf16.mxu0 0
    %3098 = vmatmul.mubr.bf16.gmra.mxu0 %v3060
    %v3099 = vpop.f32.mrf.mxu0
    %v3100 = vadd.f32 0.0, %v3099
    %v3101 = vpop.f32.mrf.mxu0
    %v3102 = vpop.f32.mrf.mxu0
    %v3103 = vpop.f32.mrf.mxu0
    %3104 = vdwg.mxu0
    %3106 = vrot.lane.b32.xlu0 %v2809, 96
    %v3107 = vpop.permute.xlu0 %3106
    %v3109 = vsel %vm318, %v2809, 0
    %v3112 = vsel %vm318, %v3107, 0
    %3114 = vmatprep.subr.bf16.mxu0 0
    %3115 = vmatpush1.bf16.xpose.msra.mxu0 0
    %3116 = vmatprep.subr.bf16.mxu0 0
    %3117 = vmatpush1.bf16.xpose.msra.mxu0 0
    %3118 = vmatprep.subr.bf16.mxu0 0
    %3119 = vmatpush1.bf16.xpose.msra.mxu0 0
    %3120 = vmatprep.subr.bf16.mxu0 0
    %3121 = vmatpush1.bf16.xpose.msra.mxu0 0
    %3122 = vmatprep.subr.bf16.mxu0 0
    %3123 = vmatpush1.bf16.xpose.msra.mxu0 0
    %3124 = vmatprep.subr.bf16.mxu0 0
    %3125 = vmatpush1.bf16.xpose.msra.mxu0 0
    %3126 = vmatprep.subr.bf16.mxu0 0
    %3127 = vmatpush1.bf16.xpose.msra.mxu0 0
    %3128 = vmatprep.subr.bf16.mxu0 0
    %3129 = vmatpush1.bf16.xpose.msra.mxu0 %v3112
    %3130 = vmatprep.subr.bf16.mxu0 0
    %3131 = vmatpush2.bf16.xpose.msra.mxu0 0
    %3132 = vmatprep.subr.bf16.mxu0 0
    %3133 = vmatpush2.bf16.xpose.msra.mxu0 0
    %3134 = vmatprep.subr.bf16.mxu0 0
    %3135 = vmatpush2.bf16.xpose.msra.mxu0 0
    %3136 = vmatprep.subr.bf16.mxu0 0
    %3137 = vmatpush2.bf16.xpose.msra.mxu0 0
    %3138 = vmatprep.subr.bf16.mxu0 0
    %3139 = vmatpush2.bf16.xpose.msra.mxu0 0
    %3140 = vmatprep.subr.bf16.mxu0 0
    %3141 = vmatpush2.bf16.xpose.msra.mxu0 0
    %3142 = vmatprep.subr.bf16.mxu0 0
    %3143 = vmatpush2.bf16.xpose.msra.mxu0 0
    %3144 = vmatprep.subr.bf16.mxu0 0
    %3145 = vmatpush2.bf16.xpose.msra.mxu0 0
    %3146 = vmatprep.mubr.bf16.mxu0 0
    %3147 = vmatmul.mubr.bf16.gmra.mxu0 %v3109
    %v3148 = vpop.f32.mrf.mxu0
    %v3149 = vadd.f32 0.0, %v3148
    %v3150 = vpop.f32.mrf.mxu0
    %v3151 = vpop.f32.mrf.mxu0
    %v3152 = vpop.f32.mrf.mxu0
    %3153 = vdwg.mxu0
    %3155 = vrot.lane.b32.xlu0 %v2810, 96
    %v3156 = vpop.permute.xlu0 %3155
    %v3158 = vsel %vm318, %v2810, 0
    %v3161 = vsel %vm318, %v3156, 0
    %3163 = vmatprep.subr.bf16.mxu0 0
    %3164 = vmatpush1.bf16.xpose.msra.mxu0 0
    %3165 = vmatprep.subr.bf16.mxu0 0
    %3166 = vmatpush1.bf16.xpose.msra.mxu0 0
    %3167 = vmatprep.subr.bf16.mxu0 0
    %3168 = vmatpush1.bf16.xpose.msra.mxu0 0
    %3169 = vmatprep.subr.bf16.mxu0 0
    %3170 = vmatpush1.bf16.xpose.msra.mxu0 0
    %3171 = vmatprep.subr.bf16.mxu0 0
    %3172 = vmatpush1.bf16.xpose.msra.mxu0 0
    %3173 = vmatprep.subr.bf16.mxu0 0
    %3174 = vmatpush1.bf16.xpose.msra.mxu0 0
    %3175 = vmatprep.subr.bf16.mxu0 0
    %3176 = vmatpush1.bf16.xpose.msra.mxu0 0
    %3177 = vmatprep.subr.bf16.mxu0 0
    %3178 = vmatpush1.bf16.xpose.msra.mxu0 %v3161
    %3179 = vmatprep.subr.bf16.mxu0 0
    %3180 = vmatpush2.bf16.xpose.msra.mxu0 0
    %3181 = vmatprep.subr.bf16.mxu0 0
    %3182 = vmatpush2.bf16.xpose.msra.mxu0 0
    %3183 = vmatprep.subr.bf16.mxu0 0
    %3184 = vmatpush2.bf16.xpose.msra.mxu0 0
    %3185 = vmatprep.subr.bf16.mxu0 0
    %3186 = vmatpush2.bf16.xpose.msra.mxu0 0
    %3187 = vmatprep.subr.bf16.mxu0 0
    %3188 = vmatpush2.bf16.xpose.msra.mxu0 0
    %3189 = vmatprep.subr.bf16.mxu0 0
    %3190 = vmatpush2.bf16.xpose.msra.mxu0 0
    %3191 = vmatprep.subr.bf16.mxu0 0
    %3192 = vmatpush2.bf16.xpose.msra.mxu0 0
    %3193 = vmatprep.subr.bf16.mxu0 0
    %3194 = vmatpush2.bf16.xpose.msra.mxu0 0
    %3195 = vmatprep.mubr.bf16.mxu0 0
    %3196 = vmatmul.mubr.bf16.gmra.mxu0 %v3158
    %v3197 = vpop.f32.mrf.mxu0
    %v3198 = vadd.f32 0.0, %v3197
    %v3199 = vpop.f32.mrf.mxu0
    %v3200 = vpop.f32.mrf.mxu0
    %v3201 = vpop.f32.mrf.mxu0
    %3202 = vdwg.mxu0
    %v3203 = vmul.f32 %v2855, 0.35355338
    %v3204 = vmul.f32 %v2904, 0.35355338
    %v3205 = vmul.f32 %v2953, 0.35355338
    %v3206 = vmul.f32 %v3002, 0.35355338
    %v3207 = vmul.f32 %v3051, 0.35355338
    %v3208 = vmul.f32 %v3100, 0.35355338
    %v3209 = vmul.f32 %v3149, 0.35355338
    %v3210 = vmul.f32 %v3198, 0.35355338
    %v3211 = vsel %vm318, %v3203, -inf
    %3212 = vmax.xlane.f32.xlu0 %v3211
    %v3213 = vpop.xlane.xlu0 %3212
    %v3214 = vsel %vm318, %v3204, -inf
    %3215 = vmax.xlane.f32.xlu0 %v3214
    %v3216 = vpop.xlane.xlu0 %3215
    %v3217 = vsel %vm318, %v3205, -inf
    %3218 = vmax.xlane.f32.xlu0 %v3217
    %v3219 = vpop.xlane.xlu0 %3218
    %v3220 = vsel %vm318, %v3206, -inf
    %3221 = vmax.xlane.f32.xlu0 %v3220
    %v3222 = vpop.xlane.xlu0 %3221
    %v3223 = vsel %vm318, %v3207, -inf
    %3224 = vmax.xlane.f32.xlu0 %v3223
    %v3225 = vpop.xlane.xlu0 %3224
    %v3226 = vsel %vm318, %v3208, -inf
    %3227 = vmax.xlane.f32.xlu0 %v3226
    %v3228 = vpop.xlane.xlu0 %3227
    %v3229 = vsel %vm318, %v3209, -inf
    %3230 = vmax.xlane.f32.xlu0 %v3229
    %v3231 = vpop.xlane.xlu0 %3230
    %v3232 = vsel %vm318, %v3210, -inf
    %3233 = vmax.xlane.f32.xlu0 %v3232
    %v3234 = vpop.xlane.xlu0 %3233
    %v3235 = vsub.f32 %v3203, %v3213
    %v3236 = vsub.f32 %v3204, %v3216
    %v3237 = vsub.f32 %v3205, %v3219
    %v3238 = vsub.f32 %v3206, %v3222
    %v3239 = vsub.f32 %v3207, %v3225
    %v3240 = vsub.f32 %v3208, %v3228
    %v3241 = vsub.f32 %v3209, %v3231
    %v3242 = vsub.f32 %v3210, %v3234
    %v3243 = vmul.f32 %v3235, 1.442695
    %v3244 = vpow.pop %v3243
    %v3245 = vmul.f32 %v3236, 1.442695
    %v3246 = vpow.pop %v3245
    %v3247 = vmul.f32 %v3237, 1.442695
    %v3248 = vpow.pop %v3247
    %v3249 = vmul.f32 %v3238, 1.442695
    %v3250 = vpow.pop %v3249
    %v3251 = vmul.f32 %v3239, 1.442695
    %v3252 = vpow.pop %v3251
    %v3253 = vmul.f32 %v3240, 1.442695
    %v3254 = vpow.pop %v3253
    %v3255 = vmul.f32 %v3241, 1.442695
    %v3256 = vpow.pop %v3255
    %v3257 = vmul.f32 %v3242, 1.442695
    %v3258 = vpow.pop %v3257
    %v3259 = vsel %vm318, %v3244, 0.0
    %3260 = vadd.xlane.f32.xlu0 %v3259
    %v3261 = vpop.xlane.xlu0 %3260
    %v3262 = vsel %vm318, %v3246, 0.0
    %3263 = vadd.xlane.f32.xlu0 %v3262
    %v3264 = vpop.xlane.xlu0 %3263
    %v3265 = vsel %vm318, %v3248, 0.0
    %3266 = vadd.xlane.f32.xlu0 %v3265
    %v3267 = vpop.xlane.xlu0 %3266
    %v3268 = vsel %vm318, %v3250, 0.0
    %3269 = vadd.xlane.f32.xlu0 %v3268
    %v3270 = vpop.xlane.xlu0 %3269
    %v3271 = vsel %vm318, %v3252, 0.0
    %3272 = vadd.xlane.f32.xlu0 %v3271
    %v3273 = vpop.xlane.xlu0 %3272
    %v3274 = vsel %vm318, %v3254, 0.0
    %3275 = vadd.xlane.f32.xlu0 %v3274
    %v3276 = vpop.xlane.xlu0 %3275
    %v3277 = vsel %vm318, %v3256, 0.0
    %3278 = vadd.xlane.f32.xlu0 %v3277
    %v3279 = vpop.xlane.xlu0 %3278
    %v3280 = vsel %vm318, %v3258, 0.0
    %3281 = vadd.xlane.f32.xlu0 %v3280
    %v3282 = vpop.xlane.xlu0 %3281
    %v3283 = vrcp.pop %v3261
    %v3284 = vrcp.pop %v3264
    %v3285 = vrcp.pop %v3267
    %v3286 = vrcp.pop %v3270
    %v3287 = vrcp.pop %v3273
    %v3288 = vrcp.pop %v3276
    %v3289 = vrcp.pop %v3279
    %v3290 = vrcp.pop %v3282
    %v3291 = vmul.f32 %v3244, %v3283
    %v3292 = vmul.f32 %v3246, %v3284
    %v3293 = vmul.f32 %v3248, %v3285
    %v3294 = vmul.f32 %v3250, %v3286
    %v3295 = vmul.f32 %v3252, %v3287
    %v3296 = vmul.f32 %v3254, %v3288
    %v3297 = vmul.f32 %v3256, %v3289
    %v3298 = vmul.f32 %v3258, %v3290
    %v3299 = vpack.c.bf16 %v3291, %v3291
    %v3300 = vpack.c.bf16 %v3292, %v3292
    %v3301 = vpack.c.bf16 %v3293, %v3293
    %v3302 = vpack.c.bf16 %v3294, %v3294
    %v3303 = vpack.c.bf16 %v3295, %v3295
    %v3304 = vpack.c.bf16 %v3296, %v3296
    %v3305 = vpack.c.bf16 %v3297, %v3297
    %v3306 = vpack.c.bf16 %v3298, %v3298
    %3307 = vrot.lane.b32.xlu0 %v2803, 64
    %v3308 = vpop.permute.xlu0 %3307
    %v3310 = vsel %vm318, %v3299, 0
    %v3313 = vsel %vm817, %v3308, 0
    %3315 = vmatprep.subr.bf16.mxu0 0
    %3316 = vmatpush1.bf16.msra.mxu0 0
    %3317 = vmatprep.subr.bf16.mxu0 0
    %3318 = vmatpush1.bf16.msra.mxu0 0
    %3319 = vmatprep.subr.bf16.mxu0 0
    %3320 = vmatpush1.bf16.msra.mxu0 0
    %3321 = vmatprep.subr.bf16.mxu0 0
    %3322 = vmatpush1.bf16.msra.mxu0 0
    %3323 = vmatprep.subr.bf16.mxu0 0
    %3324 = vmatpush1.bf16.msra.mxu0 0
    %3325 = vmatprep.subr.bf16.mxu0 0
    %3326 = vmatpush1.bf16.msra.mxu0 0
    %3327 = vmatprep.subr.bf16.mxu0 0
    %3328 = vmatpush1.bf16.msra.mxu0 0
    %3329 = vmatprep.subr.bf16.mxu0 0
    %3330 = vmatpush1.bf16.msra.mxu0 %v3313
    %3331 = vmatprep.subr.bf16.mxu0 0
    %3332 = vmatpush2.bf16.msra.mxu0 0
    %3333 = vmatprep.subr.bf16.mxu0 0
    %3334 = vmatpush2.bf16.msra.mxu0 0
    %3335 = vmatprep.subr.bf16.mxu0 0
    %3336 = vmatpush2.bf16.msra.mxu0 0
    %3337 = vmatprep.subr.bf16.mxu0 0
    %3338 = vmatpush2.bf16.msra.mxu0 0
    %3339 = vmatprep.subr.bf16.mxu0 0
    %3340 = vmatpush2.bf16.msra.mxu0 0
    %3341 = vmatprep.subr.bf16.mxu0 0
    %3342 = vmatpush2.bf16.msra.mxu0 0
    %3343 = vmatprep.subr.bf16.mxu0 0
    %3344 = vmatpush2.bf16.msra.mxu0 0
    %3345 = vmatprep.subr.bf16.mxu0 0
    %3346 = vmatpush2.bf16.msra.mxu0 0
    %3347 = vmatprep.mubr.bf16.mxu0 0
    %3348 = vmatmul.mubr.bf16.gmra.mxu0 %v3310
    %v3349 = vpop.f32.mrf.mxu0
    %v3350 = vadd.f32 0.0, %v3349
    %v3351 = vpop.f32.mrf.mxu0
    %v3352 = vpop.f32.mrf.mxu0
    %v3353 = vpop.f32.mrf.mxu0
    %3354 = vdwg.mxu0
    %3355 = vrot.lane.b32.xlu0 %v2804, 64
    %v3356 = vpop.permute.xlu0 %3355
    %v3358 = vsel %vm318, %v3300, 0
    %v3361 = vsel %vm817, %v3356, 0
    %3363 = vmatprep.subr.bf16.mxu0 0
    %3364 = vmatpush1.bf16.msra.mxu0 0
    %3365 = vmatprep.subr.bf16.mxu0 0
    %3366 = vmatpush1.bf16.msra.mxu0 0
    %3367 = vmatprep.subr.bf16.mxu0 0
    %3368 = vmatpush1.bf16.msra.mxu0 0
    %3369 = vmatprep.subr.bf16.mxu0 0
    %3370 = vmatpush1.bf16.msra.mxu0 0
    %3371 = vmatprep.subr.bf16.mxu0 0
    %3372 = vmatpush1.bf16.msra.mxu0 0
    %3373 = vmatprep.subr.bf16.mxu0 0
    %3374 = vmatpush1.bf16.msra.mxu0 0
    %3375 = vmatprep.subr.bf16.mxu0 0
    %3376 = vmatpush1.bf16.msra.mxu0 0
    %3377 = vmatprep.subr.bf16.mxu0 0
    %3378 = vmatpush1.bf16.msra.mxu0 %v3361
    %3379 = vmatprep.subr.bf16.mxu0 0
    %3380 = vmatpush2.bf16.msra.mxu0 0
    %3381 = vmatprep.subr.bf16.mxu0 0
    %3382 = vmatpush2.bf16.msra.mxu0 0
    %3383 = vmatprep.subr.bf16.mxu0 0
    %3384 = vmatpush2.bf16.msra.mxu0 0
    %3385 = vmatprep.subr.bf16.mxu0 0
    %3386 = vmatpush2.bf16.msra.mxu0 0
    %3387 = vmatprep.subr.bf16.mxu0 0
    %3388 = vmatpush2.bf16.msra.mxu0 0
    %3389 = vmatprep.subr.bf16.mxu0 0
    %3390 = vmatpush2.bf16.msra.mxu0 0
    %3391 = vmatprep.subr.bf16.mxu0 0
    %3392 = vmatpush2.bf16.msra.mxu0 0
    %3393 = vmatprep.subr.bf16.mxu0 0
    %3394 = vmatpush2.bf16.msra.mxu0 0
    %3395 = vmatprep.mubr.bf16.mxu0 0
    %3396 = vmatmul.mubr.bf16.gmra.mxu0 %v3358
    %v3397 = vpop.f32.mrf.mxu0
    %v3398 = vadd.f32 0.0, %v3397
    %v3399 = vpop.f32.mrf.mxu0
    %v3400 = vpop.f32.mrf.mxu0
    %v3401 = vpop.f32.mrf.mxu0
    %3402 = vdwg.mxu0
    %3403 = vrot.lane.b32.xlu0 %v2805, 64
    %v3404 = vpop.permute.xlu0 %3403
    %v3406 = vsel %vm318, %v3301, 0
    %v3409 = vsel %vm817, %v3404, 0
    %3411 = vmatprep.subr.bf16.mxu0 0
    %3412 = vmatpush1.bf16.msra.mxu0 0
    %3413 = vmatprep.subr.bf16.mxu0 0
    %3414 = vmatpush1.bf16.msra.mxu0 0
    %3415 = vmatprep.subr.bf16.mxu0 0
    %3416 = vmatpush1.bf16.msra.mxu0 0
    %3417 = vmatprep.subr.bf16.mxu0 0
    %3418 = vmatpush1.bf16.msra.mxu0 0
    %3419 = vmatprep.subr.bf16.mxu0 0
    %3420 = vmatpush1.bf16.msra.mxu0 0
    %3421 = vmatprep.subr.bf16.mxu0 0
    %3422 = vmatpush1.bf16.msra.mxu0 0
    %3423 = vmatprep.subr.bf16.mxu0 0
    %3424 = vmatpush1.bf16.msra.mxu0 0
    %3425 = vmatprep.subr.bf16.mxu0 0
    %3426 = vmatpush1.bf16.msra.mxu0 %v3409
    %3427 = vmatprep.subr.bf16.mxu0 0
    %3428 = vmatpush2.bf16.msra.mxu0 0
    %3429 = vmatprep.subr.bf16.mxu0 0
    %3430 = vmatpush2.bf16.msra.mxu0 0
    %3431 = vmatprep.subr.bf16.mxu0 0
    %3432 = vmatpush2.bf16.msra.mxu0 0
    %3433 = vmatprep.subr.bf16.mxu0 0
    %3434 = vmatpush2.bf16.msra.mxu0 0
    %3435 = vmatprep.subr.bf16.mxu0 0
    %3436 = vmatpush2.bf16.msra.mxu0 0
    %3437 = vmatprep.subr.bf16.mxu0 0
    %3438 = vmatpush2.bf16.msra.mxu0 0
    %3439 = vmatprep.subr.bf16.mxu0 0
    %3440 = vmatpush2.bf16.msra.mxu0 0
    %3441 = vmatprep.subr.bf16.mxu0 0
    %3442 = vmatpush2.bf16.msra.mxu0 0
    %3443 = vmatprep.mubr.bf16.mxu0 0
    %3444 = vmatmul.mubr.bf16.gmra.mxu0 %v3406
    %v3445 = vpop.f32.mrf.mxu0
    %v3446 = vadd.f32 0.0, %v3445
    %v3447 = vpop.f32.mrf.mxu0
    %v3448 = vpop.f32.mrf.mxu0
    %v3449 = vpop.f32.mrf.mxu0
    %3450 = vdwg.mxu0
    %3451 = vrot.lane.b32.xlu0 %v2806, 64
    %v3452 = vpop.permute.xlu0 %3451
    %v3454 = vsel %vm318, %v3302, 0
    %v3457 = vsel %vm817, %v3452, 0
    %3459 = vmatprep.subr.bf16.mxu0 0
    %3460 = vmatpush1.bf16.msra.mxu0 0
    %3461 = vmatprep.subr.bf16.mxu0 0
    %3462 = vmatpush1.bf16.msra.mxu0 0
    %3463 = vmatprep.subr.bf16.mxu0 0
    %3464 = vmatpush1.bf16.msra.mxu0 0
    %3465 = vmatprep.subr.bf16.mxu0 0
    %3466 = vmatpush1.bf16.msra.mxu0 0
    %3467 = vmatprep.subr.bf16.mxu0 0
    %3468 = vmatpush1.bf16.msra.mxu0 0
    %3469 = vmatprep.subr.bf16.mxu0 0
    %3470 = vmatpush1.bf16.msra.mxu0 0
    %3471 = vmatprep.subr.bf16.mxu0 0
    %3472 = vmatpush1.bf16.msra.mxu0 0
    %3473 = vmatprep.subr.bf16.mxu0 0
    %3474 = vmatpush1.bf16.msra.mxu0 %v3457
    %3475 = vmatprep.subr.bf16.mxu0 0
    %3476 = vmatpush2.bf16.msra.mxu0 0
    %3477 = vmatprep.subr.bf16.mxu0 0
    %3478 = vmatpush2.bf16.msra.mxu0 0
    %3479 = vmatprep.subr.bf16.mxu0 0
    %3480 = vmatpush2.bf16.msra.mxu0 0
    %3481 = vmatprep.subr.bf16.mxu0 0
    %3482 = vmatpush2.bf16.msra.mxu0 0
    %3483 = vmatprep.subr.bf16.mxu0 0
    %3484 = vmatpush2.bf16.msra.mxu0 0
    %3485 = vmatprep.subr.bf16.mxu0 0
    %3486 = vmatpush2.bf16.msra.mxu0 0
    %3487 = vmatprep.subr.bf16.mxu0 0
    %3488 = vmatpush2.bf16.msra.mxu0 0
    %3489 = vmatprep.subr.bf16.mxu0 0
    %3490 = vmatpush2.bf16.msra.mxu0 0
    %3491 = vmatprep.mubr.bf16.mxu0 0
    %3492 = vmatmul.mubr.bf16.gmra.mxu0 %v3454
    %v3493 = vpop.f32.mrf.mxu0
    %v3494 = vadd.f32 0.0, %v3493
    %v3495 = vpop.f32.mrf.mxu0
    %v3496 = vpop.f32.mrf.mxu0
    %v3497 = vpop.f32.mrf.mxu0
    %3498 = vdwg.mxu0
    %3499 = vrot.lane.b32.xlu0 %v2807, 64
    %v3500 = vpop.permute.xlu0 %3499
    %v3502 = vsel %vm318, %v3303, 0
    %v3505 = vsel %vm817, %v3500, 0
    %3507 = vmatprep.subr.bf16.mxu0 0
    %3508 = vmatpush1.bf16.msra.mxu0 0
    %3509 = vmatprep.subr.bf16.mxu0 0
    %3510 = vmatpush1.bf16.msra.mxu0 0
    %3511 = vmatprep.subr.bf16.mxu0 0
    %3512 = vmatpush1.bf16.msra.mxu0 0
    %3513 = vmatprep.subr.bf16.mxu0 0
    %3514 = vmatpush1.bf16.msra.mxu0 0
    %3515 = vmatprep.subr.bf16.mxu0 0
    %3516 = vmatpush1.bf16.msra.mxu0 0
    %3517 = vmatprep.subr.bf16.mxu0 0
    %3518 = vmatpush1.bf16.msra.mxu0 0
    %3519 = vmatprep.subr.bf16.mxu0 0
    %3520 = vmatpush1.bf16.msra.mxu0 0
    %3521 = vmatprep.subr.bf16.mxu0 0
    %3522 = vmatpush1.bf16.msra.mxu0 %v3505
    %3523 = vmatprep.subr.bf16.mxu0 0
    %3524 = vmatpush2.bf16.msra.mxu0 0
    %3525 = vmatprep.subr.bf16.mxu0 0
    %3526 = vmatpush2.bf16.msra.mxu0 0
    %3527 = vmatprep.subr.bf16.mxu0 0
    %3528 = vmatpush2.bf16.msra.mxu0 0
    %3529 = vmatprep.subr.bf16.mxu0 0
    %3530 = vmatpush2.bf16.msra.mxu0 0
    %3531 = vmatprep.subr.bf16.mxu0 0
    %3532 = vmatpush2.bf16.msra.mxu0 0
    %3533 = vmatprep.subr.bf16.mxu0 0
    %3534 = vmatpush2.bf16.msra.mxu0 0
    %3535 = vmatprep.subr.bf16.mxu0 0
    %3536 = vmatpush2.bf16.msra.mxu0 0
    %3537 = vmatprep.subr.bf16.mxu0 0
    %3538 = vmatpush2.bf16.msra.mxu0 0
    %3539 = vmatprep.mubr.bf16.mxu0 0
    %3540 = vmatmul.mubr.bf16.gmra.mxu0 %v3502
    %v3541 = vpop.f32.mrf.mxu0
    %v3542 = vadd.f32 0.0, %v3541
    %v3543 = vpop.f32.mrf.mxu0
    %v3544 = vpop.f32.mrf.mxu0
    %v3545 = vpop.f32.mrf.mxu0
    %3546 = vdwg.mxu0
    %3547 = vrot.lane.b32.xlu0 %v2808, 64
    %v3548 = vpop.permute.xlu0 %3547
    %v3550 = vsel %vm318, %v3304, 0
    %v3553 = vsel %vm817, %v3548, 0
    %3555 = vmatprep.subr.bf16.mxu0 0
    %3556 = vmatpush1.bf16.msra.mxu0 0
    %3557 = vmatprep.subr.bf16.mxu0 0
    %3558 = vmatpush1.bf16.msra.mxu0 0
    %3559 = vmatprep.subr.bf16.mxu0 0
    %3560 = vmatpush1.bf16.msra.mxu0 0
    %3561 = vmatprep.subr.bf16.mxu0 0
    %3562 = vmatpush1.bf16.msra.mxu0 0
    %3563 = vmatprep.subr.bf16.mxu0 0
    %3564 = vmatpush1.bf16.msra.mxu0 0
    %3565 = vmatprep.subr.bf16.mxu0 0
    %3566 = vmatpush1.bf16.msra.mxu0 0
    %3567 = vmatprep.subr.bf16.mxu0 0
    %3568 = vmatpush1.bf16.msra.mxu0 0
    %3569 = vmatprep.subr.bf16.mxu0 0
    %3570 = vmatpush1.bf16.msra.mxu0 %v3553
    %3571 = vmatprep.subr.bf16.mxu0 0
    %3572 = vmatpush2.bf16.msra.mxu0 0
    %3573 = vmatprep.subr.bf16.mxu0 0
    %3574 = vmatpush2.bf16.msra.mxu0 0
    %3575 = vmatprep.subr.bf16.mxu0 0
    %3576 = vmatpush2.bf16.msra.mxu0 0
    %3577 = vmatprep.subr.bf16.mxu0 0
    %3578 = vmatpush2.bf16.msra.mxu0 0
    %3579 = vmatprep.subr.bf16.mxu0 0
    %3580 = vmatpush2.bf16.msra.mxu0 0
    %3581 = vmatprep.subr.bf16.mxu0 0
    %3582 = vmatpush2.bf16.msra.mxu0 0
    %3583 = vmatprep.subr.bf16.mxu0 0
    %3584 = vmatpush2.bf16.msra.mxu0 0
    %3585 = vmatprep.subr.bf16.mxu0 0
    %3586 = vmatpush2.bf16.msra.mxu0 0
    %3587 = vmatprep.mubr.bf16.mxu0 0
    %3588 = vmatmul.mubr.bf16.gmra.mxu0 %v3550
    %v3589 = vpop.f32.mrf.mxu0
    %v3590 = vadd.f32 0.0, %v3589
    %v3591 = vpop.f32.mrf.mxu0
    %v3592 = vpop.f32.mrf.mxu0
    %v3593 = vpop.f32.mrf.mxu0
    %3594 = vdwg.mxu0
    %3595 = vrot.lane.b32.xlu0 %v2809, 64
    %v3596 = vpop.permute.xlu0 %3595
    %v3598 = vsel %vm318, %v3305, 0
    %v3601 = vsel %vm817, %v3596, 0
    %3603 = vmatprep.subr.bf16.mxu0 0
    %3604 = vmatpush1.bf16.msra.mxu0 0
    %3605 = vmatprep.subr.bf16.mxu0 0
    %3606 = vmatpush1.bf16.msra.mxu0 0
    %3607 = vmatprep.subr.bf16.mxu0 0
    %3608 = vmatpush1.bf16.msra.mxu0 0
    %3609 = vmatprep.subr.bf16.mxu0 0
    %3610 = vmatpush1.bf16.msra.mxu0 0
    %3611 = vmatprep.subr.bf16.mxu0 0
    %3612 = vmatpush1.bf16.msra.mxu0 0
    %3613 = vmatprep.subr.bf16.mxu0 0
    %3614 = vmatpush1.bf16.msra.mxu0 0
    %3615 = vmatprep.subr.bf16.mxu0 0
    %3616 = vmatpush1.bf16.msra.mxu0 0
    %3617 = vmatprep.subr.bf16.mxu0 0
    %3618 = vmatpush1.bf16.msra.mxu0 %v3601
    %3619 = vmatprep.subr.bf16.mxu0 0
    %3620 = vmatpush2.bf16.msra.mxu0 0
    %3621 = vmatprep.subr.bf16.mxu0 0
    %3622 = vmatpush2.bf16.msra.mxu0 0
    %3623 = vmatprep.subr.bf16.mxu0 0
    %3624 = vmatpush2.bf16.msra.mxu0 0
    %3625 = vmatprep.subr.bf16.mxu0 0
    %3626 = vmatpush2.bf16.msra.mxu0 0
    %3627 = vmatprep.subr.bf16.mxu0 0
    %3628 = vmatpush2.bf16.msra.mxu0 0
    %3629 = vmatprep.subr.bf16.mxu0 0
    %3630 = vmatpush2.bf16.msra.mxu0 0
    %3631 = vmatprep.subr.bf16.mxu0 0
    %3632 = vmatpush2.bf16.msra.mxu0 0
    %3633 = vmatprep.subr.bf16.mxu0 0
    %3634 = vmatpush2.bf16.msra.mxu0 0
    %3635 = vmatprep.mubr.bf16.mxu0 0
    %3636 = vmatmul.mubr.bf16.gmra.mxu0 %v3598
    %v3637 = vpop.f32.mrf.mxu0
    %v3638 = vadd.f32 0.0, %v3637
    %v3639 = vpop.f32.mrf.mxu0
    %v3640 = vpop.f32.mrf.mxu0
    %v3641 = vpop.f32.mrf.mxu0
    %3642 = vdwg.mxu0
    %3643 = vrot.lane.b32.xlu0 %v2810, 64
    %v3644 = vpop.permute.xlu0 %3643
    %v3646 = vsel %vm318, %v3306, 0
    %v3649 = vsel %vm817, %v3644, 0
    %3651 = vmatprep.subr.bf16.mxu0 0
    %3652 = vmatpush1.bf16.msra.mxu0 0
    %3653 = vmatprep.subr.bf16.mxu0 0
    %3654 = vmatpush1.bf16.msra.mxu0 0
    %3655 = vmatprep.subr.bf16.mxu0 0
    %3656 = vmatpush1.bf16.msra.mxu0 0
    %3657 = vmatprep.subr.bf16.mxu0 0
    %3658 = vmatpush1.bf16.msra.mxu0 0
    %3659 = vmatprep.subr.bf16.mxu0 0
    %3660 = vmatpush1.bf16.msra.mxu0 0
    %3661 = vmatprep.subr.bf16.mxu0 0
    %3662 = vmatpush1.bf16.msra.mxu0 0
    %3663 = vmatprep.subr.bf16.mxu0 0
    %3664 = vmatpush1.bf16.msra.mxu0 0
    %3665 = vmatprep.subr.bf16.mxu0 0
    %3666 = vmatpush1.bf16.msra.mxu0 %v3649
    %3667 = vmatprep.subr.bf16.mxu0 0
    %3668 = vmatpush2.bf16.msra.mxu0 0
    %3669 = vmatprep.subr.bf16.mxu0 0
    %3670 = vmatpush2.bf16.msra.mxu0 0
    %3671 = vmatprep.subr.bf16.mxu0 0
    %3672 = vmatpush2.bf16.msra.mxu0 0
    %3673 = vmatprep.subr.bf16.mxu0 0
    %3674 = vmatpush2.bf16.msra.mxu0 0
    %3675 = vmatprep.subr.bf16.mxu0 0
    %3676 = vmatpush2.bf16.msra.mxu0 0
    %3677 = vmatprep.subr.bf16.mxu0 0
    %3678 = vmatpush2.bf16.msra.mxu0 0
    %3679 = vmatprep.subr.bf16.mxu0 0
    %3680 = vmatpush2.bf16.msra.mxu0 0
    %3681 = vmatprep.subr.bf16.mxu0 0
    %3682 = vmatpush2.bf16.msra.mxu0 0
    %3683 = vmatprep.mubr.bf16.mxu0 0
    %3684 = vmatmul.mubr.bf16.gmra.mxu0 %v3646
    %v3685 = vpop.f32.mrf.mxu0
    %v3686 = vadd.f32 0.0, %v3685
    %v3687 = vpop.f32.mrf.mxu0
    %v3688 = vpop.f32.mrf.mxu0
    %v3689 = vpop.f32.mrf.mxu0
    %3690 = vdwg.mxu0
    %v3691 = vpack.c.bf16 %v3398, %v3350
    %v3692 = vpack.c.bf16 %v3494, %v3446
    %v3693 = vpack.c.bf16 %v3590, %v3542
    %v3694 = vpack.c.bf16 %v3686, %v3638
    %s3695 = scalar_lea.vmem %s5, 16
    %v3696 = vld [vmem:[%s3695] sm:$0xf]
    %v3697 = vld [vmem:[%s3695 + $0x4] sm:$0xf]
    %v3698 = vld [vmem:[%s3695 + $0x8] sm:$0xf]
    %v3699 = vld [vmem:[%s3695 + $0xc] sm:$0xf]
    %v3701 = vsel %vm318, %v3691, 0
    %v3704 = vsel %vm817, %v3696, 0
    %3706 = vmatprep.subr.bf16.mxu0 0
    %3707 = vmatpush1.bf16.msra.mxu0 0
    %3708 = vmatprep.subr.bf16.mxu0 0
    %3709 = vmatpush1.bf16.msra.mxu0 0
    %3710 = vmatprep.subr.bf16.mxu0 0
    %3711 = vmatpush1.bf16.msra.mxu0 0
    %3712 = vmatprep.subr.bf16.mxu0 0
    %3713 = vmatpush1.bf16.msra.mxu0 0
    %3714 = vmatprep.subr.bf16.mxu0 0
    %3715 = vmatpush1.bf16.msra.mxu0 0
    %3716 = vmatprep.subr.bf16.mxu0 0
    %3717 = vmatpush1.bf16.msra.mxu0 0
    %3718 = vmatprep.subr.bf16.mxu0 0
    %3719 = vmatpush1.bf16.msra.mxu0 0
    %3720 = vmatprep.subr.bf16.mxu0 0
    %3721 = vmatpush1.bf16.msra.mxu0 %v3704
    %3722 = vmatprep.subr.bf16.mxu0 0
    %3723 = vmatpush2.bf16.msra.mxu0 0
    %3724 = vmatprep.subr.bf16.mxu0 0
    %3725 = vmatpush2.bf16.msra.mxu0 0
    %3726 = vmatprep.subr.bf16.mxu0 0
    %3727 = vmatpush2.bf16.msra.mxu0 0
    %3728 = vmatprep.subr.bf16.mxu0 0
    %3729 = vmatpush2.bf16.msra.mxu0 0
    %3730 = vmatprep.subr.bf16.mxu0 0
    %3731 = vmatpush2.bf16.msra.mxu0 0
    %3732 = vmatprep.subr.bf16.mxu0 0
    %3733 = vmatpush2.bf16.msra.mxu0 0
    %3734 = vmatprep.subr.bf16.mxu0 0
    %3735 = vmatpush2.bf16.msra.mxu0 0
    %3736 = vmatprep.subr.bf16.mxu0 0
    %3737 = vmatpush2.bf16.msra.mxu0 0
    %3738 = vmatprep.mubr.bf16.mxu0 0
    %3739 = vmatmul.mubr.bf16.gmra.mxu0 %v3701
    %v3740 = vpop.f32.mrf.mxu0
    %v3741 = vadd.f32 0.0, %v3740
    %v3742 = vpop.f32.mrf.mxu0
    %v3743 = vpop.f32.mrf.mxu0
    %v3744 = vadd.f32 0.0, %v3743
    %v3745 = vpop.f32.mrf.mxu0
    %3746 = vdwg.mxu0
    %v3748 = vsel %vm318, %v3692, 0
    %v3751 = vsel %vm817, %v3697, 0
    %3753 = vmatprep.subr.bf16.mxu0 0
    %3754 = vmatpush1.bf16.msra.mxu0 0
    %3755 = vmatprep.subr.bf16.mxu0 0
    %3756 = vmatpush1.bf16.msra.mxu0 0
    %3757 = vmatprep.subr.bf16.mxu0 0
    %3758 = vmatpush1.bf16.msra.mxu0 0
    %3759 = vmatprep.subr.bf16.mxu0 0
    %3760 = vmatpush1.bf16.msra.mxu0 0
    %3761 = vmatprep.subr.bf16.mxu0 0
    %3762 = vmatpush1.bf16.msra.mxu0 0
    %3763 = vmatprep.subr.bf16.mxu0 0
    %3764 = vmatpush1.bf16.msra.mxu0 0
    %3765 = vmatprep.subr.bf16.mxu0 0
    %3766 = vmatpush1.bf16.msra.mxu0 0
    %3767 = vmatprep.subr.bf16.mxu0 0
    %3768 = vmatpush1.bf16.msra.mxu0 %v3751
    %3769 = vmatprep.subr.bf16.mxu0 0
    %3770 = vmatpush2.bf16.msra.mxu0 0
    %3771 = vmatprep.subr.bf16.mxu0 0
    %3772 = vmatpush2.bf16.msra.mxu0 0
    %3773 = vmatprep.subr.bf16.mxu0 0
    %3774 = vmatpush2.bf16.msra.mxu0 0
    %3775 = vmatprep.subr.bf16.mxu0 0
    %3776 = vmatpush2.bf16.msra.mxu0 0
    %3777 = vmatprep.subr.bf16.mxu0 0
    %3778 = vmatpush2.bf16.msra.mxu0 0
    %3779 = vmatprep.subr.bf16.mxu0 0
    %3780 = vmatpush2.bf16.msra.mxu0 0
    %3781 = vmatprep.subr.bf16.mxu0 0
    %3782 = vmatpush2.bf16.msra.mxu0 0
    %3783 = vmatprep.subr.bf16.mxu0 0
    %3784 = vmatpush2.bf16.msra.mxu0 0
    %3785 = vmatprep.mubr.bf16.mxu0 0
    %3786 = vmatmul.mubr.bf16.gmra.mxu0 %v3748
    %v3787 = vpop.f32.mrf.mxu0
    %v3788 = vadd.f32 0.0, %v3787
    %v3789 = vpop.f32.mrf.mxu0
    %v3790 = vpop.f32.mrf.mxu0
    %v3791 = vadd.f32 0.0, %v3790
    %v3792 = vpop.f32.mrf.mxu0
    %3793 = vdwg.mxu0
    %v3795 = vsel %vm318, %v3693, 0
    %v3798 = vsel %vm817, %v3698, 0
    %3800 = vmatprep.subr.bf16.mxu0 0
    %3801 = vmatpush1.bf16.msra.mxu0 0
    %3802 = vmatprep.subr.bf16.mxu0 0
    %3803 = vmatpush1.bf16.msra.mxu0 0
    %3804 = vmatprep.subr.bf16.mxu0 0
    %3805 = vmatpush1.bf16.msra.mxu0 0
    %3806 = vmatprep.subr.bf16.mxu0 0
    %3807 = vmatpush1.bf16.msra.mxu0 0
    %3808 = vmatprep.subr.bf16.mxu0 0
    %3809 = vmatpush1.bf16.msra.mxu0 0
    %3810 = vmatprep.subr.bf16.mxu0 0
    %3811 = vmatpush1.bf16.msra.mxu0 0
    %3812 = vmatprep.subr.bf16.mxu0 0
    %3813 = vmatpush1.bf16.msra.mxu0 0
    %3814 = vmatprep.subr.bf16.mxu0 0
    %3815 = vmatpush1.bf16.msra.mxu0 %v3798
    %3816 = vmatprep.subr.bf16.mxu0 0
    %3817 = vmatpush2.bf16.msra.mxu0 0
    %3818 = vmatprep.subr.bf16.mxu0 0
    %3819 = vmatpush2.bf16.msra.mxu0 0
    %3820 = vmatprep.subr.bf16.mxu0 0
    %3821 = vmatpush2.bf16.msra.mxu0 0
    %3822 = vmatprep.subr.bf16.mxu0 0
    %3823 = vmatpush2.bf16.msra.mxu0 0
    %3824 = vmatprep.subr.bf16.mxu0 0
    %3825 = vmatpush2.bf16.msra.mxu0 0
    %3826 = vmatprep.subr.bf16.mxu0 0
    %3827 = vmatpush2.bf16.msra.mxu0 0
    %3828 = vmatprep.subr.bf16.mxu0 0
    %3829 = vmatpush2.bf16.msra.mxu0 0
    %3830 = vmatprep.subr.bf16.mxu0 0
    %3831 = vmatpush2.bf16.msra.mxu0 0
    %3832 = vmatprep.mubr.bf16.mxu0 0
    %3833 = vmatmul.mubr.bf16.gmra.mxu0 %v3795
    %v3834 = vpop.f32.mrf.mxu0
    %v3835 = vadd.f32 0.0, %v3834
    %v3836 = vpop.f32.mrf.mxu0
    %v3837 = vpop.f32.mrf.mxu0
    %v3838 = vadd.f32 0.0, %v3837
    %v3839 = vpop.f32.mrf.mxu0
    %3840 = vdwg.mxu0
    %v3842 = vsel %vm318, %v3694, 0
    %v3845 = vsel %vm817, %v3699, 0
    %3847 = vmatprep.subr.bf16.mxu0 0
    %3848 = vmatpush1.bf16.msra.mxu0 0
    %3849 = vmatprep.subr.bf16.mxu0 0
    %3850 = vmatpush1.bf16.msra.mxu0 0
    %3851 = vmatprep.subr.bf16.mxu0 0
    %3852 = vmatpush1.bf16.msra.mxu0 0
    %3853 = vmatprep.subr.bf16.mxu0 0
    %3854 = vmatpush1.bf16.msra.mxu0 0
    %3855 = vmatprep.subr.bf16.mxu0 0
    %3856 = vmatpush1.bf16.msra.mxu0 0
    %3857 = vmatprep.subr.bf16.mxu0 0
    %3858 = vmatpush1.bf16.msra.mxu0 0
    %3859 = vmatprep.subr.bf16.mxu0 0
    %3860 = vmatpush1.bf16.msra.mxu0 0
    %3861 = vmatprep.subr.bf16.mxu0 0
    %3862 = vmatpush1.bf16.msra.mxu0 %v3845
    %3863 = vmatprep.subr.bf16.mxu0 0
    %3864 = vmatpush2.bf16.msra.mxu0 0
    %3865 = vmatprep.subr.bf16.mxu0 0
    %3866 = vmatpush2.bf16.msra.mxu0 0
    %3867 = vmatprep.subr.bf16.mxu0 0
    %3868 = vmatpush2.bf16.msra.mxu0 0
    %3869 = vmatprep.subr.bf16.mxu0 0
    %3870 = vmatpush2.bf16.msra.mxu0 0
    %3871 = vmatprep.subr.bf16.mxu0 0
    %3872 = vmatpush2.bf16.msra.mxu0 0
    %3873 = vmatprep.subr.bf16.mxu0 0
    %3874 = vmatpush2.bf16.msra.mxu0 0
    %3875 = vmatprep.subr.bf16.mxu0 0
    %3876 = vmatpush2.bf16.msra.mxu0 0
    %3877 = vmatprep.subr.bf16.mxu0 0
    %3878 = vmatpush2.bf16.msra.mxu0 0
    %3879 = vmatprep.mubr.bf16.mxu0 0
    %3880 = vmatmul.mubr.bf16.gmra.mxu0 %v3842
    %v3881 = vpop.f32.mrf.mxu0
    %v3882 = vadd.f32 0.0, %v3881
    %v3883 = vpop.f32.mrf.mxu0
    %v3884 = vpop.f32.mrf.mxu0
    %v3885 = vadd.f32 0.0, %v3884
    %v3886 = vpop.f32.mrf.mxu0
    %3887 = vdwg.mxu0
    %v3888 = vsel %vm242, %v3741, 0.0
    %v3889 = vsel %vm242, %v3788, 0.0
    %v3890 = vadd.f32 %v3888, %v3889
    %v3891 = vsel %vm242, %v3835, 0.0
    %v3892 = vadd.f32 %v3890, %v3891
    %v3893 = vsel %vm242, %v3882, 0.0
    %v3894 = vadd.f32 %v3892, %v3893
    %v3895 = vsel %vm242, %v3744, 0.0
    %v3896 = vsel %vm242, %v3791, 0.0
    %v3897 = vadd.f32 %v3895, %v3896
    %v3898 = vsel %vm242, %v3838, 0.0
    %v3899 = vadd.f32 %v3897, %v3898
    %v3900 = vsel %vm242, %v3885, 0.0
    %v3901 = vadd.f32 %v3899, %v3900
    %s3902 = scalar_lea.vmem [#allocation10], 6
    %v3903 = vld [vmem:[%s3902] sm:$0x1]
    %v3905 = vlaneseq
    %v3906 = vshrl.u32 %v3905, 7
    %v3907 = vsub.s32 0, %v3906
    %v3908 = vrot.slane %v3903, %v3907
    %v3910 = vadd.f32 %v3894, %v3908
    %v3911 = vadd.f32 %v3901, %v3908
    %v3912 = vadd.f32 %v3910, %v2711
    %v3913 = vadd.f32 %v3911, %v2712
    %s3914 = scalar_lea.vmem [#allocation10], 8
    %v3915 = vld [vmem:[%s3914] sm:$0x1]
    %s3916 = scalar_lea.vmem [#allocation10], 9
    %v3917 = vld [vmem:[%s3916] sm:$0x1]
    %v3918 = vsel %vm242, %v3912, 0.0
    %3919 = vadd.xlane.f32.xlu0 %v3918
    %v3920 = vpop.xlane.xlu0 %3919
    %v3921 = vsel %vm242, %v3913, 0.0
    %3922 = vadd.xlane.f32.xlu0 %v3921
    %v3923 = vpop.xlane.xlu0 %3922
    %v3924 = vmul.f32 %v3920, %v1428
    %v3925 = vmul.f32 %v3923, %v1428
    %v3926 = vsub.f32 %v3912, %v3924
    %v3927 = vsub.f32 %v3913, %v3925
    %v3928 = vmul.f32 %v3926, %v3926
    %v3929 = vmul.f32 %v3927, %v3927
    %v3930 = vsel %vm242, %v3928, 0.0
    %3931 = vadd.xlane.f32.xlu0 %v3930
    %v3932 = vpop.xlane.xlu0 %3931
    %v3933 = vsel %vm242, %v3929, 0.0
    %3934 = vadd.xlane.f32.xlu0 %v3933
    %v3935 = vpop.xlane.xlu0 %3934
    %v3936 = vmul.f32 %v3932, %v1428
    %v3937 = vmul.f32 %v3935, %v1428
    %v3938 = vadd.f32 %v3936, 1e-05
    %v3939 = vadd.f32 %v3937, 1e-05
    %v3940 = vrsqrt.pop %v3938
    %v3941 = vrsqrt.pop %v3939
    %v3942 = vmul.f32 %v3926, %v3940
    %v3943 = vmul.f32 %v3927, %v3941
    %v3945 = vlaneseq
    %v3946 = vshrl.u32 %v3945, 7
    %v3947 = vsub.s32 0, %v3946
    %v3948 = vrot.slane %v3915, %v3947
    %v3950 = vmul.f32 %v3942, %v3948
    %v3951 = vmul.f32 %v3943, %v3948
    %v3953 = vlaneseq
    %v3954 = vshrl.u32 %v3953, 7
    %v3955 = vsub.s32 0, %v3954
    %v3956 = vrot.slane %v3917, %v3955
    %v3958 = vadd.f32 %v3950, %v3956
    %v3959 = vadd.f32 %v3951, %v3956
    %v3960 = vpack.c.bf16 %v3959, %v3958
    %s3961 = scalar_lea.vmem [#allocation11], 256
    %v3962 = vld [vmem:[%s3961] sm:$0xff]
    %v3963 = vld [vmem:[%s3961 + $0x8] sm:$0xff]
    %v3964 = vld [vmem:[%s3961 + $0x10] sm:$0xff]
    %v3965 = vld [vmem:[%s3961 + $0x18] sm:$0xff]
    %v3966 = vld [vmem:[%s3961 + $0x20] sm:$0xff]
    %v3967 = vld [vmem:[%s3961 + $0x28] sm:$0xff]
    %v3968 = vld [vmem:[%s3961 + $0x30] sm:$0xff]
    %v3969 = vld [vmem:[%s3961 + $0x38] sm:$0xff]
    %v3970 = vld [vmem:[%s3961 + $0x40] sm:$0xff]
    %v3971 = vld [vmem:[%s3961 + $0x48] sm:$0xff]
    %v3972 = vld [vmem:[%s3961 + $0x50] sm:$0xff]
    %v3973 = vld [vmem:[%s3961 + $0x58] sm:$0xff]
    %v3974 = vld [vmem:[%s3961 + $0x60] sm:$0xff]
    %v3975 = vld [vmem:[%s3961 + $0x68] sm:$0xff]
    %v3976 = vld [vmem:[%s3961 + $0x70] sm:$0xff]
    %v3977 = vld [vmem:[%s3961 + $0x78] sm:$0xff]
    %v3978 = vld [vmem:[%s3961 + $0x80] sm:$0xff]
    %v3979 = vld [vmem:[%s3961 + $0x88] sm:$0xff]
    %v3980 = vld [vmem:[%s3961 + $0x90] sm:$0xff]
    %v3981 = vld [vmem:[%s3961 + $0x98] sm:$0xff]
    %v3982 = vld [vmem:[%s3961 + $0xa0] sm:$0xff]
    %v3983 = vld [vmem:[%s3961 + $0xa8] sm:$0xff]
    %v3984 = vld [vmem:[%s3961 + $0xb0] sm:$0xff]
    %v3985 = vld [vmem:[%s3961 + $0xb8] sm:$0xff]
    %v3986 = vld [vmem:[%s3961 + $0xc0] sm:$0xff]
    %v3987 = vld [vmem:[%s3961 + $0xc8] sm:$0xff]
    %v3988 = vld [vmem:[%s3961 + $0xd0] sm:$0xff]
    %v3989 = vld [vmem:[%s3961 + $0xd8] sm:$0xff]
    %v3990 = vld [vmem:[%s3961 + $0xe0] sm:$0xff]
    %v3991 = vld [vmem:[%s3961 + $0xe8] sm:$0xff]
    %v3992 = vld [vmem:[%s3961 + $0xf0] sm:$0xff]
    %v3993 = vld [vmem:[%s3961 + $0xf8] sm:$0xff]
    %s3994 = scalar_lea.vmem [#allocation13], 16
    %v3995 = vld [vmem:[%s3994] sm:$0xff]
    %v3996 = vld [vmem:[%s3994 + $0x8] sm:$0xff]
    %v3999 = vlaneseq
    %v4000 = vshrl.u32 %v3999, 7
    %v4001 = vsub.s32 0, %v4000
    %v4002 = vrot.slane %v3995, %v4001
    %v4003 = vlaneseq
    %v4004 = vshrl.u32 %v4003, 7
    %v4005 = vsub.s32 1, %v4004
    %v4006 = vrot.slane %v3995, %v4005
    %v4007 = vlaneseq
    %v4008 = vshrl.u32 %v4007, 7
    %v4009 = vsub.s32 2, %v4008
    %v4010 = vrot.slane %v3995, %v4009
    %v4011 = vlaneseq
    %v4012 = vshrl.u32 %v4011, 7
    %v4013 = vsub.s32 3, %v4012
    %v4014 = vrot.slane %v3995, %v4013
    %v4015 = vlaneseq
    %v4016 = vshrl.u32 %v4015, 7
    %v4017 = vsub.s32 4, %v4016
    %v4018 = vrot.slane %v3995, %v4017
    %v4019 = vlaneseq
    %v4020 = vshrl.u32 %v4019, 7
    %v4021 = vsub.s32 5, %v4020
    %v4022 = vrot.slane %v3995, %v4021
    %v4023 = vlaneseq
    %v4024 = vshrl.u32 %v4023, 7
    %v4025 = vsub.s32 6, %v4024
    %v4026 = vrot.slane %v3995, %v4025
    %v4027 = vlaneseq
    %v4028 = vshrl.u32 %v4027, 7
    %v4029 = vsub.s32 7, %v4028
    %v4030 = vrot.slane %v3995, %v4029
    %v4031 = vlaneseq
    %v4032 = vshrl.u32 %v4031, 7
    %v4033 = vsub.s32 0, %v4032
    %v4034 = vrot.slane %v3996, %v4033
    %v4035 = vlaneseq
    %v4036 = vshrl.u32 %v4035, 7
    %v4037 = vsub.s32 1, %v4036
    %v4038 = vrot.slane %v3996, %v4037
    %v4039 = vlaneseq
    %v4040 = vshrl.u32 %v4039, 7
    %v4041 = vsub.s32 2, %v4040
    %v4042 = vrot.slane %v3996, %v4041
    %v4043 = vlaneseq
    %v4044 = vshrl.u32 %v4043, 7
    %v4045 = vsub.s32 3, %v4044
    %v4046 = vrot.slane %v3996, %v4045
    %v4047 = vlaneseq
    %v4048 = vshrl.u32 %v4047, 7
    %v4049 = vsub.s32 4, %v4048
    %v4050 = vrot.slane %v3996, %v4049
    %v4051 = vlaneseq
    %v4052 = vshrl.u32 %v4051, 7
    %v4053 = vsub.s32 5, %v4052
    %v4054 = vrot.slane %v3996, %v4053
    %v4055 = vlaneseq
    %v4056 = vshrl.u32 %v4055, 7
    %v4057 = vsub.s32 6, %v4056
    %v4058 = vrot.slane %v3996, %v4057
    %v4059 = vlaneseq
    %v4060 = vshrl.u32 %v4059, 7
    %v4061 = vsub.s32 7, %v4060
    %v4062 = vrot.slane %v3996, %v4061
    %v4111 = vunpack.c.l.b16 %v3962
    %v4112 = vunpack.c.h.b16 %v3962
    %v4113 = vunpack.c.l.b16 %v3963
    %v4114 = vunpack.c.h.b16 %v3963
    %v4115 = vunpack.c.l.b16 %v3964
    %v4116 = vunpack.c.h.b16 %v3964
    %v4117 = vunpack.c.l.b16 %v3965
    %v4118 = vunpack.c.h.b16 %v3965
    %v4119 = vunpack.c.l.b16 %v3966
    %v4120 = vunpack.c.h.b16 %v3966
    %v4121 = vunpack.c.l.b16 %v3967
    %v4122 = vunpack.c.h.b16 %v3967
    %v4123 = vunpack.c.l.b16 %v3968
    %v4124 = vunpack.c.h.b16 %v3968
    %v4125 = vunpack.c.l.b16 %v3969
    %v4126 = vunpack.c.h.b16 %v3969
    %v4127 = vunpack.c.l.b16 %v3970
    %v4128 = vunpack.c.h.b16 %v3970
    %v4129 = vunpack.c.l.b16 %v3971
    %v4130 = vunpack.c.h.b16 %v3971
    %v4131 = vunpack.c.l.b16 %v3972
    %v4132 = vunpack.c.h.b16 %v3972
    %v4133 = vunpack.c.l.b16 %v3973
    %v4134 = vunpack.c.h.b16 %v3973
    %v4135 = vunpack.c.l.b16 %v3974
    %v4136 = vunpack.c.h.b16 %v3974
    %v4137 = vunpack.c.l.b16 %v3975
    %v4138 = vunpack.c.h.b16 %v3975
    %v4139 = vunpack.c.l.b16 %v3976
    %v4140 = vunpack.c.h.b16 %v3976
    %v4141 = vunpack.c.l.b16 %v3977
    %v4142 = vunpack.c.h.b16 %v3977
    %v4143 = vunpack.c.l.b16 %v3978
    %v4144 = vunpack.c.h.b16 %v3978
    %v4145 = vunpack.c.l.b16 %v3979
    %v4146 = vunpack.c.h.b16 %v3979
    %v4147 = vunpack.c.l.b16 %v3980
    %v4148 = vunpack.c.h.b16 %v3980
    %v4149 = vunpack.c.l.b16 %v3981
    %v4150 = vunpack.c.h.b16 %v3981
    %v4151 = vunpack.c.l.b16 %v3982
    %v4152 = vunpack.c.h.b16 %v3982
    %v4153 = vunpack.c.l.b16 %v3983
    %v4154 = vunpack.c.h.b16 %v3983
    %v4155 = vunpack.c.l.b16 %v3984
    %v4156 = vunpack.c.h.b16 %v3984
    %v4157 = vunpack.c.l.b16 %v3985
    %v4158 = vunpack.c.h.b16 %v3985
    %v4159 = vunpack.c.l.b16 %v3986
    %v4160 = vunpack.c.h.b16 %v3986
    %v4161 = vunpack.c.l.b16 %v3987
    %v4162 = vunpack.c.h.b16 %v3987
    %v4163 = vunpack.c.l.b16 %v3988
    %v4164 = vunpack.c.h.b16 %v3988
    %v4165 = vunpack.c.l.b16 %v3989
    %v4166 = vunpack.c.h.b16 %v3989
    %v4167 = vunpack.c.l.b16 %v3990
    %v4168 = vunpack.c.h.b16 %v3990
    %v4169 = vunpack.c.l.b16 %v3991
    %v4170 = vunpack.c.h.b16 %v3991
    %v4171 = vunpack.c.l.b16 %v3992
    %v4172 = vunpack.c.h.b16 %v3992
    %v4173 = vunpack.c.l.b16 %v3993
    %v4174 = vunpack.c.h.b16 %v3993
    %v4175 = vpack.c.b16 %v4127, %v4111
    %v4176 = vpack.c.b16 %v4128, %v4112
    %v4177 = vpack.c.b16 %v4129, %v4113
    %v4178 = vpack.c.b16 %v4130, %v4114
    %v4179 = vpack.c.b16 %v4131, %v4115
    %v4180 = vpack.c.b16 %v4132, %v4116
    %v4181 = vpack.c.b16 %v4133, %v4117
    %v4182 = vpack.c.b16 %v4134, %v4118
    %v4183 = vpack.c.b16 %v4135, %v4119
    %v4184 = vpack.c.b16 %v4136, %v4120
    %v4185 = vpack.c.b16 %v4137, %v4121
    %v4186 = vpack.c.b16 %v4138, %v4122
    %v4187 = vpack.c.b16 %v4139, %v4123
    %v4188 = vpack.c.b16 %v4140, %v4124
    %v4189 = vpack.c.b16 %v4141, %v4125
    %v4190 = vpack.c.b16 %v4142, %v4126
    %v4191 = vpack.c.b16 %v4159, %v4143
    %v4192 = vpack.c.b16 %v4160, %v4144
    %v4193 = vpack.c.b16 %v4161, %v4145
    %v4194 = vpack.c.b16 %v4162, %v4146
    %v4195 = vpack.c.b16 %v4163, %v4147
    %v4196 = vpack.c.b16 %v4164, %v4148
    %v4197 = vpack.c.b16 %v4165, %v4149
    %v4198 = vpack.c.b16 %v4166, %v4150
    %v4199 = vpack.c.b16 %v4167, %v4151
    %v4200 = vpack.c.b16 %v4168, %v4152
    %v4201 = vpack.c.b16 %v4169, %v4153
    %v4202 = vpack.c.b16 %v4170, %v4154
    %v4203 = vpack.c.b16 %v4171, %v4155
    %v4204 = vpack.c.b16 %v4172, %v4156
    %v4205 = vpack.c.b16 %v4173, %v4157
    %v4206 = vpack.c.b16 %v4174, %v4158
    %v4240 = vsel %vm242, %v3960, 0
    %4242 = vmatprep.subr.bf16.mxu0 0
    %4243 = vmatpush1.bf16.msra.mxu0 0
    %4244 = vmatprep.subr.bf16.mxu0 0
    %4245 = vmatpush1.bf16.msra.mxu0 0
    %4246 = vmatprep.subr.bf16.mxu0 0
    %4247 = vmatpush1.bf16.msra.mxu0 0
    %4248 = vmatprep.subr.bf16.mxu0 0
    %4249 = vmatpush1.bf16.msra.mxu0 0
    %4250 = vmatprep.subr.bf16.mxu0 0
    %4251 = vmatpush1.bf16.msra.mxu0 0
    %4252 = vmatprep.subr.bf16.mxu0 0
    %4253 = vmatpush1.bf16.msra.mxu0 0
    %4254 = vmatprep.subr.bf16.mxu0 %v4192
    %4255 = vmatpush1.bf16.msra.mxu0 %v4191
    %4256 = vmatprep.subr.bf16.mxu0 %v4176
    %4257 = vmatpush1.bf16.msra.mxu0 %v4175
    %4258 = vmatprep.subr.bf16.mxu0 0
    %4259 = vmatpush2.bf16.msra.mxu0 0
    %4260 = vmatprep.subr.bf16.mxu0 0
    %4261 = vmatpush2.bf16.msra.mxu0 0
    %4262 = vmatprep.subr.bf16.mxu0 0
    %4263 = vmatpush2.bf16.msra.mxu0 0
    %4264 = vmatprep.subr.bf16.mxu0 0
    %4265 = vmatpush2.bf16.msra.mxu0 0
    %4266 = vmatprep.subr.bf16.mxu0 0
    %4267 = vmatpush2.bf16.msra.mxu0 0
    %4268 = vmatprep.subr.bf16.mxu0 0
    %4269 = vmatpush2.bf16.msra.mxu0 0
    %4270 = vmatprep.subr.bf16.mxu0 0
    %4271 = vmatpush2.bf16.msra.mxu0 0
    %4272 = vmatprep.subr.bf16.mxu0 0
    %4273 = vmatpush2.bf16.msra.mxu0 0
    %4274 = vmatprep.mubr.bf16.mxu0 0
    %4275 = vmatmul.mubr.bf16.gmra.mxu0 %v4240
    %v4276 = vpop.f32.mrf.mxu0
    %v4277 = vadd.f32 %v4002, %v4276
    %v4278 = vpop.f32.mrf.mxu0
    %v4279 = vadd.f32 %v4006, %v4278
    %v4280 = vpop.f32.mrf.mxu0
    %v4281 = vadd.f32 %v4002, %v4280
    %v4282 = vpop.f32.mrf.mxu0
    %v4283 = vadd.f32 %v4006, %v4282
    %4284 = vdwg.mxu0
    %4285 = vmatprep.subr.bf16.mxu0 0
    %4286 = vmatpush1.bf16.msra.mxu0 0
    %4287 = vmatprep.subr.bf16.mxu0 0
    %4288 = vmatpush1.bf16.msra.mxu0 0
    %4289 = vmatprep.subr.bf16.mxu0 0
    %4290 = vmatpush1.bf16.msra.mxu0 0
    %4291 = vmatprep.subr.bf16.mxu0 0
    %4292 = vmatpush1.bf16.msra.mxu0 0
    %4293 = vmatprep.subr.bf16.mxu0 0
    %4294 = vmatpush1.bf16.msra.mxu0 0
    %4295 = vmatprep.subr.bf16.mxu0 0
    %4296 = vmatpush1.bf16.msra.mxu0 0
    %4297 = vmatprep.subr.bf16.mxu0 %v4194
    %4298 = vmatpush1.bf16.msra.mxu0 %v4193
    %4299 = vmatprep.subr.bf16.mxu0 %v4178
    %4300 = vmatpush1.bf16.msra.mxu0 %v4177
    %4301 = vmatprep.subr.bf16.mxu0 0
    %4302 = vmatpush2.bf16.msra.mxu0 0
    %4303 = vmatprep.subr.bf16.mxu0 0
    %4304 = vmatpush2.bf16.msra.mxu0 0
    %4305 = vmatprep.subr.bf16.mxu0 0
    %4306 = vmatpush2.bf16.msra.mxu0 0
    %4307 = vmatprep.subr.bf16.mxu0 0
    %4308 = vmatpush2.bf16.msra.mxu0 0
    %4309 = vmatprep.subr.bf16.mxu0 0
    %4310 = vmatpush2.bf16.msra.mxu0 0
    %4311 = vmatprep.subr.bf16.mxu0 0
    %4312 = vmatpush2.bf16.msra.mxu0 0
    %4313 = vmatprep.subr.bf16.mxu0 0
    %4314 = vmatpush2.bf16.msra.mxu0 0
    %4315 = vmatprep.subr.bf16.mxu0 0
    %4316 = vmatpush2.bf16.msra.mxu0 0
    %4317 = vmatprep.mubr.bf16.mxu0 0
    %4318 = vmatmul.mubr.bf16.gmra.mxu0 %v4240
    %v4319 = vpop.f32.mrf.mxu0
    %v4320 = vadd.f32 %v4010, %v4319
    %v4321 = vpop.f32.mrf.mxu0
    %v4322 = vadd.f32 %v4014, %v4321
    %v4323 = vpop.f32.mrf.mxu0
    %v4324 = vadd.f32 %v4010, %v4323
    %v4325 = vpop.f32.mrf.mxu0
    %v4326 = vadd.f32 %v4014, %v4325
    %4327 = vdwg.mxu0
    %4328 = vmatprep.subr.bf16.mxu0 0
    %4329 = vmatpush1.bf16.msra.mxu0 0
    %4330 = vmatprep.subr.bf16.mxu0 0
    %4331 = vmatpush1.bf16.msra.mxu0 0
    %4332 = vmatprep.subr.bf16.mxu0 0
    %4333 = vmatpush1.bf16.msra.mxu0 0
    %4334 = vmatprep.subr.bf16.mxu0 0
    %4335 = vmatpush1.bf16.msra.mxu0 0
    %4336 = vmatprep.subr.bf16.mxu0 0
    %4337 = vmatpush1.bf16.msra.mxu0 0
    %4338 = vmatprep.subr.bf16.mxu0 0
    %4339 = vmatpush1.bf16.msra.mxu0 0
    %4340 = vmatprep.subr.bf16.mxu0 %v4196
    %4341 = vmatpush1.bf16.msra.mxu0 %v4195
    %4342 = vmatprep.subr.bf16.mxu0 %v4180
    %4343 = vmatpush1.bf16.msra.mxu0 %v4179
    %4344 = vmatprep.subr.bf16.mxu0 0
    %4345 = vmatpush2.bf16.msra.mxu0 0
    %4346 = vmatprep.subr.bf16.mxu0 0
    %4347 = vmatpush2.bf16.msra.mxu0 0
    %4348 = vmatprep.subr.bf16.mxu0 0
    %4349 = vmatpush2.bf16.msra.mxu0 0
    %4350 = vmatprep.subr.bf16.mxu0 0
    %4351 = vmatpush2.bf16.msra.mxu0 0
    %4352 = vmatprep.subr.bf16.mxu0 0
    %4353 = vmatpush2.bf16.msra.mxu0 0
    %4354 = vmatprep.subr.bf16.mxu0 0
    %4355 = vmatpush2.bf16.msra.mxu0 0
    %4356 = vmatprep.subr.bf16.mxu0 0
    %4357 = vmatpush2.bf16.msra.mxu0 0
    %4358 = vmatprep.subr.bf16.mxu0 0
    %4359 = vmatpush2.bf16.msra.mxu0 0
    %4360 = vmatprep.mubr.bf16.mxu0 0
    %4361 = vmatmul.mubr.bf16.gmra.mxu0 %v4240
    %v4362 = vpop.f32.mrf.mxu0
    %v4363 = vadd.f32 %v4018, %v4362
    %v4364 = vpop.f32.mrf.mxu0
    %v4365 = vadd.f32 %v4022, %v4364
    %v4366 = vpop.f32.mrf.mxu0
    %v4367 = vadd.f32 %v4018, %v4366
    %v4368 = vpop.f32.mrf.mxu0
    %v4369 = vadd.f32 %v4022, %v4368
    %4370 = vdwg.mxu0
    %4371 = vmatprep.subr.bf16.mxu0 0
    %4372 = vmatpush1.bf16.msra.mxu0 0
    %4373 = vmatprep.subr.bf16.mxu0 0
    %4374 = vmatpush1.bf16.msra.mxu0 0
    %4375 = vmatprep.subr.bf16.mxu0 0
    %4376 = vmatpush1.bf16.msra.mxu0 0
    %4377 = vmatprep.subr.bf16.mxu0 0
    %4378 = vmatpush1.bf16.msra.mxu0 0
    %4379 = vmatprep.subr.bf16.mxu0 0
    %4380 = vmatpush1.bf16.msra.mxu0 0
    %4381 = vmatprep.subr.bf16.mxu0 0
    %4382 = vmatpush1.bf16.msra.mxu0 0
    %4383 = vmatprep.subr.bf16.mxu0 %v4198
    %4384 = vmatpush1.bf16.msra.mxu0 %v4197
    %4385 = vmatprep.subr.bf16.mxu0 %v4182
    %4386 = vmatpush1.bf16.msra.mxu0 %v4181
    %4387 = vmatprep.subr.bf16.mxu0 0
    %4388 = vmatpush2.bf16.msra.mxu0 0
    %4389 = vmatprep.subr.bf16.mxu0 0
    %4390 = vmatpush2.bf16.msra.mxu0 0
    %4391 = vmatprep.subr.bf16.mxu0 0
    %4392 = vmatpush2.bf16.msra.mxu0 0
    %4393 = vmatprep.subr.bf16.mxu0 0
    %4394 = vmatpush2.bf16.msra.mxu0 0
    %4395 = vmatprep.subr.bf16.mxu0 0
    %4396 = vmatpush2.bf16.msra.mxu0 0
    %4397 = vmatprep.subr.bf16.mxu0 0
    %4398 = vmatpush2.bf16.msra.mxu0 0
    %4399 = vmatprep.subr.bf16.mxu0 0
    %4400 = vmatpush2.bf16.msra.mxu0 0
    %4401 = vmatprep.subr.bf16.mxu0 0
    %4402 = vmatpush2.bf16.msra.mxu0 0
    %4403 = vmatprep.mubr.bf16.mxu0 0
    %4404 = vmatmul.mubr.bf16.gmra.mxu0 %v4240
    %v4405 = vpop.f32.mrf.mxu0
    %v4406 = vadd.f32 %v4026, %v4405
    %v4407 = vpop.f32.mrf.mxu0
    %v4408 = vadd.f32 %v4030, %v4407
    %v4409 = vpop.f32.mrf.mxu0
    %v4410 = vadd.f32 %v4026, %v4409
    %v4411 = vpop.f32.mrf.mxu0
    %v4412 = vadd.f32 %v4030, %v4411
    %4413 = vdwg.mxu0
    %4414 = vmatprep.subr.bf16.mxu0 0
    %4415 = vmatpush1.bf16.msra.mxu0 0
    %4416 = vmatprep.subr.bf16.mxu0 0
    %4417 = vmatpush1.bf16.msra.mxu0 0
    %4418 = vmatprep.subr.bf16.mxu0 0
    %4419 = vmatpush1.bf16.msra.mxu0 0
    %4420 = vmatprep.subr.bf16.mxu0 0
    %4421 = vmatpush1.bf16.msra.mxu0 0
    %4422 = vmatprep.subr.bf16.mxu0 0
    %4423 = vmatpush1.bf16.msra.mxu0 0
    %4424 = vmatprep.subr.bf16.mxu0 0
    %4425 = vmatpush1.bf16.msra.mxu0 0
    %4426 = vmatprep.subr.bf16.mxu0 %v4200
    %4427 = vmatpush1.bf16.msra.mxu0 %v4199
    %4428 = vmatprep.subr.bf16.mxu0 %v4184
    %4429 = vmatpush1.bf16.msra.mxu0 %v4183
    %4430 = vmatprep.subr.bf16.mxu0 0
    %4431 = vmatpush2.bf16.msra.mxu0 0
    %4432 = vmatprep.subr.bf16.mxu0 0
    %4433 = vmatpush2.bf16.msra.mxu0 0
    %4434 = vmatprep.subr.bf16.mxu0 0
    %4435 = vmatpush2.bf16.msra.mxu0 0
    %4436 = vmatprep.subr.bf16.mxu0 0
    %4437 = vmatpush2.bf16.msra.mxu0 0
    %4438 = vmatprep.subr.bf16.mxu0 0
    %4439 = vmatpush2.bf16.msra.mxu0 0
    %4440 = vmatprep.subr.bf16.mxu0 0
    %4441 = vmatpush2.bf16.msra.mxu0 0
    %4442 = vmatprep.subr.bf16.mxu0 0
    %4443 = vmatpush2.bf16.msra.mxu0 0
    %4444 = vmatprep.subr.bf16.mxu0 0
    %4445 = vmatpush2.bf16.msra.mxu0 0
    %4446 = vmatprep.mubr.bf16.mxu0 0
    %4447 = vmatmul.mubr.bf16.gmra.mxu0 %v4240
    %v4448 = vpop.f32.mrf.mxu0
    %v4449 = vadd.f32 %v4034, %v4448
    %v4450 = vpop.f32.mrf.mxu0
    %v4451 = vadd.f32 %v4038, %v4450
    %v4452 = vpop.f32.mrf.mxu0
    %v4453 = vadd.f32 %v4034, %v4452
    %v4454 = vpop.f32.mrf.mxu0
    %v4455 = vadd.f32 %v4038, %v4454
    %4456 = vdwg.mxu0
    %4457 = vmatprep.subr.bf16.mxu0 0
    %4458 = vmatpush1.bf16.msra.mxu0 0
    %4459 = vmatprep.subr.bf16.mxu0 0
    %4460 = vmatpush1.bf16.msra.mxu0 0
    %4461 = vmatprep.subr.bf16.mxu0 0
    %4462 = vmatpush1.bf16.msra.mxu0 0
    %4463 = vmatprep.subr.bf16.mxu0 0
    %4464 = vmatpush1.bf16.msra.mxu0 0
    %4465 = vmatprep.subr.bf16.mxu0 0
    %4466 = vmatpush1.bf16.msra.mxu0 0
    %4467 = vmatprep.subr.bf16.mxu0 0
    %4468 = vmatpush1.bf16.msra.mxu0 0
    %4469 = vmatprep.subr.bf16.mxu0 %v4202
    %4470 = vmatpush1.bf16.msra.mxu0 %v4201
    %4471 = vmatprep.subr.bf16.mxu0 %v4186
    %4472 = vmatpush1.bf16.msra.mxu0 %v4185
    %4473 = vmatprep.subr.bf16.mxu0 0
    %4474 = vmatpush2.bf16.msra.mxu0 0
    %4475 = vmatprep.subr.bf16.mxu0 0
    %4476 = vmatpush2.bf16.msra.mxu0 0
    %4477 = vmatprep.subr.bf16.mxu0 0
    %4478 = vmatpush2.bf16.msra.mxu0 0
    %4479 = vmatprep.subr.bf16.mxu0 0
    %4480 = vmatpush2.bf16.msra.mxu0 0
    %4481 = vmatprep.subr.bf16.mxu0 0
    %4482 = vmatpush2.bf16.msra.mxu0 0
    %4483 = vmatprep.subr.bf16.mxu0 0
    %4484 = vmatpush2.bf16.msra.mxu0 0
    %4485 = vmatprep.subr.bf16.mxu0 0
    %4486 = vmatpush2.bf16.msra.mxu0 0
    %4487 = vmatprep.subr.bf16.mxu0 0
    %4488 = vmatpush2.bf16.msra.mxu0 0
    %4489 = vmatprep.mubr.bf16.mxu0 0
    %4490 = vmatmul.mubr.bf16.gmra.mxu0 %v4240
    %v4491 = vpop.f32.mrf.mxu0
    %v4492 = vadd.f32 %v4042, %v4491
    %v4493 = vpop.f32.mrf.mxu0
    %v4494 = vadd.f32 %v4046, %v4493
    %v4495 = vpop.f32.mrf.mxu0
    %v4496 = vadd.f32 %v4042, %v4495
    %v4497 = vpop.f32.mrf.mxu0
    %v4498 = vadd.f32 %v4046, %v4497
    %4499 = vdwg.mxu0
    %4500 = vmatprep.subr.bf16.mxu0 0
    %4501 = vmatpush1.bf16.msra.mxu0 0
    %4502 = vmatprep.subr.bf16.mxu0 0
    %4503 = vmatpush1.bf16.msra.mxu0 0
    %4504 = vmatprep.subr.bf16.mxu0 0
    %4505 = vmatpush1.bf16.msra.mxu0 0
    %4506 = vmatprep.subr.bf16.mxu0 0
    %4507 = vmatpush1.bf16.msra.mxu0 0
    %4508 = vmatprep.subr.bf16.mxu0 0
    %4509 = vmatpush1.bf16.msra.mxu0 0
    %4510 = vmatprep.subr.bf16.mxu0 0
    %4511 = vmatpush1.bf16.msra.mxu0 0
    %4512 = vmatprep.subr.bf16.mxu0 %v4204
    %4513 = vmatpush1.bf16.msra.mxu0 %v4203
    %4514 = vmatprep.subr.bf16.mxu0 %v4188
    %4515 = vmatpush1.bf16.msra.mxu0 %v4187
    %4516 = vmatprep.subr.bf16.mxu0 0
    %4517 = vmatpush2.bf16.msra.mxu0 0
    %4518 = vmatprep.subr.bf16.mxu0 0
    %4519 = vmatpush2.bf16.msra.mxu0 0
    %4520 = vmatprep.subr.bf16.mxu0 0
    %4521 = vmatpush2.bf16.msra.mxu0 0
    %4522 = vmatprep.subr.bf16.mxu0 0
    %4523 = vmatpush2.bf16.msra.mxu0 0
    %4524 = vmatprep.subr.bf16.mxu0 0
    %4525 = vmatpush2.bf16.msra.mxu0 0
    %4526 = vmatprep.subr.bf16.mxu0 0
    %4527 = vmatpush2.bf16.msra.mxu0 0
    %4528 = vmatprep.subr.bf16.mxu0 0
    %4529 = vmatpush2.bf16.msra.mxu0 0
    %4530 = vmatprep.subr.bf16.mxu0 0
    %4531 = vmatpush2.bf16.msra.mxu0 0
    %4532 = vmatprep.mubr.bf16.mxu0 0
    %4533 = vmatmul.mubr.bf16.gmra.mxu0 %v4240
    %v4534 = vpop.f32.mrf.mxu0
    %v4535 = vadd.f32 %v4050, %v4534
    %v4536 = vpop.f32.mrf.mxu0
    %v4537 = vadd.f32 %v4054, %v4536
    %v4538 = vpop.f32.mrf.mxu0
    %v4539 = vadd.f32 %v4050, %v4538
    %v4540 = vpop.f32.mrf.mxu0
    %v4541 = vadd.f32 %v4054, %v4540
    %4542 = vdwg.mxu0
    %4543 = vmatprep.subr.bf16.mxu0 0
    %4544 = vmatpush1.bf16.msra.mxu0 0
    %4545 = vmatprep.subr.bf16.mxu0 0
    %4546 = vmatpush1.bf16.msra.mxu0 0
    %4547 = vmatprep.subr.bf16.mxu0 0
    %4548 = vmatpush1.bf16.msra.mxu0 0
    %4549 = vmatprep.subr.bf16.mxu0 0
    %4550 = vmatpush1.bf16.msra.mxu0 0
    %4551 = vmatprep.subr.bf16.mxu0 0
    %4552 = vmatpush1.bf16.msra.mxu0 0
    %4553 = vmatprep.subr.bf16.mxu0 0
    %4554 = vmatpush1.bf16.msra.mxu0 0
    %4555 = vmatprep.subr.bf16.mxu0 %v4206
    %4556 = vmatpush1.bf16.msra.mxu0 %v4205
    %4557 = vmatprep.subr.bf16.mxu0 %v4190
    %4558 = vmatpush1.bf16.msra.mxu0 %v4189
    %4559 = vmatprep.subr.bf16.mxu0 0
    %4560 = vmatpush2.bf16.msra.mxu0 0
    %4561 = vmatprep.subr.bf16.mxu0 0
    %4562 = vmatpush2.bf16.msra.mxu0 0
    %4563 = vmatprep.subr.bf16.mxu0 0
    %4564 = vmatpush2.bf16.msra.mxu0 0
    %4565 = vmatprep.subr.bf16.mxu0 0
    %4566 = vmatpush2.bf16.msra.mxu0 0
    %4567 = vmatprep.subr.bf16.mxu0 0
    %4568 = vmatpush2.bf16.msra.mxu0 0
    %4569 = vmatprep.subr.bf16.mxu0 0
    %4570 = vmatpush2.bf16.msra.mxu0 0
    %4571 = vmatprep.subr.bf16.mxu0 0
    %4572 = vmatpush2.bf16.msra.mxu0 0
    %4573 = vmatprep.subr.bf16.mxu0 0
    %4574 = vmatpush2.bf16.msra.mxu0 0
    %4575 = vmatprep.mubr.bf16.mxu0 0
    %4576 = vmatmul.mubr.bf16.gmra.mxu0 %v4240
    %v4577 = vpop.f32.mrf.mxu0
    %v4578 = vadd.f32 %v4058, %v4577
    %v4579 = vpop.f32.mrf.mxu0
    %v4580 = vadd.f32 %v4062, %v4579
    %v4581 = vpop.f32.mrf.mxu0
    %v4582 = vadd.f32 %v4058, %v4581
    %v4583 = vpop.f32.mrf.mxu0
    %v4584 = vadd.f32 %v4062, %v4583
    %4585 = vdwg.mxu0
    %v4586 = vmax.f32 %v4277, 0.0
    %v4587 = vmax.f32 %v4279, 0.0
    %v4588 = vmax.f32 %v4320, 0.0
    %v4589 = vmax.f32 %v4322, 0.0
    %v4590 = vmax.f32 %v4363, 0.0
    %v4591 = vmax.f32 %v4365, 0.0
    %v4592 = vmax.f32 %v4406, 0.0
    %v4593 = vmax.f32 %v4408, 0.0
    %v4594 = vmax.f32 %v4449, 0.0
    %v4595 = vmax.f32 %v4451, 0.0
    %v4596 = vmax.f32 %v4492, 0.0
    %v4597 = vmax.f32 %v4494, 0.0
    %v4598 = vmax.f32 %v4535, 0.0
    %v4599 = vmax.f32 %v4537, 0.0
    %v4600 = vmax.f32 %v4578, 0.0
    %v4601 = vmax.f32 %v4580, 0.0
    %v4602 = vmax.f32 %v4281, 0.0
    %v4603 = vmax.f32 %v4283, 0.0
    %v4604 = vmax.f32 %v4324, 0.0
    %v4605 = vmax.f32 %v4326, 0.0
    %v4606 = vmax.f32 %v4367, 0.0
    %v4607 = vmax.f32 %v4369, 0.0
    %v4608 = vmax.f32 %v4410, 0.0
    %v4609 = vmax.f32 %v4412, 0.0
    %v4610 = vmax.f32 %v4453, 0.0
    %v4611 = vmax.f32 %v4455, 0.0
    %v4612 = vmax.f32 %v4496, 0.0
    %v4613 = vmax.f32 %v4498, 0.0
    %v4614 = vmax.f32 %v4539, 0.0
    %v4615 = vmax.f32 %v4541, 0.0
    %v4616 = vmax.f32 %v4582, 0.0
    %v4617 = vmax.f32 %v4584, 0.0
    %v4618 = vpack.c.bf16 %v4602, %v4586
    %v4619 = vpack.c.bf16 %v4603, %v4587
    %v4620 = vpack.c.bf16 %v4604, %v4588
    %v4621 = vpack.c.bf16 %v4605, %v4589
    %v4622 = vpack.c.bf16 %v4606, %v4590
    %v4623 = vpack.c.bf16 %v4607, %v4591
    %v4624 = vpack.c.bf16 %v4608, %v4592
    %v4625 = vpack.c.bf16 %v4609, %v4593
    %v4626 = vpack.c.bf16 %v4610, %v4594
    %v4627 = vpack.c.bf16 %v4611, %v4595
    %v4628 = vpack.c.bf16 %v4612, %v4596
    %v4629 = vpack.c.bf16 %v4613, %v4597
    %v4630 = vpack.c.bf16 %v4614, %v4598
    %v4631 = vpack.c.bf16 %v4615, %v4599
    %v4632 = vpack.c.bf16 %v4616, %v4600
    %v4633 = vpack.c.bf16 %v4617, %v4601
    %s4634 = scalar_lea.vmem [#allocation14], 256
    %v4635 = vld [vmem:[%s4634] sm:$0xff]
    %v4636 = vld [vmem:[%s4634 + $0x8] sm:$0xff]
    %v4637 = vld [vmem:[%s4634 + $0x10] sm:$0xff]
    %v4638 = vld [vmem:[%s4634 + $0x18] sm:$0xff]
    %v4639 = vld [vmem:[%s4634 + $0x20] sm:$0xff]
    %v4640 = vld [vmem:[%s4634 + $0x28] sm:$0xff]
    %v4641 = vld [vmem:[%s4634 + $0x30] sm:$0xff]
    %v4642 = vld [vmem:[%s4634 + $0x38] sm:$0xff]
    %v4643 = vld [vmem:[%s4634 + $0x40] sm:$0xff]
    %v4644 = vld [vmem:[%s4634 + $0x48] sm:$0xff]
    %v4645 = vld [vmem:[%s4634 + $0x50] sm:$0xff]
    %v4646 = vld [vmem:[%s4634 + $0x58] sm:$0xff]
    %v4647 = vld [vmem:[%s4634 + $0x60] sm:$0xff]
    %v4648 = vld [vmem:[%s4634 + $0x68] sm:$0xff]
    %v4649 = vld [vmem:[%s4634 + $0x70] sm:$0xff]
    %v4650 = vld [vmem:[%s4634 + $0x78] sm:$0xff]
    %v4651 = vld [vmem:[%s4634 + $0x80] sm:$0xff]
    %v4652 = vld [vmem:[%s4634 + $0x88] sm:$0xff]
    %v4653 = vld [vmem:[%s4634 + $0x90] sm:$0xff]
    %v4654 = vld [vmem:[%s4634 + $0x98] sm:$0xff]
    %v4655 = vld [vmem:[%s4634 + $0xa0] sm:$0xff]
    %v4656 = vld [vmem:[%s4634 + $0xa8] sm:$0xff]
    %v4657 = vld [vmem:[%s4634 + $0xb0] sm:$0xff]
    %v4658 = vld [vmem:[%s4634 + $0xb8] sm:$0xff]
    %v4659 = vld [vmem:[%s4634 + $0xc0] sm:$0xff]
    %v4660 = vld [vmem:[%s4634 + $0xc8] sm:$0xff]
    %v4661 = vld [vmem:[%s4634 + $0xd0] sm:$0xff]
    %v4662 = vld [vmem:[%s4634 + $0xd8] sm:$0xff]
    %v4663 = vld [vmem:[%s4634 + $0xe0] sm:$0xff]
    %v4664 = vld [vmem:[%s4634 + $0xe8] sm:$0xff]
    %v4665 = vld [vmem:[%s4634 + $0xf0] sm:$0xff]
    %v4666 = vld [vmem:[%s4634 + $0xf8] sm:$0xff]
    %s4667 = scalar_lea.vmem [#allocation10], 7
    %v4668 = vld [vmem:[%s4667] sm:$0x1]
    %v4670 = vlaneseq
    %v4671 = vshrl.u32 %v4670, 7
    %v4672 = vsub.s32 0, %v4671
    %v4673 = vrot.slane %v4668, %v4672
    %v4707 = vunpack.c.l.b16 %v4635
    %v4708 = vunpack.c.h.b16 %v4635
    %v4709 = vunpack.c.l.b16 %v4636
    %v4710 = vunpack.c.h.b16 %v4636
    %v4711 = vunpack.c.l.b16 %v4637
    %v4712 = vunpack.c.h.b16 %v4637
    %v4713 = vunpack.c.l.b16 %v4638
    %v4714 = vunpack.c.h.b16 %v4638
    %v4715 = vunpack.c.l.b16 %v4639
    %v4716 = vunpack.c.h.b16 %v4639
    %v4717 = vunpack.c.l.b16 %v4640
    %v4718 = vunpack.c.h.b16 %v4640
    %v4719 = vunpack.c.l.b16 %v4641
    %v4720 = vunpack.c.h.b16 %v4641
    %v4721 = vunpack.c.l.b16 %v4642
    %v4722 = vunpack.c.h.b16 %v4642
    %v4723 = vunpack.c.l.b16 %v4643
    %v4724 = vunpack.c.h.b16 %v4643
    %v4725 = vunpack.c.l.b16 %v4644
    %v4726 = vunpack.c.h.b16 %v4644
    %v4727 = vunpack.c.l.b16 %v4645
    %v4728 = vunpack.c.h.b16 %v4645
    %v4729 = vunpack.c.l.b16 %v4646
    %v4730 = vunpack.c.h.b16 %v4646
    %v4731 = vunpack.c.l.b16 %v4647
    %v4732 = vunpack.c.h.b16 %v4647
    %v4733 = vunpack.c.l.b16 %v4648
    %v4734 = vunpack.c.h.b16 %v4648
    %v4735 = vunpack.c.l.b16 %v4649
    %v4736 = vunpack.c.h.b16 %v4649
    %v4737 = vunpack.c.l.b16 %v4650
    %v4738 = vunpack.c.h.b16 %v4650
    %v4739 = vunpack.c.l.b16 %v4651
    %v4740 = vunpack.c.h.b16 %v4651
    %v4741 = vunpack.c.l.b16 %v4652
    %v4742 = vunpack.c.h.b16 %v4652
    %v4743 = vunpack.c.l.b16 %v4653
    %v4744 = vunpack.c.h.b16 %v4653
    %v4745 = vunpack.c.l.b16 %v4654
    %v4746 = vunpack.c.h.b16 %v4654
    %v4747 = vunpack.c.l.b16 %v4655
    %v4748 = vunpack.c.h.b16 %v4655
    %v4749 = vunpack.c.l.b16 %v4656
    %v4750 = vunpack.c.h.b16 %v4656
    %v4751 = vunpack.c.l.b16 %v4657
    %v4752 = vunpack.c.h.b16 %v4657
    %v4753 = vunpack.c.l.b16 %v4658
    %v4754 = vunpack.c.h.b16 %v4658
    %v4755 = vunpack.c.l.b16 %v4659
    %v4756 = vunpack.c.h.b16 %v4659
    %v4757 = vunpack.c.l.b16 %v4660
    %v4758 = vunpack.c.h.b16 %v4660
    %v4759 = vunpack.c.l.b16 %v4661
    %v4760 = vunpack.c.h.b16 %v4661
    %v4761 = vunpack.c.l.b16 %v4662
    %v4762 = vunpack.c.h.b16 %v4662
    %v4763 = vunpack.c.l.b16 %v4663
    %v4764 = vunpack.c.h.b16 %v4663
    %v4765 = vunpack.c.l.b16 %v4664
    %v4766 = vunpack.c.h.b16 %v4664
    %v4767 = vunpack.c.l.b16 %v4665
    %v4768 = vunpack.c.h.b16 %v4665
    %v4769 = vunpack.c.l.b16 %v4666
    %v4770 = vunpack.c.h.b16 %v4666
    %v4771 = vpack.c.b16 %v4723, %v4707
    %v4772 = vpack.c.b16 %v4724, %v4708
    %v4773 = vpack.c.b16 %v4725, %v4709
    %v4774 = vpack.c.b16 %v4726, %v4710
    %v4775 = vpack.c.b16 %v4727, %v4711
    %v4776 = vpack.c.b16 %v4728, %v4712
    %v4777 = vpack.c.b16 %v4729, %v4713
    %v4778 = vpack.c.b16 %v4730, %v4714
    %v4779 = vpack.c.b16 %v4731, %v4715
    %v4780 = vpack.c.b16 %v4732, %v4716
    %v4781 = vpack.c.b16 %v4733, %v4717
    %v4782 = vpack.c.b16 %v4734, %v4718
    %v4783 = vpack.c.b16 %v4735, %v4719
    %v4784 = vpack.c.b16 %v4736, %v4720
    %v4785 = vpack.c.b16 %v4737, %v4721
    %v4786 = vpack.c.b16 %v4738, %v4722
    %v4787 = vpack.c.b16 %v4755, %v4739
    %v4788 = vpack.c.b16 %v4756, %v4740
    %v4789 = vpack.c.b16 %v4757, %v4741
    %v4790 = vpack.c.b16 %v4758, %v4742
    %v4791 = vpack.c.b16 %v4759, %v4743
    %v4792 = vpack.c.b16 %v4760, %v4744
    %v4793 = vpack.c.b16 %v4761, %v4745
    %v4794 = vpack.c.b16 %v4762, %v4746
    %v4795 = vpack.c.b16 %v4763, %v4747
    %v4796 = vpack.c.b16 %v4764, %v4748
    %v4797 = vpack.c.b16 %v4765, %v4749
    %v4798 = vpack.c.b16 %v4766, %v4750
    %v4799 = vpack.c.b16 %v4767, %v4751
    %v4800 = vpack.c.b16 %v4768, %v4752
    %v4801 = vpack.c.b16 %v4769, %v4753
    %v4802 = vpack.c.b16 %v4770, %v4754
    %4835 = vmatprep.subr.bf16.mxu0 0
    %4836 = vmatpush1.bf16.xpose.msra.mxu0 0
    %4837 = vmatprep.subr.bf16.mxu0 0
    %4838 = vmatpush1.bf16.xpose.msra.mxu0 0
    %4839 = vmatprep.subr.bf16.mxu0 0
    %4840 = vmatpush1.bf16.xpose.msra.mxu0 0
    %4841 = vmatprep.subr.bf16.mxu0 0
    %4842 = vmatpush1.bf16.xpose.msra.mxu0 0
    %4843 = vmatprep.subr.bf16.mxu0 0
    %4844 = vmatpush1.bf16.xpose.msra.mxu0 0
    %4845 = vmatprep.subr.bf16.mxu0 0
    %4846 = vmatpush1.bf16.xpose.msra.mxu0 0
    %4847 = vmatprep.subr.bf16.mxu0 %v4788
    %4848 = vmatpush1.bf16.xpose.msra.mxu0 %v4787
    %4849 = vmatprep.subr.bf16.mxu0 %v4772
    %4850 = vmatpush1.bf16.xpose.msra.mxu0 %v4771
    %4851 = vmatprep.subr.bf16.mxu0 0
    %4852 = vmatpush2.bf16.xpose.msra.mxu0 0
    %4853 = vmatprep.subr.bf16.mxu0 0
    %4854 = vmatpush2.bf16.xpose.msra.mxu0 0
    %4855 = vmatprep.subr.bf16.mxu0 0
    %4856 = vmatpush2.bf16.xpose.msra.mxu0 0
    %4857 = vmatprep.subr.bf16.mxu0 0
    %4858 = vmatpush2.bf16.xpose.msra.mxu0 0
    %4859 = vmatprep.subr.bf16.mxu0 0
    %4860 = vmatpush2.bf16.xpose.msra.mxu0 0
    %4861 = vmatprep.subr.bf16.mxu0 0
    %4862 = vmatpush2.bf16.xpose.msra.mxu0 0
    %4863 = vmatprep.subr.bf16.mxu0 0
    %4864 = vmatpush2.bf16.xpose.msra.mxu0 0
    %4865 = vmatprep.subr.bf16.mxu0 0
    %4866 = vmatpush2.bf16.xpose.msra.mxu0 0
    %4867 = vmatprep.mubr.bf16.mxu0 %v4619
    %4868 = vmatmul.mubr.bf16.gmra.mxu0 %v4618
    %v4869 = vpop.f32.mrf.mxu0
    %v4870 = vadd.f32 %v4673, %v4869
    %v4871 = vpop.f32.mrf.mxu0
    %v4872 = vpop.f32.mrf.mxu0
    %v4873 = vadd.f32 %v4673, %v4872
    %v4874 = vpop.f32.mrf.mxu0
    %4875 = vdwg.mxu0
    %4876 = vmatprep.subr.bf16.mxu0 0
    %4877 = vmatpush1.bf16.xpose.msra.mxu0 0
    %4878 = vmatprep.subr.bf16.mxu0 0
    %4879 = vmatpush1.bf16.xpose.msra.mxu0 0
    %4880 = vmatprep.subr.bf16.mxu0 0
    %4881 = vmatpush1.bf16.xpose.msra.mxu0 0
    %4882 = vmatprep.subr.bf16.mxu0 0
    %4883 = vmatpush1.bf16.xpose.msra.mxu0 0
    %4884 = vmatprep.subr.bf16.mxu0 0
    %4885 = vmatpush1.bf16.xpose.msra.mxu0 0
    %4886 = vmatprep.subr.bf16.mxu0 0
    %4887 = vmatpush1.bf16.xpose.msra.mxu0 0
    %4888 = vmatprep.subr.bf16.mxu0 %v4790
    %4889 = vmatpush1.bf16.xpose.msra.mxu0 %v4789
    %4890 = vmatprep.subr.bf16.mxu0 %v4774
    %4891 = vmatpush1.bf16.xpose.msra.mxu0 %v4773
    %4892 = vmatprep.subr.bf16.mxu0 0
    %4893 = vmatpush2.bf16.xpose.msra.mxu0 0
    %4894 = vmatprep.subr.bf16.mxu0 0
    %4895 = vmatpush2.bf16.xpose.msra.mxu0 0
    %4896 = vmatprep.subr.bf16.mxu0 0
    %4897 = vmatpush2.bf16.xpose.msra.mxu0 0
    %4898 = vmatprep.subr.bf16.mxu0 0
    %4899 = vmatpush2.bf16.xpose.msra.mxu0 0
    %4900 = vmatprep.subr.bf16.mxu0 0
    %4901 = vmatpush2.bf16.xpose.msra.mxu0 0
    %4902 = vmatprep.subr.bf16.mxu0 0
    %4903 = vmatpush2.bf16.xpose.msra.mxu0 0
    %4904 = vmatprep.subr.bf16.mxu0 0
    %4905 = vmatpush2.bf16.xpose.msra.mxu0 0
    %4906 = vmatprep.subr.bf16.mxu0 0
    %4907 = vmatpush2.bf16.xpose.msra.mxu0 0
    %4908 = vmatprep.mubr.bf16.mxu0 %v4621
    %4909 = vmatmul.mubr.bf16.gmra.mxu0 %v4620
    %v4910 = vpop.f32.mrf.mxu0
    %v4911 = vadd.f32 %v4870, %v4910
    %v4912 = vpop.f32.mrf.mxu0
    %v4913 = vpop.f32.mrf.mxu0
    %v4914 = vadd.f32 %v4873, %v4913
    %v4915 = vpop.f32.mrf.mxu0
    %4916 = vdwg.mxu0
    %4917 = vmatprep.subr.bf16.mxu0 0
    %4918 = vmatpush1.bf16.xpose.msra.mxu0 0
    %4919 = vmatprep.subr.bf16.mxu0 0
    %4920 = vmatpush1.bf16.xpose.msra.mxu0 0
    %4921 = vmatprep.subr.bf16.mxu0 0
    %4922 = vmatpush1.bf16.xpose.msra.mxu0 0
    %4923 = vmatprep.subr.bf16.mxu0 0
    %4924 = vmatpush1.bf16.xpose.msra.mxu0 0
    %4925 = vmatprep.subr.bf16.mxu0 0
    %4926 = vmatpush1.bf16.xpose.msra.mxu0 0
    %4927 = vmatprep.subr.bf16.mxu0 0
    %4928 = vmatpush1.bf16.xpose.msra.mxu0 0
    %4929 = vmatprep.subr.bf16.mxu0 %v4792
    %4930 = vmatpush1.bf16.xpose.msra.mxu0 %v4791
    %4931 = vmatprep.subr.bf16.mxu0 %v4776
    %4932 = vmatpush1.bf16.xpose.msra.mxu0 %v4775
    %4933 = vmatprep.subr.bf16.mxu0 0
    %4934 = vmatpush2.bf16.xpose.msra.mxu0 0
    %4935 = vmatprep.subr.bf16.mxu0 0
    %4936 = vmatpush2.bf16.xpose.msra.mxu0 0
    %4937 = vmatprep.subr.bf16.mxu0 0
    %4938 = vmatpush2.bf16.xpose.msra.mxu0 0
    %4939 = vmatprep.subr.bf16.mxu0 0
    %4940 = vmatpush2.bf16.xpose.msra.mxu0 0
    %4941 = vmatprep.subr.bf16.mxu0 0
    %4942 = vmatpush2.bf16.xpose.msra.mxu0 0
    %4943 = vmatprep.subr.bf16.mxu0 0
    %4944 = vmatpush2.bf16.xpose.msra.mxu0 0
    %4945 = vmatprep.subr.bf16.mxu0 0
    %4946 = vmatpush2.bf16.xpose.msra.mxu0 0
    %4947 = vmatprep.subr.bf16.mxu0 0
    %4948 = vmatpush2.bf16.xpose.msra.mxu0 0
    %4949 = vmatprep.mubr.bf16.mxu0 %v4623
    %4950 = vmatmul.mubr.bf16.gmra.mxu0 %v4622
    %v4951 = vpop.f32.mrf.mxu0
    %v4952 = vadd.f32 %v4911, %v4951
    %v4953 = vpop.f32.mrf.mxu0
    %v4954 = vpop.f32.mrf.mxu0
    %v4955 = vadd.f32 %v4914, %v4954
    %v4956 = vpop.f32.mrf.mxu0
    %4957 = vdwg.mxu0
    %4958 = vmatprep.subr.bf16.mxu0 0
    %4959 = vmatpush1.bf16.xpose.msra.mxu0 0
    %4960 = vmatprep.subr.bf16.mxu0 0
    %4961 = vmatpush1.bf16.xpose.msra.mxu0 0
    %4962 = vmatprep.subr.bf16.mxu0 0
    %4963 = vmatpush1.bf16.xpose.msra.mxu0 0
    %4964 = vmatprep.subr.bf16.mxu0 0
    %4965 = vmatpush1.bf16.xpose.msra.mxu0 0
    %4966 = vmatprep.subr.bf16.mxu0 0
    %4967 = vmatpush1.bf16.xpose.msra.mxu0 0
    %4968 = vmatprep.subr.bf16.mxu0 0
    %4969 = vmatpush1.bf16.xpose.msra.mxu0 0
    %4970 = vmatprep.subr.bf16.mxu0 %v4794
    %4971 = vmatpush1.bf16.xpose.msra.mxu0 %v4793
    %4972 = vmatprep.subr.bf16.mxu0 %v4778
    %4973 = vmatpush1.bf16.xpose.msra.mxu0 %v4777
    %4974 = vmatprep.subr.bf16.mxu0 0
    %4975 = vmatpush2.bf16.xpose.msra.mxu0 0
    %4976 = vmatprep.subr.bf16.mxu0 0
    %4977 = vmatpush2.bf16.xpose.msra.mxu0 0
    %4978 = vmatprep.subr.bf16.mxu0 0
    %4979 = vmatpush2.bf16.xpose.msra.mxu0 0
    %4980 = vmatprep.subr.bf16.mxu0 0
    %4981 = vmatpush2.bf16.xpose.msra.mxu0 0
    %4982 = vmatprep.subr.bf16.mxu0 0
    %4983 = vmatpush2.bf16.xpose.msra.mxu0 0
    %4984 = vmatprep.subr.bf16.mxu0 0
    %4985 = vmatpush2.bf16.xpose.msra.mxu0 0
    %4986 = vmatprep.subr.bf16.mxu0 0
    %4987 = vmatpush2.bf16.xpose.msra.mxu0 0
    %4988 = vmatprep.subr.bf16.mxu0 0
    %4989 = vmatpush2.bf16.xpose.msra.mxu0 0
    %4990 = vmatprep.mubr.bf16.mxu0 %v4625
    %4991 = vmatmul.mubr.bf16.gmra.mxu0 %v4624
    %v4992 = vpop.f32.mrf.mxu0
    %v4993 = vadd.f32 %v4952, %v4992
    %v4994 = vpop.f32.mrf.mxu0
    %v4995 = vpop.f32.mrf.mxu0
    %v4996 = vadd.f32 %v4955, %v4995
    %v4997 = vpop.f32.mrf.mxu0
    %4998 = vdwg.mxu0
    %4999 = vmatprep.subr.bf16.mxu0 0
    %5000 = vmatpush1.bf16.xpose.msra.mxu0 0
    %5001 = vmatprep.subr.bf16.mxu0 0
    %5002 = vmatpush1.bf16.xpose.msra.mxu0 0
    %5003 = vmatprep.subr.bf16.mxu0 0
    %5004 = vmatpush1.bf16.xpose.msra.mxu0 0
    %5005 = vmatprep.subr.bf16.mxu0 0
    %5006 = vmatpush1.bf16.xpose.msra.mxu0 0
    %5007 = vmatprep.subr.bf16.mxu0 0
    %5008 = vmatpush1.bf16.xpose.msra.mxu0 0
    %5009 = vmatprep.subr.bf16.mxu0 0
    %5010 = vmatpush1.bf16.xpose.msra.mxu0 0
    %5011 = vmatprep.subr.bf16.mxu0 %v4796
    %5012 = vmatpush1.bf16.xpose.msra.mxu0 %v4795
    %5013 = vmatprep.subr.bf16.mxu0 %v4780
    %5014 = vmatpush1.bf16.xpose.msra.mxu0 %v4779
    %5015 = vmatprep.subr.bf16.mxu0 0
    %5016 = vmatpush2.bf16.xpose.msra.mxu0 0
    %5017 = vmatprep.subr.bf16.mxu0 0
    %5018 = vmatpush2.bf16.xpose.msra.mxu0 0
    %5019 = vmatprep.subr.bf16.mxu0 0
    %5020 = vmatpush2.bf16.xpose.msra.mxu0 0
    %5021 = vmatprep.subr.bf16.mxu0 0
    %5022 = vmatpush2.bf16.xpose.msra.mxu0 0
    %5023 = vmatprep.subr.bf16.mxu0 0
    %5024 = vmatpush2.bf16.xpose.msra.mxu0 0
    %5025 = vmatprep.subr.bf16.mxu0 0
    %5026 = vmatpush2.bf16.xpose.msra.mxu0 0
    %5027 = vmatprep.subr.bf16.mxu0 0
    %5028 = vmatpush2.bf16.xpose.msra.mxu0 0
    %5029 = vmatprep.subr.bf16.mxu0 0
    %5030 = vmatpush2.bf16.xpose.msra.mxu0 0
    %5031 = vmatprep.mubr.bf16.mxu0 %v4627
    %5032 = vmatmul.mubr.bf16.gmra.mxu0 %v4626
    %v5033 = vpop.f32.mrf.mxu0
    %v5034 = vadd.f32 %v4993, %v5033
    %v5035 = vpop.f32.mrf.mxu0
    %v5036 = vpop.f32.mrf.mxu0
    %v5037 = vadd.f32 %v4996, %v5036
    %v5038 = vpop.f32.mrf.mxu0
    %5039 = vdwg.mxu0
    %5040 = vmatprep.subr.bf16.mxu0 0
    %5041 = vmatpush1.bf16.xpose.msra.mxu0 0
    %5042 = vmatprep.subr.bf16.mxu0 0
    %5043 = vmatpush1.bf16.xpose.msra.mxu0 0
    %5044 = vmatprep.subr.bf16.mxu0 0
    %5045 = vmatpush1.bf16.xpose.msra.mxu0 0
    %5046 = vmatprep.subr.bf16.mxu0 0
    %5047 = vmatpush1.bf16.xpose.msra.mxu0 0
    %5048 = vmatprep.subr.bf16.mxu0 0
    %5049 = vmatpush1.bf16.xpose.msra.mxu0 0
    %5050 = vmatprep.subr.bf16.mxu0 0
    %5051 = vmatpush1.bf16.xpose.msra.mxu0 0
    %5052 = vmatprep.subr.bf16.mxu0 %v4798
    %5053 = vmatpush1.bf16.xpose.msra.mxu0 %v4797
    %5054 = vmatprep.subr.bf16.mxu0 %v4782
    %5055 = vmatpush1.bf16.xpose.msra.mxu0 %v4781
    %5056 = vmatprep.subr.bf16.mxu0 0
    %5057 = vmatpush2.bf16.xpose.msra.mxu0 0
    %5058 = vmatprep.subr.bf16.mxu0 0
    %5059 = vmatpush2.bf16.xpose.msra.mxu0 0
    %5060 = vmatprep.subr.bf16.mxu0 0
    %5061 = vmatpush2.bf16.xpose.msra.mxu0 0
    %5062 = vmatprep.subr.bf16.mxu0 0
    %5063 = vmatpush2.bf16.xpose.msra.mxu0 0
    %5064 = vmatprep.subr.bf16.mxu0 0
    %5065 = vmatpush2.bf16.xpose.msra.mxu0 0
    %5066 = vmatprep.subr.bf16.mxu0 0
    %5067 = vmatpush2.bf16.xpose.msra.mxu0 0
    %5068 = vmatprep.subr.bf16.mxu0 0
    %5069 = vmatpush2.bf16.xpose.msra.mxu0 0
    %5070 = vmatprep.subr.bf16.mxu0 0
    %5071 = vmatpush2.bf16.xpose.msra.mxu0 0
    %5072 = vmatprep.mubr.bf16.mxu0 %v4629
    %5073 = vmatmul.mubr.bf16.gmra.mxu0 %v4628
    %v5074 = vpop.f32.mrf.mxu0
    %v5075 = vadd.f32 %v5034, %v5074
    %v5076 = vpop.f32.mrf.mxu0
    %v5077 = vpop.f32.mrf.mxu0
    %v5078 = vadd.f32 %v5037, %v5077
    %v5079 = vpop.f32.mrf.mxu0
    %5080 = vdwg.mxu0
    %5081 = vmatprep.subr.bf16.mxu0 0
    %5082 = vmatpush1.bf16.xpose.msra.mxu0 0
    %5083 = vmatprep.subr.bf16.mxu0 0
    %5084 = vmatpush1.bf16.xpose.msra.mxu0 0
    %5085 = vmatprep.subr.bf16.mxu0 0
    %5086 = vmatpush1.bf16.xpose.msra.mxu0 0
    %5087 = vmatprep.subr.bf16.mxu0 0
    %5088 = vmatpush1.bf16.xpose.msra.mxu0 0
    %5089 = vmatprep.subr.bf16.mxu0 0
    %5090 = vmatpush1.bf16.xpose.msra.mxu0 0
    %5091 = vmatprep.subr.bf16.mxu0 0
    %5092 = vmatpush1.bf16.xpose.msra.mxu0 0
    %5093 = vmatprep.subr.bf16.mxu0 %v4800
    %5094 = vmatpush1.bf16.xpose.msra.mxu0 %v4799
    %5095 = vmatprep.subr.bf16.mxu0 %v4784
    %5096 = vmatpush1.bf16.xpose.msra.mxu0 %v4783
    %5097 = vmatprep.subr.bf16.mxu0 0
    %5098 = vmatpush2.bf16.xpose.msra.mxu0 0
    %5099 = vmatprep.subr.bf16.mxu0 0
    %5100 = vmatpush2.bf16.xpose.msra.mxu0 0
    %5101 = vmatprep.subr.bf16.mxu0 0
    %5102 = vmatpush2.bf16.xpose.msra.mxu0 0
    %5103 = vmatprep.subr.bf16.mxu0 0
    %5104 = vmatpush2.bf16.xpose.msra.mxu0 0
    %5105 = vmatprep.subr.bf16.mxu0 0
    %5106 = vmatpush2.bf16.xpose.msra.mxu0 0
    %5107 = vmatprep.subr.bf16.mxu0 0
    %5108 = vmatpush2.bf16.xpose.msra.mxu0 0
    %5109 = vmatprep.subr.bf16.mxu0 0
    %5110 = vmatpush2.bf16.xpose.msra.mxu0 0
    %5111 = vmatprep.subr.bf16.mxu0 0
    %5112 = vmatpush2.bf16.xpose.msra.mxu0 0
    %5113 = vmatprep.mubr.bf16.mxu0 %v4631
    %5114 = vmatmul.mubr.bf16.gmra.mxu0 %v4630
    %v5115 = vpop.f32.mrf.mxu0
    %v5116 = vadd.f32 %v5075, %v5115
    %v5117 = vpop.f32.mrf.mxu0
    %v5118 = vpop.f32.mrf.mxu0
    %v5119 = vadd.f32 %v5078, %v5118
    %v5120 = vpop.f32.mrf.mxu0
    %5121 = vdwg.mxu0
    %5122 = vmatprep.subr.bf16.mxu0 0
    %5123 = vmatpush1.bf16.xpose.msra.mxu0 0
    %5124 = vmatprep.subr.bf16.mxu0 0
    %5125 = vmatpush1.bf16.xpose.msra.mxu0 0
    %5126 = vmatprep.subr.bf16.mxu0 0
    %5127 = vmatpush1.bf16.xpose.msra.mxu0 0
    %5128 = vmatprep.subr.bf16.mxu0 0
    %5129 = vmatpush1.bf16.xpose.msra.mxu0 0
    %5130 = vmatprep.subr.bf16.mxu0 0
    %5131 = vmatpush1.bf16.xpose.msra.mxu0 0
    %5132 = vmatprep.subr.bf16.mxu0 0
    %5133 = vmatpush1.bf16.xpose.msra.mxu0 0
    %5134 = vmatprep.subr.bf16.mxu0 %v4802
    %5135 = vmatpush1.bf16.xpose.msra.mxu0 %v4801
    %5136 = vmatprep.subr.bf16.mxu0 %v4786
    %5137 = vmatpush1.bf16.xpose.msra.mxu0 %v4785
    %5138 = vmatprep.subr.bf16.mxu0 0
    %5139 = vmatpush2.bf16.xpose.msra.mxu0 0
    %5140 = vmatprep.subr.bf16.mxu0 0
    %5141 = vmatpush2.bf16.xpose.msra.mxu0 0
    %5142 = vmatprep.subr.bf16.mxu0 0
    %5143 = vmatpush2.bf16.xpose.msra.mxu0 0
    %5144 = vmatprep.subr.bf16.mxu0 0
    %5145 = vmatpush2.bf16.xpose.msra.mxu0 0
    %5146 = vmatprep.subr.bf16.mxu0 0
    %5147 = vmatpush2.bf16.xpose.msra.mxu0 0
    %5148 = vmatprep.subr.bf16.mxu0 0
    %5149 = vmatpush2.bf16.xpose.msra.mxu0 0
    %5150 = vmatprep.subr.bf16.mxu0 0
    %5151 = vmatpush2.bf16.xpose.msra.mxu0 0
    %5152 = vmatprep.subr.bf16.mxu0 0
    %5153 = vmatpush2.bf16.xpose.msra.mxu0 0
    %5154 = vmatprep.mubr.bf16.mxu0 %v4633
    %5155 = vmatmul.mubr.bf16.gmra.mxu0 %v4632
    %v5156 = vpop.f32.mrf.mxu0
    %v5157 = vadd.f32 %v5116, %v5156
    %v5158 = vpop.f32.mrf.mxu0
    %v5159 = vpop.f32.mrf.mxu0
    %v5160 = vadd.f32 %v5119, %v5159
    %v5161 = vpop.f32.mrf.mxu0
    %5162 = vdwg.mxu0
    %v5163 = vadd.f32 %v5157, %v3958
    %v5164 = vadd.f32 %v5160, %v3959
    %s5165 = scalar_lea.vmem [#allocation10], 10
    %v5166 = vld [vmem:[%s5165] sm:$0x1]
    %s5167 = scalar_lea.vmem [#allocation10], 11
    %v5168 = vld [vmem:[%s5167] sm:$0x1]
    %v5169 = vsel %vm242, %v5163, 0.0
    %5170 = vadd.xlane.f32.xlu0 %v5169
    %v5171 = vpop.xlane.xlu0 %5170
    %v5172 = vsel %vm242, %v5164, 0.0
    %5173 = vadd.xlane.f32.xlu0 %v5172
    %v5174 = vpop.xlane.xlu0 %5173
    %v5175 = vmul.f32 %v5171, %v1428
    %v5176 = vmul.f32 %v5174, %v1428
    %v5177 = vsub.f32 %v5163, %v5175
    %v5178 = vsub.f32 %v5164, %v5176
    %v5179 = vmul.f32 %v5177, %v5177
    %v5180 = vmul.f32 %v5178, %v5178
    %v5181 = vsel %vm242, %v5179, 0.0
    %5182 = vadd.xlane.f32.xlu0 %v5181
    %v5183 = vpop.xlane.xlu0 %5182
    %v5184 = vsel %vm242, %v5180, 0.0
    %5185 = vadd.xlane.f32.xlu0 %v5184
    %v5186 = vpop.xlane.xlu0 %5185
    %v5187 = vmul.f32 %v5183, %v1428
    %v5188 = vmul.f32 %v5186, %v1428
    %v5189 = vadd.f32 %v5187, 1e-05
    %v5190 = vadd.f32 %v5188, 1e-05
    %v5191 = vrsqrt.pop %v5189
    %v5192 = vrsqrt.pop %v5190
    %v5193 = vmul.f32 %v5177, %v5191
    %v5194 = vmul.f32 %v5178, %v5192
    %v5196 = vlaneseq
    %v5197 = vshrl.u32 %v5196, 7
    %v5198 = vsub.s32 0, %v5197
    %v5199 = vrot.slane %v5166, %v5198
    %v5201 = vmul.f32 %v5193, %v5199
    %v5202 = vmul.f32 %v5194, %v5199
    %v5204 = vlaneseq
    %v5205 = vshrl.u32 %v5204, 7
    %v5206 = vsub.s32 0, %v5205
    %v5207 = vrot.slane %v5168, %v5206
    %v5209 = vadd.f32 %v5201, %v5207
    %v5210 = vadd.f32 %v5202, %v5207
    %v5213 = vrot.slane %v5209, 1
    %v5214 = vrot.slane %v5210, 1
    %v5217 = vrot.slane %v5209, 2
    %v5218 = vrot.slane %v5210, 2
    %v5221 = vrot.slane %v5209, 3
    %v5222 = vrot.slane %v5210, 3
    %v5225 = vrot.slane %v5209, 4
    %v5226 = vrot.slane %v5210, 4
    %v5229 = vrot.slane %v5209, 5
    %v5230 = vrot.slane %v5210, 5
    %v5233 = vrot.slane %v5209, 6
    %v5234 = vrot.slane %v5210, 6
    %v5237 = vrot.slane %v5209, 7
    %v5238 = vrot.slane %v5210, 7
    %v5241 = vpack.c.bf16 %v5209, %v5209
    %v5242 = vpack.c.bf16 %v5210, %v5210
    %v5243 = vpack.c.bf16 %v5213, %v5213
    %v5244 = vpack.c.bf16 %v5214, %v5214
    %v5245 = vpack.c.bf16 %v5217, %v5217
    %v5246 = vpack.c.bf16 %v5218, %v5218
    %v5247 = vpack.c.bf16 %v5221, %v5221
    %v5248 = vpack.c.bf16 %v5222, %v5222
    %v5249 = vpack.c.bf16 %v5225, %v5225
    %v5250 = vpack.c.bf16 %v5226, %v5226
    %v5251 = vpack.c.bf16 %v5229, %v5229
    %v5252 = vpack.c.bf16 %v5230, %v5230
    %v5253 = vpack.c.bf16 %v5233, %v5233
    %v5254 = vpack.c.bf16 %v5234, %v5234
    %v5255 = vpack.c.bf16 %v5237, %v5237
    %v5256 = vpack.c.bf16 %v5238, %v5238
    %v5257 = vld [vmem:[#allocation16] sm:$0x3]
    %v5258 = vld [vmem:[#allocation16 + $0x2] sm:$0x3]
    %v5259 = vld [vmem:[#allocation16 + $0x4] sm:$0x3]
    %v5260 = vld [vmem:[#allocation16 + $0x6] sm:$0x3]
    %v5261 = vld [vmem:[#allocation16 + $0x8] sm:$0x3]
    %v5262 = vld [vmem:[#allocation16 + $0xa] sm:$0x3]
    %v5263 = vld [vmem:[#allocation16 + $0xc] sm:$0x3]
    %v5264 = vld [vmem:[#allocation16 + $0xe] sm:$0x3]
    %v5267 = vunpack.c.l.b16 %v5241
    %v5268 = vunpack.c.l.b16 %v5242
    %v5269 = vrot.slane %v5268, 7
    %vm5270 = vcmask 1041409
    %v5271 = vsel %vm5270, %v5269, %v5267
    %v5272 = vpack.c.b16 %v5271, %v5271
    %v5274 = vsel %vm242, %v5272, 0
    %v5277 = vsel %vm242, %v5257, 0
    %5279 = vmatprep.subr.bf16.mxu0 0
    %5280 = vmatpush1.bf16.xpose.msra.mxu0 0
    %5281 = vmatprep.subr.bf16.mxu0 0
    %5282 = vmatpush1.bf16.xpose.msra.mxu0 0
    %5283 = vmatprep.subr.bf16.mxu0 0
    %5284 = vmatpush1.bf16.xpose.msra.mxu0 0
    %5285 = vmatprep.subr.bf16.mxu0 0
    %5286 = vmatpush1.bf16.xpose.msra.mxu0 0
    %5287 = vmatprep.subr.bf16.mxu0 0
    %5288 = vmatpush1.bf16.xpose.msra.mxu0 0
    %5289 = vmatprep.subr.bf16.mxu0 0
    %5290 = vmatpush1.bf16.xpose.msra.mxu0 0
    %5291 = vmatprep.subr.bf16.mxu0 0
    %5292 = vmatpush1.bf16.xpose.msra.mxu0 0
    %5293 = vmatprep.subr.bf16.mxu0 0
    %5294 = vmatpush1.bf16.xpose.msra.mxu0 %v5277
    %5295 = vmatprep.subr.bf16.mxu0 0
    %5296 = vmatpush2.bf16.xpose.msra.mxu0 0
    %5297 = vmatprep.subr.bf16.mxu0 0
    %5298 = vmatpush2.bf16.xpose.msra.mxu0 0
    %5299 = vmatprep.subr.bf16.mxu0 0
    %5300 = vmatpush2.bf16.xpose.msra.mxu0 0
    %5301 = vmatprep.subr.bf16.mxu0 0
    %5302 = vmatpush2.bf16.xpose.msra.mxu0 0
    %5303 = vmatprep.subr.bf16.mxu0 0
    %5304 = vmatpush2.bf16.xpose.msra.mxu0 0
    %5305 = vmatprep.subr.bf16.mxu0 0
    %5306 = vmatpush2.bf16.xpose.msra.mxu0 0
    %5307 = vmatprep.subr.bf16.mxu0 0
    %5308 = vmatpush2.bf16.xpose.msra.mxu0 0
    %5309 = vmatprep.subr.bf16.mxu0 0
    %5310 = vmatpush2.bf16.xpose.msra.mxu0 0
    %5311 = vmatprep.mubr.bf16.mxu0 0
    %5312 = vmatmul.mubr.bf16.gmra.mxu0 %v5274
    %v5313 = vpop.f32.mrf.mxu0
    %v5314 = vadd.f32 0.0, %v5313
    %v5315 = vpop.f32.mrf.mxu0
    %v5316 = vpop.f32.mrf.mxu0
    %v5317 = vpop.f32.mrf.mxu0
    %5318 = vdwg.mxu0
    %v5321 = vunpack.c.l.b16 %v5243
    %v5322 = vunpack.c.l.b16 %v5244
    %v5323 = vrot.slane %v5322, 7
    %v5324 = vsel %vm5270, %v5323, %v5321
    %v5325 = vpack.c.b16 %v5324, %v5324
    %v5327 = vsel %vm242, %v5325, 0
    %v5330 = vsel %vm242, %v5258, 0
    %5332 = vmatprep.subr.bf16.mxu0 0
    %5333 = vmatpush1.bf16.xpose.msra.mxu0 0
    %5334 = vmatprep.subr.bf16.mxu0 0
    %5335 = vmatpush1.bf16.xpose.msra.mxu0 0
    %5336 = vmatprep.subr.bf16.mxu0 0
    %5337 = vmatpush1.bf16.xpose.msra.mxu0 0
    %5338 = vmatprep.subr.bf16.mxu0 0
    %5339 = vmatpush1.bf16.xpose.msra.mxu0 0
    %5340 = vmatprep.subr.bf16.mxu0 0
    %5341 = vmatpush1.bf16.xpose.msra.mxu0 0
    %5342 = vmatprep.subr.bf16.mxu0 0
    %5343 = vmatpush1.bf16.xpose.msra.mxu0 0
    %5344 = vmatprep.subr.bf16.mxu0 0
    %5345 = vmatpush1.bf16.xpose.msra.mxu0 0
    %5346 = vmatprep.subr.bf16.mxu0 0
    %5347 = vmatpush1.bf16.xpose.msra.mxu0 %v5330
    %5348 = vmatprep.subr.bf16.mxu0 0
    %5349 = vmatpush2.bf16.xpose.msra.mxu0 0
    %5350 = vmatprep.subr.bf16.mxu0 0
    %5351 = vmatpush2.bf16.xpose.msra.mxu0 0
    %5352 = vmatprep.subr.bf16.mxu0 0
    %5353 = vmatpush2.bf16.xpose.msra.mxu0 0
    %5354 = vmatprep.subr.bf16.mxu0 0
    %5355 = vmatpush2.bf16.xpose.msra.mxu0 0
    %5356 = vmatprep.subr.bf16.mxu0 0
    %5357 = vmatpush2.bf16.xpose.msra.mxu0 0
    %5358 = vmatprep.subr.bf16.mxu0 0
    %5359 = vmatpush2.bf16.xpose.msra.mxu0 0
    %5360 = vmatprep.subr.bf16.mxu0 0
    %5361 = vmatpush2.bf16.xpose.msra.mxu0 0
    %5362 = vmatprep.subr.bf16.mxu0 0
    %5363 = vmatpush2.bf16.xpose.msra.mxu0 0
    %5364 = vmatprep.mubr.bf16.mxu0 0
    %5365 = vmatmul.mubr.bf16.gmra.mxu0 %v5327
    %v5366 = vpop.f32.mrf.mxu0
    %v5367 = vadd.f32 0.0, %v5366
    %v5368 = vpop.f32.mrf.mxu0
    %v5369 = vpop.f32.mrf.mxu0
    %v5370 = vpop.f32.mrf.mxu0
    %5371 = vdwg.mxu0
    %v5374 = vunpack.c.l.b16 %v5245
    %v5375 = vunpack.c.l.b16 %v5246
    %v5376 = vrot.slane %v5375, 7
    %v5377 = vsel %vm5270, %v5376, %v5374
    %v5378 = vpack.c.b16 %v5377, %v5377
    %v5380 = vsel %vm242, %v5378, 0
    %v5383 = vsel %vm242, %v5259, 0
    %5385 = vmatprep.subr.bf16.mxu0 0
    %5386 = vmatpush1.bf16.xpose.msra.mxu0 0
    %5387 = vmatprep.subr.bf16.mxu0 0
    %5388 = vmatpush1.bf16.xpose.msra.mxu0 0
    %5389 = vmatprep.subr.bf16.mxu0 0
    %5390 = vmatpush1.bf16.xpose.msra.mxu0 0
    %5391 = vmatprep.subr.bf16.mxu0 0
    %5392 = vmatpush1.bf16.xpose.msra.mxu0 0
    %5393 = vmatprep.subr.bf16.mxu0 0
    %5394 = vmatpush1.bf16.xpose.msra.mxu0 0
    %5395 = vmatprep.subr.bf16.mxu0 0
    %5396 = vmatpush1.bf16.xpose.msra.mxu0 0
    %5397 = vmatprep.subr.bf16.mxu0 0
    %5398 = vmatpush1.bf16.xpose.msra.mxu0 0
    %5399 = vmatprep.subr.bf16.mxu0 0
    %5400 = vmatpush1.bf16.xpose.msra.mxu0 %v5383
    %5401 = vmatprep.subr.bf16.mxu0 0
    %5402 = vmatpush2.bf16.xpose.msra.mxu0 0
    %5403 = vmatprep.subr.bf16.mxu0 0
    %5404 = vmatpush2.bf16.xpose.msra.mxu0 0
    %5405 = vmatprep.subr.bf16.mxu0 0
    %5406 = vmatpush2.bf16.xpose.msra.mxu0 0
    %5407 = vmatprep.subr.bf16.mxu0 0
    %5408 = vmatpush2.bf16.xpose.msra.mxu0 0
    %5409 = vmatprep.subr.bf16.mxu0 0
    %5410 = vmatpush2.bf16.xpose.msra.mxu0 0
    %5411 = vmatprep.subr.bf16.mxu0 0
    %5412 = vmatpush2.bf16.xpose.msra.mxu0 0
    %5413 = vmatprep.subr.bf16.mxu0 0
    %5414 = vmatpush2.bf16.xpose.msra.mxu0 0
    %5415 = vmatprep.subr.bf16.mxu0 0
    %5416 = vmatpush2.bf16.xpose.msra.mxu0 0
    %5417 = vmatprep.mubr.bf16.mxu0 0
    %5418 = vmatmul.mubr.bf16.gmra.mxu0 %v5380
    %v5419 = vpop.f32.mrf.mxu0
    %v5420 = vadd.f32 0.0, %v5419
    %v5421 = vpop.f32.mrf.mxu0
    %v5422 = vpop.f32.mrf.mxu0
    %v5423 = vpop.f32.mrf.mxu0
    %5424 = vdwg.mxu0
    %v5427 = vunpack.c.l.b16 %v5247
    %v5428 = vunpack.c.l.b16 %v5248
    %v5429 = vrot.slane %v5428, 7
    %v5430 = vsel %vm5270, %v5429, %v5427
    %v5431 = vpack.c.b16 %v5430, %v5430
    %v5433 = vsel %vm242, %v5431, 0
    %v5436 = vsel %vm242, %v5260, 0
    %5438 = vmatprep.subr.bf16.mxu0 0
    %5439 = vmatpush1.bf16.xpose.msra.mxu0 0
    %5440 = vmatprep.subr.bf16.mxu0 0
    %5441 = vmatpush1.bf16.xpose.msra.mxu0 0
    %5442 = vmatprep.subr.bf16.mxu0 0
    %5443 = vmatpush1.bf16.xpose.msra.mxu0 0
    %5444 = vmatprep.subr.bf16.mxu0 0
    %5445 = vmatpush1.bf16.xpose.msra.mxu0 0
    %5446 = vmatprep.subr.bf16.mxu0 0
    %5447 = vmatpush1.bf16.xpose.msra.mxu0 0
    %5448 = vmatprep.subr.bf16.mxu0 0
    %5449 = vmatpush1.bf16.xpose.msra.mxu0 0
    %5450 = vmatprep.subr.bf16.mxu0 0
    %5451 = vmatpush1.bf16.xpose.msra.mxu0 0
    %5452 = vmatprep.subr.bf16.mxu0 0
    %5453 = vmatpush1.bf16.xpose.msra.mxu0 %v5436
    %5454 = vmatprep.subr.bf16.mxu0 0
    %5455 = vmatpush2.bf16.xpose.msra.mxu0 0
    %5456 = vmatprep.subr.bf16.mxu0 0
    %5457 = vmatpush2.bf16.xpose.msra.mxu0 0
    %5458 = vmatprep.subr.bf16.mxu0 0
    %5459 = vmatpush2.bf16.xpose.msra.mxu0 0
    %5460 = vmatprep.subr.bf16.mxu0 0
    %5461 = vmatpush2.bf16.xpose.msra.mxu0 0
    %5462 = vmatprep.subr.bf16.mxu0 0
    %5463 = vmatpush2.bf16.xpose.msra.mxu0 0
    %5464 = vmatprep.subr.bf16.mxu0 0
    %5465 = vmatpush2.bf16.xpose.msra.mxu0 0
    %5466 = vmatprep.subr.bf16.mxu0 0
    %5467 = vmatpush2.bf16.xpose.msra.mxu0 0
    %5468 = vmatprep.subr.bf16.mxu0 0
    %5469 = vmatpush2.bf16.xpose.msra.mxu0 0
    %5470 = vmatprep.mubr.bf16.mxu0 0
    %5471 = vmatmul.mubr.bf16.gmra.mxu0 %v5433
    %v5472 = vpop.f32.mrf.mxu0
    %v5473 = vadd.f32 0.0, %v5472
    %v5474 = vpop.f32.mrf.mxu0
    %v5475 = vpop.f32.mrf.mxu0
    %v5476 = vpop.f32.mrf.mxu0
    %5477 = vdwg.mxu0
    %v5480 = vunpack.c.l.b16 %v5249
    %v5481 = vunpack.c.l.b16 %v5250
    %v5482 = vrot.slane %v5481, 7
    %v5483 = vsel %vm5270, %v5482, %v5480
    %v5484 = vpack.c.b16 %v5483, %v5483
    %v5486 = vsel %vm242, %v5484, 0
    %v5489 = vsel %vm242, %v5261, 0
    %5491 = vmatprep.subr.bf16.mxu0 0
    %5492 = vmatpush1.bf16.xpose.msra.mxu0 0
    %5493 = vmatprep.subr.bf16.mxu0 0
    %5494 = vmatpush1.bf16.xpose.msra.mxu0 0
    %5495 = vmatprep.subr.bf16.mxu0 0
    %5496 = vmatpush1.bf16.xpose.msra.mxu0 0
    %5497 = vmatprep.subr.bf16.mxu0 0
    %5498 = vmatpush1.bf16.xpose.msra.mxu0 0
    %5499 = vmatprep.subr.bf16.mxu0 0
    %5500 = vmatpush1.bf16.xpose.msra.mxu0 0
    %5501 = vmatprep.subr.bf16.mxu0 0
    %5502 = vmatpush1.bf16.xpose.msra.mxu0 0
    %5503 = vmatprep.subr.bf16.mxu0 0
    %5504 = vmatpush1.bf16.xpose.msra.mxu0 0
    %5505 = vmatprep.subr.bf16.mxu0 0
    %5506 = vmatpush1.bf16.xpose.msra.mxu0 %v5489
    %5507 = vmatprep.subr.bf16.mxu0 0
    %5508 = vmatpush2.bf16.xpose.msra.mxu0 0
    %5509 = vmatprep.subr.bf16.mxu0 0
    %5510 = vmatpush2.bf16.xpose.msra.mxu0 0
    %5511 = vmatprep.subr.bf16.mxu0 0
    %5512 = vmatpush2.bf16.xpose.msra.mxu0 0
    %5513 = vmatprep.subr.bf16.mxu0 0
    %5514 = vmatpush2.bf16.xpose.msra.mxu0 0
    %5515 = vmatprep.subr.bf16.mxu0 0
    %5516 = vmatpush2.bf16.xpose.msra.mxu0 0
    %5517 = vmatprep.subr.bf16.mxu0 0
    %5518 = vmatpush2.bf16.xpose.msra.mxu0 0
    %5519 = vmatprep.subr.bf16.mxu0 0
    %5520 = vmatpush2.bf16.xpose.msra.mxu0 0
    %5521 = vmatprep.subr.bf16.mxu0 0
    %5522 = vmatpush2.bf16.xpose.msra.mxu0 0
    %5523 = vmatprep.mubr.bf16.mxu0 0
    %5524 = vmatmul.mubr.bf16.gmra.mxu0 %v5486
    %v5525 = vpop.f32.mrf.mxu0
    %v5526 = vadd.f32 0.0, %v5525
    %v5527 = vpop.f32.mrf.mxu0
    %v5528 = vpop.f32.mrf.mxu0
    %v5529 = vpop.f32.mrf.mxu0
    %5530 = vdwg.mxu0
    %v5533 = vunpack.c.l.b16 %v5251
    %v5534 = vunpack.c.l.b16 %v5252
    %v5535 = vrot.slane %v5534, 7
    %v5536 = vsel %vm5270, %v5535, %v5533
    %v5537 = vpack.c.b16 %v5536, %v5536
    %v5539 = vsel %vm242, %v5537, 0
    %v5542 = vsel %vm242, %v5262, 0
    %5544 = vmatprep.subr.bf16.mxu0 0
    %5545 = vmatpush1.bf16.xpose.msra.mxu0 0
    %5546 = vmatprep.subr.bf16.mxu0 0
    %5547 = vmatpush1.bf16.xpose.msra.mxu0 0
    %5548 = vmatprep.subr.bf16.mxu0 0
    %5549 = vmatpush1.bf16.xpose.msra.mxu0 0
    %5550 = vmatprep.subr.bf16.mxu0 0
    %5551 = vmatpush1.bf16.xpose.msra.mxu0 0
    %5552 = vmatprep.subr.bf16.mxu0 0
    %5553 = vmatpush1.bf16.xpose.msra.mxu0 0
    %5554 = vmatprep.subr.bf16.mxu0 0
    %5555 = vmatpush1.bf16.xpose.msra.mxu0 0
    %5556 = vmatprep.subr.bf16.mxu0 0
    %5557 = vmatpush1.bf16.xpose.msra.mxu0 0
    %5558 = vmatprep.subr.bf16.mxu0 0
    %5559 = vmatpush1.bf16.xpose.msra.mxu0 %v5542
    %5560 = vmatprep.subr.bf16.mxu0 0
    %5561 = vmatpush2.bf16.xpose.msra.mxu0 0
    %5562 = vmatprep.subr.bf16.mxu0 0
    %5563 = vmatpush2.bf16.xpose.msra.mxu0 0
    %5564 = vmatprep.subr.bf16.mxu0 0
    %5565 = vmatpush2.bf16.xpose.msra.mxu0 0
    %5566 = vmatprep.subr.bf16.mxu0 0
    %5567 = vmatpush2.bf16.xpose.msra.mxu0 0
    %5568 = vmatprep.subr.bf16.mxu0 0
    %5569 = vmatpush2.bf16.xpose.msra.mxu0 0
    %5570 = vmatprep.subr.bf16.mxu0 0
    %5571 = vmatpush2.bf16.xpose.msra.mxu0 0
    %5572 = vmatprep.subr.bf16.mxu0 0
    %5573 = vmatpush2.bf16.xpose.msra.mxu0 0
    %5574 = vmatprep.subr.bf16.mxu0 0
    %5575 = vmatpush2.bf16.xpose.msra.mxu0 0
    %5576 = vmatprep.mubr.bf16.mxu0 0
    %5577 = vmatmul.mubr.bf16.gmra.mxu0 %v5539
    %v5578 = vpop.f32.mrf.mxu0
    %v5579 = vadd.f32 0.0, %v5578
    %v5580 = vpop.f32.mrf.mxu0
    %v5581 = vpop.f32.mrf.mxu0
    %v5582 = vpop.f32.mrf.mxu0
    %5583 = vdwg.mxu0
    %v5586 = vunpack.c.l.b16 %v5253
    %v5587 = vunpack.c.l.b16 %v5254
    %v5588 = vrot.slane %v5587, 7
    %v5589 = vsel %vm5270, %v5588, %v5586
    %v5590 = vpack.c.b16 %v5589, %v5589
    %v5592 = vsel %vm242, %v5590, 0
    %v5595 = vsel %vm242, %v5263, 0
    %5597 = vmatprep.subr.bf16.mxu0 0
    %5598 = vmatpush1.bf16.xpose.msra.mxu0 0
    %5599 = vmatprep.subr.bf16.mxu0 0
    %5600 = vmatpush1.bf16.xpose.msra.mxu0 0
    %5601 = vmatprep.subr.bf16.mxu0 0
    %5602 = vmatpush1.bf16.xpose.msra.mxu0 0
    %5603 = vmatprep.subr.bf16.mxu0 0
    %5604 = vmatpush1.bf16.xpose.msra.mxu0 0
    %5605 = vmatprep.subr.bf16.mxu0 0
    %5606 = vmatpush1.bf16.xpose.msra.mxu0 0
    %5607 = vmatprep.subr.bf16.mxu0 0
    %5608 = vmatpush1.bf16.xpose.msra.mxu0 0
    %5609 = vmatprep.subr.bf16.mxu0 0
    %5610 = vmatpush1.bf16.xpose.msra.mxu0 0
    %5611 = vmatprep.subr.bf16.mxu0 0
    %5612 = vmatpush1.bf16.xpose.msra.mxu0 %v5595
    %5613 = vmatprep.subr.bf16.mxu0 0
    %5614 = vmatpush2.bf16.xpose.msra.mxu0 0
    %5615 = vmatprep.subr.bf16.mxu0 0
    %5616 = vmatpush2.bf16.xpose.msra.mxu0 0
    %5617 = vmatprep.subr.bf16.mxu0 0
    %5618 = vmatpush2.bf16.xpose.msra.mxu0 0
    %5619 = vmatprep.subr.bf16.mxu0 0
    %5620 = vmatpush2.bf16.xpose.msra.mxu0 0
    %5621 = vmatprep.subr.bf16.mxu0 0
    %5622 = vmatpush2.bf16.xpose.msra.mxu0 0
    %5623 = vmatprep.subr.bf16.mxu0 0
    %5624 = vmatpush2.bf16.xpose.msra.mxu0 0
    %5625 = vmatprep.subr.bf16.mxu0 0
    %5626 = vmatpush2.bf16.xpose.msra.mxu0 0
    %5627 = vmatprep.subr.bf16.mxu0 0
    %5628 = vmatpush2.bf16.xpose.msra.mxu0 0
    %5629 = vmatprep.mubr.bf16.mxu0 0
    %5630 = vmatmul.mubr.bf16.gmra.mxu0 %v5592
    %v5631 = vpop.f32.mrf.mxu0
    %v5632 = vadd.f32 0.0, %v5631
    %v5633 = vpop.f32.mrf.mxu0
    %v5634 = vpop.f32.mrf.mxu0
    %v5635 = vpop.f32.mrf.mxu0
    %5636 = vdwg.mxu0
    %v5639 = vunpack.c.l.b16 %v5255
    %v5640 = vunpack.c.l.b16 %v5256
    %v5641 = vrot.slane %v5640, 7
    %v5642 = vsel %vm5270, %v5641, %v5639
    %v5643 = vpack.c.b16 %v5642, %v5642
    %v5645 = vsel %vm242, %v5643, 0
    %v5648 = vsel %vm242, %v5264, 0
    %5650 = vmatprep.subr.bf16.mxu0 0
    %5651 = vmatpush1.bf16.xpose.msra.mxu0 0
    %5652 = vmatprep.subr.bf16.mxu0 0
    %5653 = vmatpush1.bf16.xpose.msra.mxu0 0
    %5654 = vmatprep.subr.bf16.mxu0 0
    %5655 = vmatpush1.bf16.xpose.msra.mxu0 0
    %5656 = vmatprep.subr.bf16.mxu0 0
    %5657 = vmatpush1.bf16.xpose.msra.mxu0 0
    %5658 = vmatprep.subr.bf16.mxu0 0
    %5659 = vmatpush1.bf16.xpose.msra.mxu0 0
    %5660 = vmatprep.subr.bf16.mxu0 0
    %5661 = vmatpush1.bf16.xpose.msra.mxu0 0
    %5662 = vmatprep.subr.bf16.mxu0 0
    %5663 = vmatpush1.bf16.xpose.msra.mxu0 0
    %5664 = vmatprep.subr.bf16.mxu0 0
    %5665 = vmatpush1.bf16.xpose.msra.mxu0 %v5648
    %5666 = vmatprep.subr.bf16.mxu0 0
    %5667 = vmatpush2.bf16.xpose.msra.mxu0 0
    %5668 = vmatprep.subr.bf16.mxu0 0
    %5669 = vmatpush2.bf16.xpose.msra.mxu0 0
    %5670 = vmatprep.subr.bf16.mxu0 0
    %5671 = vmatpush2.bf16.xpose.msra.mxu0 0
    %5672 = vmatprep.subr.bf16.mxu0 0
    %5673 = vmatpush2.bf16.xpose.msra.mxu0 0
    %5674 = vmatprep.subr.bf16.mxu0 0
    %5675 = vmatpush2.bf16.xpose.msra.mxu0 0
    %5676 = vmatprep.subr.bf16.mxu0 0
    %5677 = vmatpush2.bf16.xpose.msra.mxu0 0
    %5678 = vmatprep.subr.bf16.mxu0 0
    %5679 = vmatpush2.bf16.xpose.msra.mxu0 0
    %5680 = vmatprep.subr.bf16.mxu0 0
    %5681 = vmatpush2.bf16.xpose.msra.mxu0 0
    %5682 = vmatprep.mubr.bf16.mxu0 0
    %5683 = vmatmul.mubr.bf16.gmra.mxu0 %v5645
    %v5684 = vpop.f32.mrf.mxu0
    %v5685 = vadd.f32 0.0, %v5684
    %v5686 = vpop.f32.mrf.mxu0
    %v5687 = vpop.f32.mrf.mxu0
    %v5688 = vpop.f32.mrf.mxu0
    %5689 = vdwg.mxu0
    %vm5690 = vcmask 25600
    %v5691 = vsel %vm5690, %v5314, 0.0
    %v5692 = vsel %vm5690, %v5367, 0.0
    %v5693 = vadd.f32 %v5691, %v5692
    %v5694 = vsel %vm5690, %v5420, 0.0
    %v5695 = vadd.f32 %v5693, %v5694
    %v5696 = vsel %vm5690, %v5473, 0.0
    %v5697 = vadd.f32 %v5695, %v5696
    %v5698 = vsel %vm5690, %v5526, 0.0
    %v5699 = vadd.f32 %v5697, %v5698
    %v5700 = vsel %vm5690, %v5579, 0.0
    %v5701 = vadd.f32 %v5699, %v5700
    %v5702 = vsel %vm5690, %v5632, 0.0
    %v5703 = vadd.f32 %v5701, %v5702
    %v5704 = vsel %vm5690, %v5685, 0.0
    %v5705 = vadd.f32 %v5703, %v5704
    %v5706 = vld [vmem:[%s11] sm:$0x1]
    %v5708 = vlaneseq
    %v5709 = vshrl.u32 %v5708, 7
    %v5710 = vsub.s32 0, %v5709
    %v5711 = vrot.slane %v5706, %v5710
    %v5713 = vadd.f32 %v5705, %v5711
    %5714 = vst.msk [vmem:[#allocation17] sm:$0x3] %vm5690, %v5713
    // Predicated region
    $region86: #{tpu_custom_call.1} parent=1 // pred_check
      _
    $region87: #{tpu_custom_call.1} parent=1 // pred_check_branch
      %5716 = sbr.rel (0) target = $region89
    $region88: #{tpu_custom_call.1} parent=1 // pred_region
      %s5718 = ssub.s32 32, 32
      %5719 = vsyncadd [#allocation4], %s5718
      %s5721 = sshll.u32 [#allocation17], 4
      %s5722 = int_to_ptr.vmem [resolvable:$true] %s5721
      %5724 = dma.vmem_to_hbm [thread:$0]  %s5722, 32, %s12, [#allocation4]
    $region89: #{tpu_custom_call.1} parent=1 // pred_fallthru
      _
    // Predicated region
    $region90: #{tpu_custom_call.1} parent=1 // pred_check
      _
    $region91: #{tpu_custom_call.1} parent=1 // pred_check_branch
      %5726 = sbr.rel (0) target = $region93
    $region92: #{tpu_custom_call.1} parent=1 // pred_region
      %5727 = dma.done [#allocation4], 32
    $region93: #{tpu_custom_call.1} parent=1 // pred_fallthru
      _
    %5728 = vsyncpa [#allocation3], 1
    %5729 = vsyncpa [#allocation6], 1
    %5730 = vsyncpa [#allocation9], 1
    %5731 = vsyncpa [#allocation12], 1
    %5732 = vsyncpa [#allocation15], 1
    %5733 = vsyncpa [#allocation4], 1

</llo_original>
